<compile_context>
chip_gen: v7x
topology: tpu7x:2x2x1
jax: 0.10.0
libtpu: 0.0.40
codegen_flags: <defaults>
</compile_context>

<pallas_src>
import functools

import jax
import jax.numpy as jnp
import numpy as np
from jax import lax
from jax.experimental import pallas as pl
from jax.experimental.pallas import tpu as pltpu

POOL1 = 3  # MaxPool1d(3, 3)
POOL2 = 5  # MaxPool1d(5, 5)


def _conv_model_kernel(xw_ref, w1p_ref, b1_ref, w2_ref, b2_ref, o_ref,
                       *, batch_tile, p1_len):
    """One batch tile (TB samples) per grid step.

    xw_ref : (TB*P1, W1*Cin)     stage-1 lhs, strided im2col built in the
                                 wrapper (W1 = POOL1 + K1 - 1 rows per pooled
                                 position), so conv1+pool1 need no in-kernel
                                 relayout at all.
    w1p_ref: (POOL1, W1*Cin, C1) zero-padded per-phase conv1 weights.
    b1_ref : (1, C1)
    w2_ref : (K2, C1, C2)        conv2 weights, tap-major.
    b2_ref : (1, C2)
    o_ref  : (TB, P2*C2)         pooled outputs; one dense store per step.
    """
    TB = batch_tile
    P1 = p1_len
    n_phase = w1p_ref.shape[0]
    C1 = w1p_ref.shape[2]
    K2, _, C2 = w2_ref.shape
    P2 = o_ref.shape[1] // C2
    L2u = P2 * POOL2          # conv2 positions the pool actually consumes

    xw = xw_ref[...]                                        # (TB*P1, W1*Cin)

    # ---- Stage 1: Conv1d(K1) + ReLU + MaxPool1d(3,3), fused.
    # One matmul per pooling phase; elementwise max across phases == max-pool
    # because ReLU(. + b) is monotone.  No concat, no row gather, no scratch.
    m = jnp.dot(xw, w1p_ref[0], preferred_element_type=jnp.float32)
    for j in range(1, n_phase):
        m = jnp.maximum(
            m, jnp.dot(xw, w1p_ref[j], preferred_element_type=jnp.float32))
    p1 = jnp.maximum(m + b1_ref[...], 0.0)                  # (TB*P1, C1)
    p1 = p1.reshape(TB, P1, C1)

    # ---- Stage 2: Conv1d(K2) + ReLU via per-tap matmul accumulation
    # (no lane-axis im2col concat, no wide (rows, K2*C1) intermediate).
    acc = jnp.dot(p1[:, 0:L2u, :].reshape(TB * L2u, C1), w2_ref[0],
                  preferred_element_type=jnp.float32)
    for k in range(1, K2):
        acc = acc + jnp.dot(p1[:, k:k + L2u, :].reshape(TB * L2u, C1),
                            w2_ref[k], preferred_element_type=jnp.float32)
    h2 = jnp.maximum(acc + b2_ref[...], 0.0).reshape(TB, L2u, C2)

    # ---- MaxPool1d(5,5): one sublane-group reduction per output position,
    # lane-concatenated so the block store is a single dense write.
    parts = [jnp.max(h2[:, POOL2 * p: POOL2 * (p + 1), :], axis=1)
             for p in range(P2)]
    o_ref[...] = jnp.concatenate(parts, axis=-1)            # (TB, P2*C2)


def _pick_batch_tile(n, cap=128):
    """Batch tile TB (multiple of 8) and grid size G (even, >= 2).

    N is padded up to TB*G in the wrapper, so there is no divisibility
    requirement on N (no degenerate TB=1 / grid=N case).  G is kept even so
    v7x's two TensorCores stay balanced on the single "parallel" axis; the
    cap keeps lane-padded f32 intermediates (~50 KiB/sample) comfortably
    inside v5e's 16 MiB scoped-VMEM default and v7x's 64 MiB physical VMEM.
    """
    if n <= 2 * cap:
        grid = 2
        tb = max(8, (((n + grid - 1) // grid) + 7) // 8 * 8)
    else:
        tb = cap
        grid = (n + tb - 1) // tb
        grid += grid % 2
    return tb, grid


@jax.jit
def conv_model_with_reduction(x_ncl, w1, b1, w2, b2):
    """x_ncl: (N, Cin, L) float32; weights in PyTorch layout:
       w1 (C1, Cin, K1), b1 (C1,), w2 (C2, C1, K2), b2 (C2,).
       Returns (N, C2, P2) float32 (same layout as the torch module)."""
    N, Cin, L = x_ncl.shape
    C1, _, K1 = w1.shape
    C2, _, K2 = w2.shape

    L1 = L - K1 + 1
    P1 = (L1 - POOL1) // POOL1 + 1
    L2 = P1 - K2 + 1
    P2 = (L2 - POOL2) // POOL2 + 1
    W1 = POOL1 + K1 - 1                    # x rows feeding one pool1 output

    TB, G = _pick_batch_tile(N)
    NP = TB * G                            # padded batch

    # --- Wrapper-side layout prep (XLA, tiny HBM arrays; no kernel compute).
    x_nlc = jnp.transpose(x_ncl, (0, 2, 1)).astype(jnp.float32)   # (N, L, Cin)
    x_nlc = jnp.pad(x_nlc, ((0, NP - N), (0, 0), (0, 0)))         # (NP, L, Cin)
    # Strided im2col: one row of W1*Cin values per pooled conv1 position.
    xw = jnp.stack([x_nlc[:, POOL1 * p: POOL1 * p + W1, :]
                    for p in range(P1)], axis=1)                  # (NP,P1,W1,Cin)
    xw = xw.reshape(NP * P1, W1 * Cin)

    # Per-phase conv1 weights: phase j = taps shifted by j rows inside the
    # W1-row window, zero elsewhere.  max over phases == MaxPool1d(3,3).
    w1_t = jnp.transpose(w1, (2, 1, 0)).astype(jnp.float32)       # (K1, Cin, C1)
    w1p = jnp.zeros((POOL1, W1, Cin, C1), jnp.float32)
    for j in range(POOL1):
        w1p = w1p.at[j, j:j + K1].set(w1_t)
    w1p = w1p.reshape(POOL1, W1 * Cin, C1)

    w2_t = jnp.transpose(w2, (2, 1, 0)).astype(jnp.float32)       # (K2, C1, C2)
    b1_r = b1.reshape(1, C1).astype(jnp.float32)
    b2_r = b2.reshape(1, C2).astype(jnp.float32)

    kernel = functools.partial(_conv_model_kernel, batch_tile=TB, p1_len=P1)

    out_flat = pl.pallas_call(
        kernel,
        out_shape=jax.ShapeDtypeStruct((NP, P2 * C2), jnp.float32),
        grid_spec=pltpu.PrefetchScalarGridSpec(
            num_scalar_prefetch=0,
            grid=(G,),
            in_specs=[
                pl.BlockSpec((TB * P1, W1 * Cin), lambda n: (n, 0)),
                pl.BlockSpec((POOL1, W1 * Cin, C1), lambda n: (0, 0, 0)),
                pl.BlockSpec((1, C1), lambda n: (0, 0)),
                pl.BlockSpec((K2, C1, C2), lambda n: (0, 0, 0)),
                pl.BlockSpec((1, C2), lambda n: (0, 0)),
            ],
            out_specs=pl.BlockSpec((TB, P2 * C2), lambda n: (n, 0)),
        ),
        compiler_params=pltpu.CompilerParams(
            dimension_semantics=("parallel",)),
    )(xw, w1p, b1_r, w2_t, b2_r)

    out = out_flat[:N].reshape(N, P2, C2)
    return jnp.transpose(out, (0, 2, 1))   # (N, C2, P2), like the torch module


def _reference(x, w1, b1, w2, b2):
    """Pure-JAX reference mirroring the PyTorch module (NCL layout)."""
    dn = ("NCH", "OIH", "NCH")
    h = lax.conv_general_dilated(x, w1, (1,), "VALID", dimension_numbers=dn)
    h = jnp.maximum(h + b1[None, :, None], 0.0)
    p1 = (h.shape[-1] - POOL1) // POOL1 + 1
    h = h[..., : p1 * POOL1].reshape(h.shape[0], h.shape[1], p1, POOL1).max(-1)
    h = lax.conv_general_dilated(h, w2, (1,), "VALID", dimension_numbers=dn)
    h = jnp.maximum(h + b2[None, :, None], 0.0)
    p2 = (h.shape[-1] - POOL2) // POOL2 + 1
    h = h[..., : p2 * POOL2].reshape(h.shape[0], h.shape[1], p2, POOL2).max(-1)
    return h


if __name__ == "__main__":
    # Small shapes consistent with the module's forward.
    N, Cin, L = 2, 4, 64
    C1 = int(Cin * 4.0 / 3.0)        # 5
    C2 = int(Cin * 2.0)              # 8  (n_ft_mul = 2.0)
    K1, K2 = 5, 9

    key = jax.random.PRNGKey(0)
    kx, kw1, kb1, kw2, kb2 = jax.random.split(key, 5)
    x = jax.random.normal(kx, (N, Cin, L), dtype=jnp.float32)
    w1 = jax.random.normal(kw1, (C1, Cin, K1), dtype=jnp.float32) * 0.2
    b1 = jax.random.normal(kb1, (C1,), dtype=jnp.float32) * 0.1
    w2 = jax.random.normal(kw2, (C2, C1, K2), dtype=jnp.float32) * 0.2
    b2 = jax.random.normal(kb2, (C2,), dtype=jnp.float32) * 0.1

    out = conv_model_with_reduction(x, w1, b1, w2, b2)
    out = jax.block_until_ready(out)

    ref = jax.block_until_ready(_reference(x, w1, b1, w2, b2))
    assert out.shape == ref.shape, (out.shape, ref.shape)
    assert np.allclose(np.asarray(out), np.asarray(ref), rtol=1e-3, atol=1e-3)

    print("KERNEL_OK")
</pallas_src>

<mosaic_0001>
module attributes {stable_mosaic.version = 11 : i64} {
  func.func @_conv_model_kernel(%arg0: i32, %arg1: memref<160x28xf32, #tpu.memory_space<vmem>>, %arg2: memref<3x28x5xf32, #tpu.memory_space<vmem>>, %arg3: memref<1x5xf32, #tpu.memory_space<vmem>>, %arg4: memref<9x5x8xf32, #tpu.memory_space<vmem>>, %arg5: memref<1x8xf32, #tpu.memory_space<vmem>>, %arg6: memref<8x16xf32, #tpu.memory_space<vmem>>) attributes {dimension_semantics = [#tpu.dimension_semantics<parallel>], iteration_bounds = array<i64: 2>, scalar_prefetch = 0 : i64, scratch_operands = 0 : i64, tpu.core_type = #tpu.core_type<tc>, window_params = [{transform_indices = @transform_0, window_bounds = array<i64: 160, 28>}, {pipeline_mode = #tpu.pipeline_mode<synchronous>, transform_indices = @transform_1, window_bounds = array<i64: 3, 28, 5>}, {pipeline_mode = #tpu.pipeline_mode<synchronous>, transform_indices = @transform_2, window_bounds = array<i64: 1, 5>}, {pipeline_mode = #tpu.pipeline_mode<synchronous>, transform_indices = @transform_3, window_bounds = array<i64: 9, 5, 8>}, {pipeline_mode = #tpu.pipeline_mode<synchronous>, transform_indices = @transform_4, window_bounds = array<i64: 1, 8>}, {transform_indices = @transform_5, window_bounds = array<i64: 8, 16>}]} {
    %c0 = arith.constant 0 : index
    %c0_0 = arith.constant 0 : index
    %0 = vector.load %arg1[%c0, %c0_0] : memref<160x28xf32, #tpu.memory_space<vmem>>, vector<160x28xf32>
    %c0_1 = arith.constant 0 : index
    %c0_2 = arith.constant 0 : index
    %c0_3 = arith.constant 0 : index
    %1 = vector.load %arg2[%c0_1, %c0_2, %c0_3] : memref<3x28x5xf32, #tpu.memory_space<vmem>>, vector<1x28x5xf32>
    %2 = vector.shape_cast %1 : vector<1x28x5xf32> to vector<28x5xf32>
    %cst = arith.constant dense<0.000000e+00> : vector<160x5xf32>
    %3 = tpu.matmul %0, %2, %cst {dimension_numbers = #tpu.dot_dimension_numbers<[1], [0], [0], [1], [0, 0, 1, 1], [], []>} : vector<160x28xf32>, vector<28x5xf32>, vector<160x5xf32> -> vector<160x5xf32>
    %c1 = arith.constant 1 : index
    %c0_4 = arith.constant 0 : index
    %c0_5 = arith.constant 0 : index
    %4 = vector.load %arg2[%c1, %c0_4, %c0_5] : memref<3x28x5xf32, #tpu.memory_space<vmem>>, vector<1x28x5xf32>
    %5 = vector.shape_cast %4 : vector<1x28x5xf32> to vector<28x5xf32>
    %cst_6 = arith.constant dense<0.000000e+00> : vector<160x5xf32>
    %6 = tpu.matmul %0, %5, %cst_6 {dimension_numbers = #tpu.dot_dimension_numbers<[1], [0], [0], [1], [0, 0, 1, 1], [], []>} : vector<160x28xf32>, vector<28x5xf32>, vector<160x5xf32> -> vector<160x5xf32>
    %7 = arith.maximumf %3, %6 : vector<160x5xf32>
    %c2 = arith.constant 2 : index
    %c0_7 = arith.constant 0 : index
    %c0_8 = arith.constant 0 : index
    %8 = vector.load %arg2[%c2, %c0_7, %c0_8] : memref<3x28x5xf32, #tpu.memory_space<vmem>>, vector<1x28x5xf32>
    %9 = vector.shape_cast %8 : vector<1x28x5xf32> to vector<28x5xf32>
    %cst_9 = arith.constant dense<0.000000e+00> : vector<160x5xf32>
    %10 = tpu.matmul %0, %9, %cst_9 {dimension_numbers = #tpu.dot_dimension_numbers<[1], [0], [0], [1], [0, 0, 1, 1], [], []>} : vector<160x28xf32>, vector<28x5xf32>, vector<160x5xf32> -> vector<160x5xf32>
    %11 = arith.maximumf %7, %10 : vector<160x5xf32>
    %c0_10 = arith.constant 0 : index
    %c0_11 = arith.constant 0 : index
    %12 = vector.load %arg3[%c0_10, %c0_11] : memref<1x5xf32, #tpu.memory_space<vmem>>, vector<1x5xf32>
    %13 = vector.broadcast %12 : vector<1x5xf32> to vector<160x5xf32>
    %14 = arith.addf %11, %13 : vector<160x5xf32>
    %cst_12 = arith.constant 0.000000e+00 : f32
    %15 = vector.broadcast %cst_12 : f32 to vector<160x5xf32>
    %16 = arith.maximumf %14, %15 : vector<160x5xf32>
    %17 = vector.shape_cast %16 : vector<160x5xf32> to vector<8x20x5xf32>
    %18 = vector.extract_strided_slice %17 {offsets = [0, 0, 0], sizes = [8, 10, 5], strides = [1, 1, 1]} : vector<8x20x5xf32> to vector<8x10x5xf32>
    %19 = vector.shape_cast %18 : vector<8x10x5xf32> to vector<80x5xf32>
    %c0_13 = arith.constant 0 : index
    %c0_14 = arith.constant 0 : index
    %c0_15 = arith.constant 0 : index
    %20 = vector.load %arg4[%c0_13, %c0_14, %c0_15] : memref<9x5x8xf32, #tpu.memory_space<vmem>>, vector<1x5x8xf32>
    %21 = vector.shape_cast %20 : vector<1x5x8xf32> to vector<5x8xf32>
    %cst_16 = arith.constant dense<0.000000e+00> : vector<80x8xf32>
    %22 = tpu.matmul %19, %21, %cst_16 {dimension_numbers = #tpu.dot_dimension_numbers<[1], [0], [0], [1], [0, 0, 1, 1], [], []>} : vector<80x5xf32>, vector<5x8xf32>, vector<80x8xf32> -> vector<80x8xf32>
    %23 = vector.extract_strided_slice %17 {offsets = [0, 1, 0], sizes = [8, 10, 5], strides = [1, 1, 1]} : vector<8x20x5xf32> to vector<8x10x5xf32>
    %24 = vector.shape_cast %23 : vector<8x10x5xf32> to vector<80x5xf32>
    %c1_17 = arith.constant 1 : index
    %c0_18 = arith.constant 0 : index
    %c0_19 = arith.constant 0 : index
    %25 = vector.load %arg4[%c1_17, %c0_18, %c0_19] : memref<9x5x8xf32, #tpu.memory_space<vmem>>, vector<1x5x8xf32>
    %26 = vector.shape_cast %25 : vector<1x5x8xf32> to vector<5x8xf32>
    %cst_20 = arith.constant dense<0.000000e+00> : vector<80x8xf32>
    %27 = tpu.matmul %24, %26, %cst_20 {dimension_numbers = #tpu.dot_dimension_numbers<[1], [0], [0], [1], [0, 0, 1, 1], [], []>} : vector<80x5xf32>, vector<5x8xf32>, vector<80x8xf32> -> vector<80x8xf32>
    %28 = arith.addf %22, %27 : vector<80x8xf32>
    %29 = vector.extract_strided_slice %17 {offsets = [0, 2, 0], sizes = [8, 10, 5], strides = [1, 1, 1]} : vector<8x20x5xf32> to vector<8x10x5xf32>
    %30 = vector.shape_cast %29 : vector<8x10x5xf32> to vector<80x5xf32>
    %c2_21 = arith.constant 2 : index
    %c0_22 = arith.constant 0 : index
    %c0_23 = arith.constant 0 : index
    %31 = vector.load %arg4[%c2_21, %c0_22, %c0_23] : memref<9x5x8xf32, #tpu.memory_space<vmem>>, vector<1x5x8xf32>
    %32 = vector.shape_cast %31 : vector<1x5x8xf32> to vector<5x8xf32>
    %cst_24 = arith.constant dense<0.000000e+00> : vector<80x8xf32>
    %33 = tpu.matmul %30, %32, %cst_24 {dimension_numbers = #tpu.dot_dimension_numbers<[1], [0], [0], [1], [0, 0, 1, 1], [], []>} : vector<80x5xf32>, vector<5x8xf32>, vector<80x8xf32> -> vector<80x8xf32>
    %34 = arith.addf %28, %33 : vector<80x8xf32>
    %35 = vector.extract_strided_slice %17 {offsets = [0, 3, 0], sizes = [8, 10, 5], strides = [1, 1, 1]} : vector<8x20x5xf32> to vector<8x10x5xf32>
    %36 = vector.shape_cast %35 : vector<8x10x5xf32> to vector<80x5xf32>
    %c3 = arith.constant 3 : index
    %c0_25 = arith.constant 0 : index
    %c0_26 = arith.constant 0 : index
    %37 = vector.load %arg4[%c3, %c0_25, %c0_26] : memref<9x5x8xf32, #tpu.memory_space<vmem>>, vector<1x5x8xf32>
    %38 = vector.shape_cast %37 : vector<1x5x8xf32> to vector<5x8xf32>
    %cst_27 = arith.constant dense<0.000000e+00> : vector<80x8xf32>
    %39 = tpu.matmul %36, %38, %cst_27 {dimension_numbers = #tpu.dot_dimension_numbers<[1], [0], [0], [1], [0, 0, 1, 1], [], []>} : vector<80x5xf32>, vector<5x8xf32>, vector<80x8xf32> -> vector<80x8xf32>
    %40 = arith.addf %34, %39 : vector<80x8xf32>
    %41 = vector.extract_strided_slice %17 {offsets = [0, 4, 0], sizes = [8, 10, 5], strides = [1, 1, 1]} : vector<8x20x5xf32> to vector<8x10x5xf32>
    %42 = vector.shape_cast %41 : vector<8x10x5xf32> to vector<80x5xf32>
    %c4 = arith.constant 4 : index
    %c0_28 = arith.constant 0 : index
    %c0_29 = arith.constant 0 : index
    %43 = vector.load %arg4[%c4, %c0_28, %c0_29] : memref<9x5x8xf32, #tpu.memory_space<vmem>>, vector<1x5x8xf32>
    %44 = vector.shape_cast %43 : vector<1x5x8xf32> to vector<5x8xf32>
    %cst_30 = arith.constant dense<0.000000e+00> : vector<80x8xf32>
    %45 = tpu.matmul %42, %44, %cst_30 {dimension_numbers = #tpu.dot_dimension_numbers<[1], [0], [0], [1], [0, 0, 1, 1], [], []>} : vector<80x5xf32>, vector<5x8xf32>, vector<80x8xf32> -> vector<80x8xf32>
    %46 = arith.addf %40, %45 : vector<80x8xf32>
    %47 = vector.extract_strided_slice %17 {offsets = [0, 5, 0], sizes = [8, 10, 5], strides = [1, 1, 1]} : vector<8x20x5xf32> to vector<8x10x5xf32>
    %48 = vector.shape_cast %47 : vector<8x10x5xf32> to vector<80x5xf32>
    %c5 = arith.constant 5 : index
    %c0_31 = arith.constant 0 : index
    %c0_32 = arith.constant 0 : index
    %49 = vector.load %arg4[%c5, %c0_31, %c0_32] : memref<9x5x8xf32, #tpu.memory_space<vmem>>, vector<1x5x8xf32>
    %50 = vector.shape_cast %49 : vector<1x5x8xf32> to vector<5x8xf32>
    %cst_33 = arith.constant dense<0.000000e+00> : vector<80x8xf32>
    %51 = tpu.matmul %48, %50, %cst_33 {dimension_numbers = #tpu.dot_dimension_numbers<[1], [0], [0], [1], [0, 0, 1, 1], [], []>} : vector<80x5xf32>, vector<5x8xf32>, vector<80x8xf32> -> vector<80x8xf32>
    %52 = arith.addf %46, %51 : vector<80x8xf32>
    %53 = vector.extract_strided_slice %17 {offsets = [0, 6, 0], sizes = [8, 10, 5], strides = [1, 1, 1]} : vector<8x20x5xf32> to vector<8x10x5xf32>
    %54 = vector.shape_cast %53 : vector<8x10x5xf32> to vector<80x5xf32>
    %c6 = arith.constant 6 : index
    %c0_34 = arith.constant 0 : index
    %c0_35 = arith.constant 0 : index
    %55 = vector.load %arg4[%c6, %c0_34, %c0_35] : memref<9x5x8xf32, #tpu.memory_space<vmem>>, vector<1x5x8xf32>
    %56 = vector.shape_cast %55 : vector<1x5x8xf32> to vector<5x8xf32>
    %cst_36 = arith.constant dense<0.000000e+00> : vector<80x8xf32>
    %57 = tpu.matmul %54, %56, %cst_36 {dimension_numbers = #tpu.dot_dimension_numbers<[1], [0], [0], [1], [0, 0, 1, 1], [], []>} : vector<80x5xf32>, vector<5x8xf32>, vector<80x8xf32> -> vector<80x8xf32>
    %58 = arith.addf %52, %57 : vector<80x8xf32>
    %59 = vector.extract_strided_slice %17 {offsets = [0, 7, 0], sizes = [8, 10, 5], strides = [1, 1, 1]} : vector<8x20x5xf32> to vector<8x10x5xf32>
    %60 = vector.shape_cast %59 : vector<8x10x5xf32> to vector<80x5xf32>
    %c7 = arith.constant 7 : index
    %c0_37 = arith.constant 0 : index
    %c0_38 = arith.constant 0 : index
    %61 = vector.load %arg4[%c7, %c0_37, %c0_38] : memref<9x5x8xf32, #tpu.memory_space<vmem>>, vector<1x5x8xf32>
    %62 = vector.shape_cast %61 : vector<1x5x8xf32> to vector<5x8xf32>
    %cst_39 = arith.constant dense<0.000000e+00> : vector<80x8xf32>
    %63 = tpu.matmul %60, %62, %cst_39 {dimension_numbers = #tpu.dot_dimension_numbers<[1], [0], [0], [1], [0, 0, 1, 1], [], []>} : vector<80x5xf32>, vector<5x8xf32>, vector<80x8xf32> -> vector<80x8xf32>
    %64 = arith.addf %58, %63 : vector<80x8xf32>
    %65 = vector.extract_strided_slice %17 {offsets = [0, 8, 0], sizes = [8, 10, 5], strides = [1, 1, 1]} : vector<8x20x5xf32> to vector<8x10x5xf32>
    %66 = vector.shape_cast %65 : vector<8x10x5xf32> to vector<80x5xf32>
    %c8 = arith.constant 8 : index
    %c0_40 = arith.constant 0 : index
    %c0_41 = arith.constant 0 : index
    %67 = vector.load %arg4[%c8, %c0_40, %c0_41] : memref<9x5x8xf32, #tpu.memory_space<vmem>>, vector<1x5x8xf32>
    %68 = vector.shape_cast %67 : vector<1x5x8xf32> to vector<5x8xf32>
    %cst_42 = arith.constant dense<0.000000e+00> : vector<80x8xf32>
    %69 = tpu.matmul %66, %68, %cst_42 {dimension_numbers = #tpu.dot_dimension_numbers<[1], [0], [0], [1], [0, 0, 1, 1], [], []>} : vector<80x5xf32>, vector<5x8xf32>, vector<80x8xf32> -> vector<80x8xf32>
    %70 = arith.addf %64, %69 : vector<80x8xf32>
    %c0_43 = arith.constant 0 : index
    %c0_44 = arith.constant 0 : index
    %71 = vector.load %arg5[%c0_43, %c0_44] : memref<1x8xf32, #tpu.memory_space<vmem>>, vector<1x8xf32>
    %72 = vector.broadcast %71 : vector<1x8xf32> to vector<80x8xf32>
    %73 = arith.addf %70, %72 : vector<80x8xf32>
    %cst_45 = arith.constant 0.000000e+00 : f32
    %74 = vector.broadcast %cst_45 : f32 to vector<80x8xf32>
    %75 = arith.maximumf %73, %74 : vector<80x8xf32>
    %76 = vector.shape_cast %75 : vector<80x8xf32> to vector<8x10x8xf32>
    %77 = vector.extract_strided_slice %76 {offsets = [0, 0, 0], sizes = [8, 5, 8], strides = [1, 1, 1]} : vector<8x10x8xf32> to vector<8x5x8xf32>
    %cst_46 = arith.constant dense<0xFF800000> : vector<8x8xf32>
    %78 = vector.multi_reduction <maximumf>, %77, %cst_46 [1] : vector<8x5x8xf32> to vector<8x8xf32>
    %79 = vector.extract_strided_slice %76 {offsets = [0, 5, 0], sizes = [8, 5, 8], strides = [1, 1, 1]} : vector<8x10x8xf32> to vector<8x5x8xf32>
    %cst_47 = arith.constant dense<0xFF800000> : vector<8x8xf32>
    %80 = vector.multi_reduction <maximumf>, %79, %cst_47 [1] : vector<8x5x8xf32> to vector<8x8xf32>
    %81 = tpu.concatenate %78, %80 in 1 : vector<8x8xf32>, vector<8x8xf32> -> vector<8x16xf32>
    %c0_48 = arith.constant 0 : index
    %c0_49 = arith.constant 0 : index
    %82 = vector.load %arg6[%c0_48, %c0_49] : memref<8x16xf32, #tpu.memory_space<vmem>>, vector<8x16xf32>
    tpu.vector_store %arg6[%c0_48, %c0_49], %81 {strides = array<i32>} : memref<8x16xf32, #tpu.memory_space<vmem>>, vector<8x16xf32>,
    return
  }
  func.func @transform_0(%arg0: i32) -> (i32, i32) {
    %c0_i32 = arith.constant 0 : i32
    %c0_i32_0 = arith.constant 0 : i32
    return %arg0, %c0_i32 : i32, i32
  }
  func.func @transform_1(%arg0: i32) -> (i32, i32, i32) {
    %c0_i32 = arith.constant 0 : i32
    %c0_i32_0 = arith.constant 0 : i32
    %c0_i32_1 = arith.constant 0 : i32
    %c0_i32_2 = arith.constant 0 : i32
    return %c0_i32, %c0_i32_0, %c0_i32_1 : i32, i32, i32
  }
  func.func @transform_2(%arg0: i32) -> (i32, i32) {
    %c0_i32 = arith.constant 0 : i32
    %c0_i32_0 = arith.constant 0 : i32
    %c0_i32_1 = arith.constant 0 : i32
    return %c0_i32, %c0_i32_0 : i32, i32
  }
  func.func @transform_3(%arg0: i32) -> (i32, i32, i32) {
    %c0_i32 = arith.constant 0 : i32
    %c0_i32_0 = arith.constant 0 : i32
    %c0_i32_1 = arith.constant 0 : i32
    %c0_i32_2 = arith.constant 0 : i32
    return %c0_i32, %c0_i32_0, %c0_i32_1 : i32, i32, i32
  }
  func.func @transform_4(%arg0: i32) -> (i32, i32) {
    %c0_i32 = arith.constant 0 : i32
    %c0_i32_0 = arith.constant 0 : i32
    %c0_i32_1 = arith.constant 0 : i32
    return %c0_i32, %c0_i32_0 : i32, i32
  }
  func.func @transform_5(%arg0: i32) -> (i32, i32) {
    %c0_i32 = arith.constant 0 : i32
    %c0_i32_0 = arith.constant 0 : i32
    return %arg0, %c0_i32 : i32, i32
  }
}

</mosaic_0001>

<llo_original>
// kernel: conv_model_with_reduction.1
$region0: #{conv_model_with_reduction.1}
  #allocation0 [shape = 'u32[]', space=smem, size = 0x4, offset = 0x4, fixed_abs, tag = 'smem constant byte address 0x4 - core index']
  #allocation1 [shape = 'u32[144,128]{1,0:T(1,128)}', space=vmem, size = 0x12000, scoped, tag = 'internal scratch']
  %s0 = inlined_call_operand.vmem [shape: f32[320,28], index: 0, kind: input, shape index: {}]
  %s1 = inlined_call_operand.vmem [shape: f32[3,28,5], index: 1, kind: input, shape index: {}]
  %s2 = inlined_call_operand.vmem [shape: f32[1,5], index: 2, kind: input, shape index: {}]
  %s3 = inlined_call_operand.vmem [shape: f32[9,5,8], index: 3, kind: input, shape index: {}]
  %s4 = inlined_call_operand.vmem [shape: f32[1,8], index: 4, kind: input, shape index: {}]
  %s5 = inlined_call_operand.vmem [shape: f32[16,16], index: 5, kind: output, shape index: {}]
  %s6 = sld [smem:[#allocation0]]
  $region53: #{conv_model_with_reduction.1} parent=0
    _
  %s8 = ssub.s32 1, %s6
  %s9 = scalar_select 0, %s8, %s6
  loop: start=0, step=1, limit=4
  $region2: #{conv_model_with_reduction.1} parent=0 // loop_pre_header
    _
  $region3: #{conv_model_with_reduction.1} parent=0 // loop_header
    %s11 = sphi 0, %s15
    %p12 = scmp.ge.s32.totalorder %s11, 4
    %s21 = sphi 0, %s23
    %s24 = sphi 0, %s21
    %s25 = sphi 0, %s24
    %s41 = sphi 0, %s25
    %s45 = sphi 0, %s45
    %s47 = sphi 0, %s45
    %s48 = sphi 0, %s47
    %s62 = sphi 0, %s48
    %s66 = sphi 0, %s66
    %s68 = sphi 0, %s66
    %s69 = sphi 0, %s68
    %s83 = sphi 0, %s69
    %s87 = sphi 0, %s87
    %s89 = sphi 0, %s87
    %s90 = sphi 0, %s89
    %s104 = sphi 0, %s90
    %s108 = sphi 0, %s108
    %s110 = sphi 0, %s108
    %s111 = sphi 0, %s110
    %s125 = sphi 0, %s111
    %s131 = sphi 0, %s133
    %s134 = sphi 0, %s131
    %s135 = sphi 0, %s134
    %s151 = sphi 0, %s135
  $region4: #{conv_model_with_reduction.1} parent=0 // loop_header_branch
    %14 = sbr.rel (%p12) target = $region8
  $region5: #{conv_model_with_reduction.1} parent=0 // loop_body
    %s16 = ssub.s32 %s11, 1
    %s17 = ssub.s32 %s11, 2
    %s18 = sadd.s32 %s11, 1
    %s19 = ssub.s32 %s11, %s18
    %p20 = scmp.eq.s32.totalorder %s19, 0
    %s22 = sadd.s32 %s21, 1
    %s23 = scalar_select %p20, %s21, %s22
    %p26 = pneg %p20
    %p27 = scmp.eq.s32.totalorder %s11, 1
    %p28 = por %p26, %p27
    %p29 = scmp.ne.s32.totalorder %s21, %s24
    %p30 = scmp.eq.s32.totalorder %s11, 0
    %p31 = por %p29, %p30
    %p32 = scmp.ne.s32.totalorder %s21, %s24
    %p33 = scmp.eq.s32.totalorder %s16, 1
    %p34 = por %p32, %p33
    %p35 = scmp.ne.s32.totalorder %s24, %s25
    %p36 = scmp.eq.s32.totalorder %s16, 0
    %p37 = por %p35, %p36
    %p38 = scmp.ne.s32.totalorder %s24, %s25
    %p39 = scmp.eq.s32.totalorder %s17, 1
    %p40 = por %p38, %p39
    %p42 = scmp.ne.s32.totalorder %s25, %s41
    %p43 = scmp.eq.s32.totalorder %s17, 0
    %p44 = por %p42, %p43
    %s46 = sadd.s32 %s45, 1
    %p49 = scmp.eq.s32.totalorder %s11, 1
    %p50 = scmp.ne.s32.totalorder %s45, %s47
    %p51 = scmp.eq.s32.totalorder %s11, 0
    %p52 = por %p50, %p51
    %p53 = scmp.ne.s32.totalorder %s45, %s47
    %p54 = scmp.eq.s32.totalorder %s16, 1
    %p55 = por %p53, %p54
    %p56 = scmp.ne.s32.totalorder %s47, %s48
    %p57 = scmp.eq.s32.totalorder %s16, 0
    %p58 = por %p56, %p57
    %p59 = scmp.ne.s32.totalorder %s47, %s48
    %p60 = scmp.eq.s32.totalorder %s17, 1
    %p61 = por %p59, %p60
    %p63 = scmp.ne.s32.totalorder %s48, %s62
    %p64 = scmp.eq.s32.totalorder %s17, 0
    %p65 = por %p63, %p64
    %s67 = sadd.s32 %s66, 1
    %p70 = scmp.eq.s32.totalorder %s11, 1
    %p71 = scmp.ne.s32.totalorder %s66, %s68
    %p72 = scmp.eq.s32.totalorder %s11, 0
    %p73 = por %p71, %p72
    %p74 = scmp.ne.s32.totalorder %s66, %s68
    %p75 = scmp.eq.s32.totalorder %s16, 1
    %p76 = por %p74, %p75
    %p77 = scmp.ne.s32.totalorder %s68, %s69
    %p78 = scmp.eq.s32.totalorder %s16, 0
    %p79 = por %p77, %p78
    %p80 = scmp.ne.s32.totalorder %s68, %s69
    %p81 = scmp.eq.s32.totalorder %s17, 1
    %p82 = por %p80, %p81
    %p84 = scmp.ne.s32.totalorder %s69, %s83
    %p85 = scmp.eq.s32.totalorder %s17, 0
    %p86 = por %p84, %p85
    %s88 = sadd.s32 %s87, 1
    %p91 = scmp.eq.s32.totalorder %s11, 1
    %p92 = scmp.ne.s32.totalorder %s87, %s89
    %p93 = scmp.eq.s32.totalorder %s11, 0
    %p94 = por %p92, %p93
    %p95 = scmp.ne.s32.totalorder %s87, %s89
    %p96 = scmp.eq.s32.totalorder %s16, 1
    %p97 = por %p95, %p96
    %p98 = scmp.ne.s32.totalorder %s89, %s90
    %p99 = scmp.eq.s32.totalorder %s16, 0
    %p100 = por %p98, %p99
    %p101 = scmp.ne.s32.totalorder %s89, %s90
    %p102 = scmp.eq.s32.totalorder %s17, 1
    %p103 = por %p101, %p102
    %p105 = scmp.ne.s32.totalorder %s90, %s104
    %p106 = scmp.eq.s32.totalorder %s17, 0
    %p107 = por %p105, %p106
    %s109 = sadd.s32 %s108, 1
    %p112 = scmp.eq.s32.totalorder %s11, 1
    %p113 = scmp.ne.s32.totalorder %s108, %s110
    %p114 = scmp.eq.s32.totalorder %s11, 0
    %p115 = por %p113, %p114
    %p116 = scmp.ne.s32.totalorder %s108, %s110
    %p117 = scmp.eq.s32.totalorder %s16, 1
    %p118 = por %p116, %p117
    %p119 = scmp.ne.s32.totalorder %s110, %s111
    %p120 = scmp.eq.s32.totalorder %s16, 0
    %p121 = por %p119, %p120
    %p122 = scmp.ne.s32.totalorder %s110, %s111
    %p123 = scmp.eq.s32.totalorder %s17, 1
    %p124 = por %p122, %p123
    %p126 = scmp.ne.s32.totalorder %s111, %s125
    %p127 = scmp.eq.s32.totalorder %s17, 0
    %p128 = por %p126, %p127
    %s129 = ssub.s32 %s11, %s18
    %p130 = scmp.eq.s32.totalorder %s129, 0
    %s132 = sadd.s32 %s131, 1
    %s133 = scalar_select %p130, %s131, %s132
    %p136 = pneg %p130
    %p137 = scmp.eq.s32.totalorder %s11, 1
    %p138 = por %p136, %p137
    %p139 = scmp.ne.s32.totalorder %s131, %s134
    %p140 = scmp.eq.s32.totalorder %s11, 0
    %p141 = por %p139, %p140
    %p142 = scmp.ne.s32.totalorder %s131, %s134
    %p143 = scmp.eq.s32.totalorder %s16, 1
    %p144 = por %p142, %p143
    %p145 = scmp.ne.s32.totalorder %s134, %s135
    %p146 = scmp.eq.s32.totalorder %s16, 0
    %p147 = por %p145, %p146
    %p148 = scmp.ne.s32.totalorder %s134, %s135
    %p149 = scmp.eq.s32.totalorder %s17, 1
    %p150 = por %p148, %p149
    %p152 = scmp.ne.s32.totalorder %s135, %s151
    %p153 = scmp.eq.s32.totalorder %s17, 0
    %p154 = por %p152, %p153
    %p155 = scmp.le.s32.totalorder 1, %s11
    %p156 = scmp.lt.s32.totalorder %s11, 3
    %p157 = pnand %p155, %p156
    %p158 = pneg %p157
    // Predicated region
    $region9: #{conv_model_with_reduction.1} parent=5 // pred_check
      _
    $region10: #{conv_model_with_reduction.1} parent=5 // pred_check_branch
      %160 = sbr.rel (%p157) target = $region12
    $region11: #{conv_model_with_reduction.1} parent=5 // pred_region
      %s161 = ssub.s32 %s11, 1
      // Predicated region
      $region13: #{conv_model_with_reduction.1} parent=11 // pred_check
        %p162 = pneg %p58
      $region14: #{conv_model_with_reduction.1} parent=11 // pred_check_branch
        %164 = sbr.rel (%p162) target = $region16
      $region15: #{conv_model_with_reduction.1} parent=11 // pred_region
        _
      $region16: #{conv_model_with_reduction.1} parent=11 // pred_fallthru
        _
      // Predicated region
      $region17: #{conv_model_with_reduction.1} parent=11 // pred_check
        %p165 = pneg %p79
      $region18: #{conv_model_with_reduction.1} parent=11 // pred_check_branch
        %167 = sbr.rel (%p165) target = $region20
      $region19: #{conv_model_with_reduction.1} parent=11 // pred_region
        _
      $region20: #{conv_model_with_reduction.1} parent=11 // pred_fallthru
        _
      // Predicated region
      $region21: #{conv_model_with_reduction.1} parent=11 // pred_check
        %p168 = pneg %p100
      $region22: #{conv_model_with_reduction.1} parent=11 // pred_check_branch
        %170 = sbr.rel (%p168) target = $region24
      $region23: #{conv_model_with_reduction.1} parent=11 // pred_region
        _
      $region24: #{conv_model_with_reduction.1} parent=11 // pred_fallthru
        _
      // Predicated region
      $region25: #{conv_model_with_reduction.1} parent=11 // pred_check
        %p171 = pneg %p121
      $region26: #{conv_model_with_reduction.1} parent=11 // pred_check_branch
        %173 = sbr.rel (%p171) target = $region28
      $region27: #{conv_model_with_reduction.1} parent=11 // pred_region
        _
      $region28: #{conv_model_with_reduction.1} parent=11 // pred_fallthru
        _
    $region12: #{conv_model_with_reduction.1} parent=5 // pred_fallthru
      _
    %p174 = scmp.lt.s32.totalorder %s11, 2
    // Predicated region
    $region29: #{conv_model_with_reduction.1} parent=5 // pred_check
      %p175 = pneg %p174
    $region30: #{conv_model_with_reduction.1} parent=5 // pred_check_branch
      %177 = sbr.rel (%p175) target = $region32
    $region31: #{conv_model_with_reduction.1} parent=5 // pred_region
      // Predicated region
      $region33: #{conv_model_with_reduction.1} parent=31 // pred_check
        %p178 = pneg %p31
      $region34: #{conv_model_with_reduction.1} parent=31 // pred_check_branch
        %180 = sbr.rel (%p178) target = $region36
      $region35: #{conv_model_with_reduction.1} parent=31 // pred_region
        %s181 = smul.u32 20, %s11
        %p182 = scmp.lt.s32.totalorder %s181, 39
        %s183 = scalar_select %p182, %s181, 39
        %s184 = smul.addr %s183, 8
        %s185 = scalar_lea.vmem %s0, %s184
        %s186 = smul.u32 20, %s11
      $region36: #{conv_model_with_reduction.1} parent=31 // pred_fallthru
        _
    $region32: #{conv_model_with_reduction.1} parent=5 // pred_fallthru
      _
    %p187 = scmp.le.s32.totalorder 1, %s11
    %p188 = scmp.lt.s32.totalorder %s11, 3
    %p189 = pnand %p187, %p188
    %p190 = pneg %p189
    // Predicated region
    $region37: #{conv_model_with_reduction.1} parent=5 // pred_check
      _
    $region38: #{conv_model_with_reduction.1} parent=5 // pred_check_branch
      %192 = sbr.rel (%p189) target = $region40
    $region39: #{conv_model_with_reduction.1} parent=5 // pred_region
      %s193 = ssub.s32 %s11, 1
      %s194 = smul.u32 20, %s16
      %p195 = scmp.lt.s32.totalorder %s194, 39
      %s196 = scalar_select %p195, %s194, 39
      %s197 = smul.addr %s196, 8
      %s198 = scalar_lea.vmem %s0, %s197
      %p199 = pneg %p37
      %p200 = pneg %p34
      %p201 = pneg %p58
      %p202 = pneg %p55
      %p203 = pneg %p79
      %p204 = pneg %p76
      %p205 = pneg %p100
      %p206 = pneg %p97
      %p207 = pneg %p121
      %p208 = pneg %p118
      %p209 = pneg %p147
      %p210 = pneg %p144
      %p211 = scmp.lt.s32.totalorder %s16, 1
      %s212 = scalar_select %p211, %s16, 1
      %s213 = smul.addr %s212, 8
      %s214 = scalar_lea.vmem %s5, %s213
      %s215 = smul.u32 20, %s16
      %p216 = scmp.lt.s32.totalorder %s215, 39
      %s217 = scalar_select %p216, %s215, 39
      %s218 = smul.addr %s217, 8
      %s219 = scalar_lea.vmem %s0, %s218
      %s220 = smul.u32 20, %s16
      %p221 = scmp.lt.s32.totalorder %s16, 1
      %s222 = scalar_select %p221, %s16, 1
      %s223 = smul.addr %s222, 8
      %s224 = scalar_lea.vmem %s5, %s223
      %v225 = vld [vmem:[%s219] sm:$0xff]
      %v226 = vld [vmem:[%s219 + $0x8] sm:$0xff]
      %v227 = vld [vmem:[%s219 + $0x10] sm:$0xff]
      %v228 = vld [vmem:[%s219 + $0x18] sm:$0xff]
      %v229 = vld [vmem:[%s219 + $0x20] sm:$0xff]
      %v230 = vld [vmem:[%s219 + $0x28] sm:$0xff]
      %v231 = vld [vmem:[%s219 + $0x30] sm:$0xff]
      %v232 = vld [vmem:[%s219 + $0x38] sm:$0xff]
      %v233 = vld [vmem:[%s219 + $0x40] sm:$0xff]
      %v234 = vld [vmem:[%s219 + $0x48] sm:$0xff]
      %v235 = vld [vmem:[%s219 + $0x50] sm:$0xff]
      %v236 = vld [vmem:[%s219 + $0x58] sm:$0xff]
      %v237 = vld [vmem:[%s219 + $0x60] sm:$0xff]
      %v238 = vld [vmem:[%s219 + $0x68] sm:$0xff]
      %v239 = vld [vmem:[%s219 + $0x70] sm:$0xff]
      %v240 = vld [vmem:[%s219 + $0x78] sm:$0xff]
      %v241 = vld [vmem:[%s219 + $0x80] sm:$0xff]
      %v242 = vld [vmem:[%s219 + $0x88] sm:$0xff]
      %v243 = vld [vmem:[%s219 + $0x90] sm:$0xff]
      %v244 = vld [vmem:[%s219 + $0x98] sm:$0xff]
      %v245 = vld [vmem:[%s1] sm:$0xff]
      %v246 = vld [vmem:[%s1 + $0x8] sm:$0xff]
      %v247 = vld [vmem:[%s1 + $0x10] sm:$0xff]
      %v248 = vld [vmem:[%s1 + $0x18] sm:$0xf]
      %vm249 = vcmask 228352
      %v251 = vsel %vm249, %v225, 0
      %v254 = vsel %vm249, %v226, 0
      %v257 = vsel %vm249, %v227, 0
      %v260 = vsel %vm249, %v228, 0
      %v263 = vsel %vm249, %v229, 0
      %v266 = vsel %vm249, %v230, 0
      %v269 = vsel %vm249, %v231, 0
      %v272 = vsel %vm249, %v232, 0
      %v275 = vsel %vm249, %v233, 0
      %v278 = vsel %vm249, %v234, 0
      %v281 = vsel %vm249, %v235, 0
      %v284 = vsel %vm249, %v236, 0
      %v287 = vsel %vm249, %v237, 0
      %v290 = vsel %vm249, %v238, 0
      %v293 = vsel %vm249, %v239, 0
      %v296 = vsel %vm249, %v240, 0
      %v299 = vsel %vm249, %v241, 0
      %v302 = vsel %vm249, %v242, 0
      %v305 = vsel %vm249, %v243, 0
      %v308 = vsel %vm249, %v244, 0
      %vm310 = vcmask 1043456
      %v312 = vsel %vm310, %v248, 0
      %314 = vmatprep.subr.mxu0 0.0
      %315 = vmatpush1.msra.mxu0 %v245
      %316 = vmatprep.subr.mxu0 0.0
      %317 = vmatpush1.msra.mxu0 %v246
      %318 = vmatprep.subr.mxu0 0.0
      %319 = vmatpush1.msra.mxu0 %v247
      %320 = vmatprep.subr.mxu0 0.0
      %321 = vmatpush1.msra.mxu0 %v312
      %322 = vmatprep.subr.mxu0 0.0
      %323 = vmatpush1.msra.mxu0 0.0
      %324 = vmatprep.subr.mxu0 0.0
      %325 = vmatpush1.msra.mxu0 0.0
      %326 = vmatprep.subr.mxu0 0.0
      %327 = vmatpush1.msra.mxu0 0.0
      %328 = vmatprep.subr.mxu0 0.0
      %329 = vmatpush1.msra.mxu0 0.0
      %330 = vmatprep.subr.mxu0 0.0
      %331 = vmatpush1.msra.mxu0 0.0
      %332 = vmatprep.subr.mxu0 0.0
      %333 = vmatpush1.msra.mxu0 0.0
      %334 = vmatprep.subr.mxu0 0.0
      %335 = vmatpush1.msra.mxu0 0.0
      %336 = vmatprep.subr.mxu0 0.0
      %337 = vmatpush1.msra.mxu0 0.0
      %338 = vmatprep.subr.mxu0 0.0
      %339 = vmatpush1.msra.mxu0 0.0
      %340 = vmatprep.subr.mxu0 0.0
      %341 = vmatpush1.msra.mxu0 0.0
      %342 = vmatprep.subr.mxu0 0.0
      %343 = vmatpush1.msra.mxu0 0.0
      %344 = vmatprep.subr.mxu0 0.0
      %345 = vmatpush1.msra.mxu0 0.0
      %346 = vmatprep.subr.mxu0 0.0
      %347 = vmatpush1.msra.mxu0 0.0
      %348 = vmatprep.subr.mxu0 0.0
      %349 = vmatpush1.msra.mxu0 0.0
      %350 = vmatprep.subr.mxu0 0.0
      %351 = vmatpush1.msra.mxu0 0.0
      %352 = vmatprep.subr.mxu0 0.0
      %353 = vmatpush1.msra.mxu0 0.0
      %354 = vmatprep.subr.mxu0 0.0
      %355 = vmatpush1.msra.mxu0 0.0
      %356 = vmatprep.subr.mxu0 0.0
      %357 = vmatpush1.msra.mxu0 0.0
      %358 = vmatprep.subr.mxu0 0.0
      %359 = vmatpush1.msra.mxu0 0.0
      %360 = vmatprep.subr.mxu0 0.0
      %361 = vmatpush1.msra.mxu0 0.0
      %362 = vmatprep.subr.mxu0 0.0
      %363 = vmatpush1.msra.mxu0 0.0
      %364 = vmatprep.subr.mxu0 0.0
      %365 = vmatpush1.msra.mxu0 0.0
      %366 = vmatprep.subr.mxu0 0.0
      %367 = vmatpush1.msra.mxu0 0.0
      %368 = vmatprep.subr.mxu0 0.0
      %369 = vmatpush1.msra.mxu0 0.0
      %370 = vmatprep.subr.mxu0 0.0
      %371 = vmatpush1.msra.mxu0 0.0
      %372 = vmatprep.subr.mxu0 0.0
      %373 = vmatpush1.msra.mxu0 0.0
      %374 = vmatprep.subr.mxu0 0.0
      %375 = vmatpush1.msra.mxu0 0.0
      %376 = vmatprep.subr.mxu0 0.0
      %377 = vmatpush1.msra.mxu0 0.0
      %378 = vmatprep.mubr.f32.mxu0 0.0
      %379 = vmatmul.mubr.f32.gmra.mrb[0].mxu0 %v251
      %v380 = vpop.f32.mrb[0].mxu0
      %v381 = vadd.f32 0.0, %v380
      %v382 = vpop.f32.mrb[0].mxu0
      %383 = vmatprep.mubr.f32.mxu0 0.0
      %384 = vmatmul.mubr.f32.gmra.mrb[0].mxu0 %v254
      %v385 = vpop.f32.mrb[0].mxu0
      %v386 = vadd.f32 0.0, %v385
      %v387 = vpop.f32.mrb[0].mxu0
      %388 = vmatprep.mubr.f32.mxu0 0.0
      %389 = vmatmul.mubr.f32.gmra.mrb[0].mxu0 %v257
      %v390 = vpop.f32.mrb[0].mxu0
      %v391 = vadd.f32 0.0, %v390
      %v392 = vpop.f32.mrb[0].mxu0
      %393 = vmatprep.mubr.f32.mxu0 0.0
      %394 = vmatmul.mubr.f32.gmra.mrb[0].mxu0 %v260
      %v395 = vpop.f32.mrb[0].mxu0
      %v396 = vadd.f32 0.0, %v395
      %v397 = vpop.f32.mrb[0].mxu0
      %398 = vmatprep.mubr.f32.mxu0 0.0
      %399 = vmatmul.mubr.f32.gmra.mrb[0].mxu0 %v263
      %v400 = vpop.f32.mrb[0].mxu0
      %v401 = vadd.f32 0.0, %v400
      %v402 = vpop.f32.mrb[0].mxu0
      %403 = vmatprep.mubr.f32.mxu0 0.0
      %404 = vmatmul.mubr.f32.gmra.mrb[0].mxu0 %v266
      %v405 = vpop.f32.mrb[0].mxu0
      %v406 = vadd.f32 0.0, %v405
      %v407 = vpop.f32.mrb[0].mxu0
      %408 = vmatprep.mubr.f32.mxu0 0.0
      %409 = vmatmul.mubr.f32.gmra.mrb[0].mxu0 %v269
      %v410 = vpop.f32.mrb[0].mxu0
      %v411 = vadd.f32 0.0, %v410
      %v412 = vpop.f32.mrb[0].mxu0
      %413 = vmatprep.mubr.f32.mxu0 0.0
      %414 = vmatmul.mubr.f32.gmra.mrb[0].mxu0 %v272
      %v415 = vpop.f32.mrb[0].mxu0
      %v416 = vadd.f32 0.0, %v415
      %v417 = vpop.f32.mrb[0].mxu0
      %418 = vmatprep.mubr.f32.mxu0 0.0
      %419 = vmatmul.mubr.f32.gmra.mrb[0].mxu0 %v275
      %v420 = vpop.f32.mrb[0].mxu0
      %v421 = vadd.f32 0.0, %v420
      %v422 = vpop.f32.mrb[0].mxu0
      %423 = vmatprep.mubr.f32.mxu0 0.0
      %424 = vmatmul.mubr.f32.gmra.mrb[0].mxu0 %v278
      %v425 = vpop.f32.mrb[0].mxu0
      %v426 = vadd.f32 0.0, %v425
      %v427 = vpop.f32.mrb[0].mxu0
      %428 = vmatprep.mubr.f32.mxu0 0.0
      %429 = vmatmul.mubr.f32.gmra.mrb[0].mxu0 %v281
      %v430 = vpop.f32.mrb[0].mxu0
      %v431 = vadd.f32 0.0, %v430
      %v432 = vpop.f32.mrb[0].mxu0
      %433 = vmatprep.mubr.f32.mxu0 0.0
      %434 = vmatmul.mubr.f32.gmra.mrb[0].mxu0 %v284
      %v435 = vpop.f32.mrb[0].mxu0
      %v436 = vadd.f32 0.0, %v435
      %v437 = vpop.f32.mrb[0].mxu0
      %438 = vmatprep.mubr.f32.mxu0 0.0
      %439 = vmatmul.mubr.f32.gmra.mrb[0].mxu0 %v287
      %v440 = vpop.f32.mrb[0].mxu0
      %v441 = vadd.f32 0.0, %v440
      %v442 = vpop.f32.mrb[0].mxu0
      %443 = vmatprep.mubr.f32.mxu0 0.0
      %444 = vmatmul.mubr.f32.gmra.mrb[0].mxu0 %v290
      %v445 = vpop.f32.mrb[0].mxu0
      %v446 = vadd.f32 0.0, %v445
      %v447 = vpop.f32.mrb[0].mxu0
      %448 = vmatprep.mubr.f32.mxu0 0.0
      %449 = vmatmul.mubr.f32.gmra.mrb[0].mxu0 %v293
      %v450 = vpop.f32.mrb[0].mxu0
      %v451 = vadd.f32 0.0, %v450
      %v452 = vpop.f32.mrb[0].mxu0
      %453 = vmatprep.mubr.f32.mxu0 0.0
      %454 = vmatmul.mubr.f32.gmra.mrb[0].mxu0 %v296
      %v455 = vpop.f32.mrb[0].mxu0
      %v456 = vadd.f32 0.0, %v455
      %v457 = vpop.f32.mrb[0].mxu0
      %458 = vmatprep.mubr.f32.mxu0 0.0
      %459 = vmatmul.mubr.f32.gmra.mrb[0].mxu0 %v299
      %v460 = vpop.f32.mrb[0].mxu0
      %v461 = vadd.f32 0.0, %v460
      %v462 = vpop.f32.mrb[0].mxu0
      %463 = vmatprep.mubr.f32.mxu0 0.0
      %464 = vmatmul.mubr.f32.gmra.mrb[0].mxu0 %v302
      %v465 = vpop.f32.mrb[0].mxu0
      %v466 = vadd.f32 0.0, %v465
      %v467 = vpop.f32.mrb[0].mxu0
      %468 = vmatprep.mubr.f32.mxu0 0.0
      %469 = vmatmul.mubr.f32.gmra.mrb[0].mxu0 %v305
      %v470 = vpop.f32.mrb[0].mxu0
      %v471 = vadd.f32 0.0, %v470
      %v472 = vpop.f32.mrb[0].mxu0
      %473 = vmatprep.mubr.f32.mxu0 0.0
      %474 = vmatmul.mubr.f32.gmra.mrb[0].mxu0 %v308
      %v475 = vpop.f32.mrb[0].mxu0
      %v476 = vadd.f32 0.0, %v475
      %v477 = vpop.f32.mrb[0].mxu0
      %478 = vdwg.mxu0
      %s479 = scalar_lea.vmem %s1, 32
      %v480 = vld [vmem:[%s479] sm:$0xff]
      %v481 = vld [vmem:[%s479 + $0x8] sm:$0xff]
      %v482 = vld [vmem:[%s479 + $0x10] sm:$0xff]
      %v483 = vld [vmem:[%s479 + $0x18] sm:$0xf]
      %v485 = vsel %vm310, %v483, 0
      %487 = vmatprep.subr.mxu0 0.0
      %488 = vmatpush1.msra.mxu0 %v480
      %489 = vmatprep.subr.mxu0 0.0
      %490 = vmatpush1.msra.mxu0 %v481
      %491 = vmatprep.subr.mxu0 0.0
      %492 = vmatpush1.msra.mxu0 %v482
      %493 = vmatprep.subr.mxu0 0.0
      %494 = vmatpush1.msra.mxu0 %v485
      %495 = vmatprep.subr.mxu0 0.0
      %496 = vmatpush1.msra.mxu0 0.0
      %497 = vmatprep.subr.mxu0 0.0
      %498 = vmatpush1.msra.mxu0 0.0
      %499 = vmatprep.subr.mxu0 0.0
      %500 = vmatpush1.msra.mxu0 0.0
      %501 = vmatprep.subr.mxu0 0.0
      %502 = vmatpush1.msra.mxu0 0.0
      %503 = vmatprep.subr.mxu0 0.0
      %504 = vmatpush1.msra.mxu0 0.0
      %505 = vmatprep.subr.mxu0 0.0
      %506 = vmatpush1.msra.mxu0 0.0
      %507 = vmatprep.subr.mxu0 0.0
      %508 = vmatpush1.msra.mxu0 0.0
      %509 = vmatprep.subr.mxu0 0.0
      %510 = vmatpush1.msra.mxu0 0.0
      %511 = vmatprep.subr.mxu0 0.0
      %512 = vmatpush1.msra.mxu0 0.0
      %513 = vmatprep.subr.mxu0 0.0
      %514 = vmatpush1.msra.mxu0 0.0
      %515 = vmatprep.subr.mxu0 0.0
      %516 = vmatpush1.msra.mxu0 0.0
      %517 = vmatprep.subr.mxu0 0.0
      %518 = vmatpush1.msra.mxu0 0.0
      %519 = vmatprep.subr.mxu0 0.0
      %520 = vmatpush1.msra.mxu0 0.0
      %521 = vmatprep.subr.mxu0 0.0
      %522 = vmatpush1.msra.mxu0 0.0
      %523 = vmatprep.subr.mxu0 0.0
      %524 = vmatpush1.msra.mxu0 0.0
      %525 = vmatprep.subr.mxu0 0.0
      %526 = vmatpush1.msra.mxu0 0.0
      %527 = vmatprep.subr.mxu0 0.0
      %528 = vmatpush1.msra.mxu0 0.0
      %529 = vmatprep.subr.mxu0 0.0
      %530 = vmatpush1.msra.mxu0 0.0
      %531 = vmatprep.subr.mxu0 0.0
      %532 = vmatpush1.msra.mxu0 0.0
      %533 = vmatprep.subr.mxu0 0.0
      %534 = vmatpush1.msra.mxu0 0.0
      %535 = vmatprep.subr.mxu0 0.0
      %536 = vmatpush1.msra.mxu0 0.0
      %537 = vmatprep.subr.mxu0 0.0
      %538 = vmatpush1.msra.mxu0 0.0
      %539 = vmatprep.subr.mxu0 0.0
      %540 = vmatpush1.msra.mxu0 0.0
      %541 = vmatprep.subr.mxu0 0.0
      %542 = vmatpush1.msra.mxu0 0.0
      %543 = vmatprep.subr.mxu0 0.0
      %544 = vmatpush1.msra.mxu0 0.0
      %545 = vmatprep.subr.mxu0 0.0
      %546 = vmatpush1.msra.mxu0 0.0
      %547 = vmatprep.subr.mxu0 0.0
      %548 = vmatpush1.msra.mxu0 0.0
      %549 = vmatprep.subr.mxu0 0.0
      %550 = vmatpush1.msra.mxu0 0.0
      %551 = vmatprep.mubr.f32.mxu0 0.0
      %552 = vmatmul.mubr.f32.gmra.mrb[0].mxu0 %v251
      %v553 = vpop.f32.mrb[0].mxu0
      %v554 = vadd.f32 0.0, %v553
      %v555 = vpop.f32.mrb[0].mxu0
      %556 = vmatprep.mubr.f32.mxu0 0.0
      %557 = vmatmul.mubr.f32.gmra.mrb[0].mxu0 %v254
      %v558 = vpop.f32.mrb[0].mxu0
      %v559 = vadd.f32 0.0, %v558
      %v560 = vpop.f32.mrb[0].mxu0
      %561 = vmatprep.mubr.f32.mxu0 0.0
      %562 = vmatmul.mubr.f32.gmra.mrb[0].mxu0 %v257
      %v563 = vpop.f32.mrb[0].mxu0
      %v564 = vadd.f32 0.0, %v563
      %v565 = vpop.f32.mrb[0].mxu0
      %566 = vmatprep.mubr.f32.mxu0 0.0
      %567 = vmatmul.mubr.f32.gmra.mrb[0].mxu0 %v260
      %v568 = vpop.f32.mrb[0].mxu0
      %v569 = vadd.f32 0.0, %v568
      %v570 = vpop.f32.mrb[0].mxu0
      %571 = vmatprep.mubr.f32.mxu0 0.0
      %572 = vmatmul.mubr.f32.gmra.mrb[0].mxu0 %v263
      %v573 = vpop.f32.mrb[0].mxu0
      %v574 = vadd.f32 0.0, %v573
      %v575 = vpop.f32.mrb[0].mxu0
      %576 = vmatprep.mubr.f32.mxu0 0.0
      %577 = vmatmul.mubr.f32.gmra.mrb[0].mxu0 %v266
      %v578 = vpop.f32.mrb[0].mxu0
      %v579 = vadd.f32 0.0, %v578
      %v580 = vpop.f32.mrb[0].mxu0
      %581 = vmatprep.mubr.f32.mxu0 0.0
      %582 = vmatmul.mubr.f32.gmra.mrb[0].mxu0 %v269
      %v583 = vpop.f32.mrb[0].mxu0
      %v584 = vadd.f32 0.0, %v583
      %v585 = vpop.f32.mrb[0].mxu0
      %586 = vmatprep.mubr.f32.mxu0 0.0
      %587 = vmatmul.mubr.f32.gmra.mrb[0].mxu0 %v272
      %v588 = vpop.f32.mrb[0].mxu0
      %v589 = vadd.f32 0.0, %v588
      %v590 = vpop.f32.mrb[0].mxu0
      %591 = vmatprep.mubr.f32.mxu0 0.0
      %592 = vmatmul.mubr.f32.gmra.mrb[0].mxu0 %v275
      %v593 = vpop.f32.mrb[0].mxu0
      %v594 = vadd.f32 0.0, %v593
      %v595 = vpop.f32.mrb[0].mxu0
      %596 = vmatprep.mubr.f32.mxu0 0.0
      %597 = vmatmul.mubr.f32.gmra.mrb[0].mxu0 %v278
      %v598 = vpop.f32.mrb[0].mxu0
      %v599 = vadd.f32 0.0, %v598
      %v600 = vpop.f32.mrb[0].mxu0
      %601 = vmatprep.mubr.f32.mxu0 0.0
      %602 = vmatmul.mubr.f32.gmra.mrb[0].mxu0 %v281
      %v603 = vpop.f32.mrb[0].mxu0
      %v604 = vadd.f32 0.0, %v603
      %v605 = vpop.f32.mrb[0].mxu0
      %606 = vmatprep.mubr.f32.mxu0 0.0
      %607 = vmatmul.mubr.f32.gmra.mrb[0].mxu0 %v284
      %v608 = vpop.f32.mrb[0].mxu0
      %v609 = vadd.f32 0.0, %v608
      %v610 = vpop.f32.mrb[0].mxu0
      %611 = vmatprep.mubr.f32.mxu0 0.0
      %612 = vmatmul.mubr.f32.gmra.mrb[0].mxu0 %v287
      %v613 = vpop.f32.mrb[0].mxu0
      %v614 = vadd.f32 0.0, %v613
      %v615 = vpop.f32.mrb[0].mxu0
      %616 = vmatprep.mubr.f32.mxu0 0.0
      %617 = vmatmul.mubr.f32.gmra.mrb[0].mxu0 %v290
      %v618 = vpop.f32.mrb[0].mxu0
      %v619 = vadd.f32 0.0, %v618
      %v620 = vpop.f32.mrb[0].mxu0
      %621 = vmatprep.mubr.f32.mxu0 0.0
      %622 = vmatmul.mubr.f32.gmra.mrb[0].mxu0 %v293
      %v623 = vpop.f32.mrb[0].mxu0
      %v624 = vadd.f32 0.0, %v623
      %v625 = vpop.f32.mrb[0].mxu0
      %626 = vmatprep.mubr.f32.mxu0 0.0
      %627 = vmatmul.mubr.f32.gmra.mrb[0].mxu0 %v296
      %v628 = vpop.f32.mrb[0].mxu0
      %v629 = vadd.f32 0.0, %v628
      %v630 = vpop.f32.mrb[0].mxu0
      %631 = vmatprep.mubr.f32.mxu0 0.0
      %632 = vmatmul.mubr.f32.gmra.mrb[0].mxu0 %v299
      %v633 = vpop.f32.mrb[0].mxu0
      %v634 = vadd.f32 0.0, %v633
      %v635 = vpop.f32.mrb[0].mxu0
      %636 = vmatprep.mubr.f32.mxu0 0.0
      %637 = vmatmul.mubr.f32.gmra.mrb[0].mxu0 %v302
      %v638 = vpop.f32.mrb[0].mxu0
      %v639 = vadd.f32 0.0, %v638
      %v640 = vpop.f32.mrb[0].mxu0
      %641 = vmatprep.mubr.f32.mxu0 0.0
      %642 = vmatmul.mubr.f32.gmra.mrb[0].mxu0 %v305
      %v643 = vpop.f32.mrb[0].mxu0
      %v644 = vadd.f32 0.0, %v643
      %v645 = vpop.f32.mrb[0].mxu0
      %646 = vmatprep.mubr.f32.mxu0 0.0
      %647 = vmatmul.mubr.f32.gmra.mrb[0].mxu0 %v308
      %v648 = vpop.f32.mrb[0].mxu0
      %v649 = vadd.f32 0.0, %v648
      %v650 = vpop.f32.mrb[0].mxu0
      %651 = vdwg.mxu0
      %v652 = vmax.f32 %v381, %v554
      %v653 = vmax.f32 %v386, %v559
      %v654 = vmax.f32 %v391, %v564
      %v655 = vmax.f32 %v396, %v569
      %v656 = vmax.f32 %v401, %v574
      %v657 = vmax.f32 %v406, %v579
      %v658 = vmax.f32 %v411, %v584
      %v659 = vmax.f32 %v416, %v589
      %v660 = vmax.f32 %v421, %v594
      %v661 = vmax.f32 %v426, %v599
      %v662 = vmax.f32 %v431, %v604
      %v663 = vmax.f32 %v436, %v609
      %v664 = vmax.f32 %v441, %v614
      %v665 = vmax.f32 %v446, %v619
      %v666 = vmax.f32 %v451, %v624
      %v667 = vmax.f32 %v456, %v629
      %v668 = vmax.f32 %v461, %v634
      %v669 = vmax.f32 %v466, %v639
      %v670 = vmax.f32 %v471, %v644
      %v671 = vmax.f32 %v476, %v649
      %s672 = scalar_lea.vmem %s1, 64
      %v673 = vld [vmem:[%s672] sm:$0xff]
      %v674 = vld [vmem:[%s672 + $0x8] sm:$0xff]
      %v675 = vld [vmem:[%s672 + $0x10] sm:$0xff]
      %v676 = vld [vmem:[%s672 + $0x18] sm:$0xf]
      %v678 = vsel %vm310, %v676, 0
      %680 = vmatprep.subr.mxu0 0.0
      %681 = vmatpush1.msra.mxu0 %v673
      %682 = vmatprep.subr.mxu0 0.0
      %683 = vmatpush1.msra.mxu0 %v674
      %684 = vmatprep.subr.mxu0 0.0
      %685 = vmatpush1.msra.mxu0 %v675
      %686 = vmatprep.subr.mxu0 0.0
      %687 = vmatpush1.msra.mxu0 %v678
      %688 = vmatprep.subr.mxu0 0.0
      %689 = vmatpush1.msra.mxu0 0.0
      %690 = vmatprep.subr.mxu0 0.0
      %691 = vmatpush1.msra.mxu0 0.0
      %692 = vmatprep.subr.mxu0 0.0
      %693 = vmatpush1.msra.mxu0 0.0
      %694 = vmatprep.subr.mxu0 0.0
      %695 = vmatpush1.msra.mxu0 0.0
      %696 = vmatprep.subr.mxu0 0.0
      %697 = vmatpush1.msra.mxu0 0.0
      %698 = vmatprep.subr.mxu0 0.0
      %699 = vmatpush1.msra.mxu0 0.0
      %700 = vmatprep.subr.mxu0 0.0
      %701 = vmatpush1.msra.mxu0 0.0
      %702 = vmatprep.subr.mxu0 0.0
      %703 = vmatpush1.msra.mxu0 0.0
      %704 = vmatprep.subr.mxu0 0.0
      %705 = vmatpush1.msra.mxu0 0.0
      %706 = vmatprep.subr.mxu0 0.0
      %707 = vmatpush1.msra.mxu0 0.0
      %708 = vmatprep.subr.mxu0 0.0
      %709 = vmatpush1.msra.mxu0 0.0
      %710 = vmatprep.subr.mxu0 0.0
      %711 = vmatpush1.msra.mxu0 0.0
      %712 = vmatprep.subr.mxu0 0.0
      %713 = vmatpush1.msra.mxu0 0.0
      %714 = vmatprep.subr.mxu0 0.0
      %715 = vmatpush1.msra.mxu0 0.0
      %716 = vmatprep.subr.mxu0 0.0
      %717 = vmatpush1.msra.mxu0 0.0
      %718 = vmatprep.subr.mxu0 0.0
      %719 = vmatpush1.msra.mxu0 0.0
      %720 = vmatprep.subr.mxu0 0.0
      %721 = vmatpush1.msra.mxu0 0.0
      %722 = vmatprep.subr.mxu0 0.0
      %723 = vmatpush1.msra.mxu0 0.0
      %724 = vmatprep.subr.mxu0 0.0
      %725 = vmatpush1.msra.mxu0 0.0
      %726 = vmatprep.subr.mxu0 0.0
      %727 = vmatpush1.msra.mxu0 0.0
      %728 = vmatprep.subr.mxu0 0.0
      %729 = vmatpush1.msra.mxu0 0.0
      %730 = vmatprep.subr.mxu0 0.0
      %731 = vmatpush1.msra.mxu0 0.0
      %732 = vmatprep.subr.mxu0 0.0
      %733 = vmatpush1.msra.mxu0 0.0
      %734 = vmatprep.subr.mxu0 0.0
      %735 = vmatpush1.msra.mxu0 0.0
      %736 = vmatprep.subr.mxu0 0.0
      %737 = vmatpush1.msra.mxu0 0.0
      %738 = vmatprep.subr.mxu0 0.0
      %739 = vmatpush1.msra.mxu0 0.0
      %740 = vmatprep.subr.mxu0 0.0
      %741 = vmatpush1.msra.mxu0 0.0
      %742 = vmatprep.subr.mxu0 0.0
      %743 = vmatpush1.msra.mxu0 0.0
      %744 = vmatprep.mubr.f32.mxu0 0.0
      %745 = vmatmul.mubr.f32.gmra.mrb[0].mxu0 %v251
      %v746 = vpop.f32.mrb[0].mxu0
      %v747 = vadd.f32 0.0, %v746
      %v748 = vpop.f32.mrb[0].mxu0
      %749 = vmatprep.mubr.f32.mxu0 0.0
      %750 = vmatmul.mubr.f32.gmra.mrb[0].mxu0 %v254
      %v751 = vpop.f32.mrb[0].mxu0
      %v752 = vadd.f32 0.0, %v751
      %v753 = vpop.f32.mrb[0].mxu0
      %754 = vmatprep.mubr.f32.mxu0 0.0
      %755 = vmatmul.mubr.f32.gmra.mrb[0].mxu0 %v257
      %v756 = vpop.f32.mrb[0].mxu0
      %v757 = vadd.f32 0.0, %v756
      %v758 = vpop.f32.mrb[0].mxu0
      %759 = vmatprep.mubr.f32.mxu0 0.0
      %760 = vmatmul.mubr.f32.gmra.mrb[0].mxu0 %v260
      %v761 = vpop.f32.mrb[0].mxu0
      %v762 = vadd.f32 0.0, %v761
      %v763 = vpop.f32.mrb[0].mxu0
      %764 = vmatprep.mubr.f32.mxu0 0.0
      %765 = vmatmul.mubr.f32.gmra.mrb[0].mxu0 %v263
      %v766 = vpop.f32.mrb[0].mxu0
      %v767 = vadd.f32 0.0, %v766
      %v768 = vpop.f32.mrb[0].mxu0
      %769 = vmatprep.mubr.f32.mxu0 0.0
      %770 = vmatmul.mubr.f32.gmra.mrb[0].mxu0 %v266
      %v771 = vpop.f32.mrb[0].mxu0
      %v772 = vadd.f32 0.0, %v771
      %v773 = vpop.f32.mrb[0].mxu0
      %774 = vmatprep.mubr.f32.mxu0 0.0
      %775 = vmatmul.mubr.f32.gmra.mrb[0].mxu0 %v269
      %v776 = vpop.f32.mrb[0].mxu0
      %v777 = vadd.f32 0.0, %v776
      %v778 = vpop.f32.mrb[0].mxu0
      %779 = vmatprep.mubr.f32.mxu0 0.0
      %780 = vmatmul.mubr.f32.gmra.mrb[0].mxu0 %v272
      %v781 = vpop.f32.mrb[0].mxu0
      %v782 = vadd.f32 0.0, %v781
      %v783 = vpop.f32.mrb[0].mxu0
      %784 = vmatprep.mubr.f32.mxu0 0.0
      %785 = vmatmul.mubr.f32.gmra.mrb[0].mxu0 %v275
      %v786 = vpop.f32.mrb[0].mxu0
      %v787 = vadd.f32 0.0, %v786
      %v788 = vpop.f32.mrb[0].mxu0
      %789 = vmatprep.mubr.f32.mxu0 0.0
      %790 = vmatmul.mubr.f32.gmra.mrb[0].mxu0 %v278
      %v791 = vpop.f32.mrb[0].mxu0
      %v792 = vadd.f32 0.0, %v791
      %v793 = vpop.f32.mrb[0].mxu0
      %794 = vmatprep.mubr.f32.mxu0 0.0
      %795 = vmatmul.mubr.f32.gmra.mrb[0].mxu0 %v281
      %v796 = vpop.f32.mrb[0].mxu0
      %v797 = vadd.f32 0.0, %v796
      %v798 = vpop.f32.mrb[0].mxu0
      %799 = vmatprep.mubr.f32.mxu0 0.0
      %800 = vmatmul.mubr.f32.gmra.mrb[0].mxu0 %v284
      %v801 = vpop.f32.mrb[0].mxu0
      %v802 = vadd.f32 0.0, %v801
      %v803 = vpop.f32.mrb[0].mxu0
      %804 = vmatprep.mubr.f32.mxu0 0.0
      %805 = vmatmul.mubr.f32.gmra.mrb[0].mxu0 %v287
      %v806 = vpop.f32.mrb[0].mxu0
      %v807 = vadd.f32 0.0, %v806
      %v808 = vpop.f32.mrb[0].mxu0
      %809 = vmatprep.mubr.f32.mxu0 0.0
      %810 = vmatmul.mubr.f32.gmra.mrb[0].mxu0 %v290
      %v811 = vpop.f32.mrb[0].mxu0
      %v812 = vadd.f32 0.0, %v811
      %v813 = vpop.f32.mrb[0].mxu0
      %814 = vmatprep.mubr.f32.mxu0 0.0
      %815 = vmatmul.mubr.f32.gmra.mrb[0].mxu0 %v293
      %v816 = vpop.f32.mrb[0].mxu0
      %v817 = vadd.f32 0.0, %v816
      %v818 = vpop.f32.mrb[0].mxu0
      %819 = vmatprep.mubr.f32.mxu0 0.0
      %820 = vmatmul.mubr.f32.gmra.mrb[0].mxu0 %v296
      %v821 = vpop.f32.mrb[0].mxu0
      %v822 = vadd.f32 0.0, %v821
      %v823 = vpop.f32.mrb[0].mxu0
      %824 = vmatprep.mubr.f32.mxu0 0.0
      %825 = vmatmul.mubr.f32.gmra.mrb[0].mxu0 %v299
      %v826 = vpop.f32.mrb[0].mxu0
      %v827 = vadd.f32 0.0, %v826
      %v828 = vpop.f32.mrb[0].mxu0
      %829 = vmatprep.mubr.f32.mxu0 0.0
      %830 = vmatmul.mubr.f32.gmra.mrb[0].mxu0 %v302
      %v831 = vpop.f32.mrb[0].mxu0
      %v832 = vadd.f32 0.0, %v831
      %v833 = vpop.f32.mrb[0].mxu0
      %834 = vmatprep.mubr.f32.mxu0 0.0
      %835 = vmatmul.mubr.f32.gmra.mrb[0].mxu0 %v305
      %v836 = vpop.f32.mrb[0].mxu0
      %v837 = vadd.f32 0.0, %v836
      %v838 = vpop.f32.mrb[0].mxu0
      %839 = vmatprep.mubr.f32.mxu0 0.0
      %840 = vmatmul.mubr.f32.gmra.mrb[0].mxu0 %v308
      %v841 = vpop.f32.mrb[0].mxu0
      %v842 = vadd.f32 0.0, %v841
      %v843 = vpop.f32.mrb[0].mxu0
      %844 = vdwg.mxu0
      %v845 = vmax.f32 %v652, %v747
      %v846 = vmax.f32 %v653, %v752
      %v847 = vmax.f32 %v654, %v757
      %v848 = vmax.f32 %v655, %v762
      %v849 = vmax.f32 %v656, %v767
      %v850 = vmax.f32 %v657, %v772
      %v851 = vmax.f32 %v658, %v777
      %v852 = vmax.f32 %v659, %v782
      %v853 = vmax.f32 %v660, %v787
      %v854 = vmax.f32 %v661, %v792
      %v855 = vmax.f32 %v662, %v797
      %v856 = vmax.f32 %v663, %v802
      %v857 = vmax.f32 %v664, %v807
      %v858 = vmax.f32 %v665, %v812
      %v859 = vmax.f32 %v666, %v817
      %v860 = vmax.f32 %v667, %v822
      %v861 = vmax.f32 %v668, %v827
      %v862 = vmax.f32 %v669, %v832
      %v863 = vmax.f32 %v670, %v837
      %v864 = vmax.f32 %v671, %v842
      %v865 = vld [vmem:[%s2] sm:$0x1]
      %v867 = vlaneseq
      %v868 = vshrl.u32 %v867, 7
      %v869 = vsub.s32 0, %v868
      %v870 = vrot.slane %v865, %v869
      %v872 = vadd.f32 %v845, %v870
      %v873 = vadd.f32 %v846, %v870
      %v874 = vadd.f32 %v847, %v870
      %v875 = vadd.f32 %v848, %v870
      %v876 = vadd.f32 %v849, %v870
      %v877 = vadd.f32 %v850, %v870
      %v878 = vadd.f32 %v851, %v870
      %v879 = vadd.f32 %v852, %v870
      %v880 = vadd.f32 %v853, %v870
      %v881 = vadd.f32 %v854, %v870
      %v882 = vadd.f32 %v855, %v870
      %v883 = vadd.f32 %v856, %v870
      %v884 = vadd.f32 %v857, %v870
      %v885 = vadd.f32 %v858, %v870
      %v886 = vadd.f32 %v859, %v870
      %v887 = vadd.f32 %v860, %v870
      %v888 = vadd.f32 %v861, %v870
      %v889 = vadd.f32 %v862, %v870
      %v890 = vadd.f32 %v863, %v870
      %v891 = vadd.f32 %v864, %v870
      %v892 = vmax.f32 %v872, 0.0
      %v893 = vmax.f32 %v873, 0.0
      %v894 = vmax.f32 %v874, 0.0
      %v895 = vmax.f32 %v875, 0.0
      %v896 = vmax.f32 %v876, 0.0
      %v897 = vmax.f32 %v877, 0.0
      %v898 = vmax.f32 %v878, 0.0
      %v899 = vmax.f32 %v879, 0.0
      %v900 = vmax.f32 %v880, 0.0
      %v901 = vmax.f32 %v881, 0.0
      %v902 = vmax.f32 %v882, 0.0
      %v903 = vmax.f32 %v883, 0.0
      %v904 = vmax.f32 %v884, 0.0
      %v905 = vmax.f32 %v885, 0.0
      %v906 = vmax.f32 %v886, 0.0
      %v907 = vmax.f32 %v887, 0.0
      %v908 = vmax.f32 %v888, 0.0
      %v909 = vmax.f32 %v889, 0.0
      %v910 = vmax.f32 %v890, 0.0
      %v911 = vmax.f32 %v891, 0.0
      %v932 = vcombine.high %v892, %v892
      %v933 = vcombine.high %v893, %v893
      %v934 = vcombine.high %v894, %v894
      %v935 = vcombine.high %v895, %v895
      %v936 = vcombine.high %v896, %v896
      %v937 = vcombine.high %v897, %v897
      %v938 = vcombine.high %v898, %v898
      %v939 = vcombine.high %v899, %v899
      %v940 = vcombine.high %v900, %v900
      %v941 = vcombine.high %v901, %v901
      %v942 = vcombine.high %v902, %v902
      %v943 = vcombine.high %v903, %v903
      %v944 = vcombine.high %v904, %v904
      %v945 = vcombine.high %v905, %v905
      %v946 = vcombine.high %v906, %v906
      %v947 = vcombine.high %v907, %v907
      %v948 = vcombine.high %v908, %v908
      %v949 = vcombine.high %v909, %v909
      %v950 = vcombine.high %v910, %v910
      %v951 = vcombine.high %v911, %v911
      %v953 = vunpack.c.l.s4 1983009808
      %v954 = vunpack.c.0.s8 %v953
      %v955 = vlaneseq
      %v956 = vshrl.u32 %v955, 7
      %v957 = vsub.s32 %v954, %v956
      %v958 = vrot.slane %v892, %v957
      %v959 = vcombine.high %v958, %v958
      %v961 = vunpack.c.l.s4 1983009808
      %v962 = vunpack.c.0.s8 %v961
      %v963 = vlaneseq
      %v964 = vshrl.u32 %v963, 7
      %v965 = vsub.s32 %v962, %v964
      %v966 = vrot.slane %v932, %v965
      %v967 = vcombine.high %v966, %v966
      %v969 = vunpack.c.l.s4 1983009808
      %v970 = vunpack.c.0.s8 %v969
      %v971 = vlaneseq
      %v972 = vshrl.u32 %v971, 7
      %v973 = vsub.s32 %v970, %v972
      %v974 = vrot.slane %v893, %v973
      %v976 = vunpack.c.l.s4 1983009808
      %v977 = vunpack.c.0.s8 %v976
      %v978 = vlaneseq
      %v979 = vshrl.u32 %v978, 7
      %v980 = vsub.s32 %v977, %v979
      %v981 = vrot.slane %v934, %v980
      %v982 = vcombine.high %v981, %v981
      %v984 = vunpack.c.l.s4 1983009808
      %v985 = vunpack.c.0.s8 %v984
      %v986 = vlaneseq
      %v987 = vshrl.u32 %v986, 7
      %v988 = vsub.s32 %v985, %v987
      %v989 = vrot.slane %v895, %v988
      %v990 = vcombine.high %v989, %v989
      %v992 = vunpack.c.l.s4 1983009808
      %v993 = vunpack.c.0.s8 %v992
      %v994 = vlaneseq
      %v995 = vshrl.u32 %v994, 7
      %v996 = vsub.s32 %v993, %v995
      %v997 = vrot.slane %v935, %v996
      %v999 = vunpack.c.l.s4 1983009808
      %v1000 = vunpack.c.0.s8 %v999
      %v1001 = vlaneseq
      %v1002 = vshrl.u32 %v1001, 7
      %v1003 = vsub.s32 %v1000, %v1002
      %v1004 = vrot.slane %v897, %v1003
      %v1005 = vcombine.high %v1004, %v1004
      %v1007 = vunpack.c.l.s4 1983009808
      %v1008 = vunpack.c.0.s8 %v1007
      %v1009 = vlaneseq
      %v1010 = vshrl.u32 %v1009, 7
      %v1011 = vsub.s32 %v1008, %v1010
      %v1012 = vrot.slane %v937, %v1011
      %v1013 = vcombine.high %v1012, %v1012
      %v1015 = vunpack.c.l.s4 1983009808
      %v1016 = vunpack.c.0.s8 %v1015
      %v1017 = vlaneseq
      %v1018 = vshrl.u32 %v1017, 7
      %v1019 = vsub.s32 %v1016, %v1018
      %v1020 = vrot.slane %v898, %v1019
      %v1022 = vunpack.c.l.s4 1983009808
      %v1023 = vunpack.c.0.s8 %v1022
      %v1024 = vlaneseq
      %v1025 = vshrl.u32 %v1024, 7
      %v1026 = vsub.s32 %v1023, %v1025
      %v1027 = vrot.slane %v939, %v1026
      %v1028 = vcombine.high %v1027, %v1027
      %v1030 = vunpack.c.l.s4 1983009808
      %v1031 = vunpack.c.0.s8 %v1030
      %v1032 = vlaneseq
      %v1033 = vshrl.u32 %v1032, 7
      %v1034 = vsub.s32 %v1031, %v1033
      %v1035 = vrot.slane %v900, %v1034
      %v1036 = vcombine.high %v1035, %v1035
      %v1038 = vunpack.c.l.s4 1983009808
      %v1039 = vunpack.c.0.s8 %v1038
      %v1040 = vlaneseq
      %v1041 = vshrl.u32 %v1040, 7
      %v1042 = vsub.s32 %v1039, %v1041
      %v1043 = vrot.slane %v940, %v1042
      %v1045 = vunpack.c.l.s4 1983009808
      %v1046 = vunpack.c.0.s8 %v1045
      %v1047 = vlaneseq
      %v1048 = vshrl.u32 %v1047, 7
      %v1049 = vsub.s32 %v1046, %v1048
      %v1050 = vrot.slane %v902, %v1049
      %v1051 = vcombine.high %v1050, %v1050
      %v1053 = vunpack.c.l.s4 1983009808
      %v1054 = vunpack.c.0.s8 %v1053
      %v1055 = vlaneseq
      %v1056 = vshrl.u32 %v1055, 7
      %v1057 = vsub.s32 %v1054, %v1056
      %v1058 = vrot.slane %v942, %v1057
      %v1059 = vcombine.high %v1058, %v1058
      %v1061 = vunpack.c.l.s4 1983009808
      %v1062 = vunpack.c.0.s8 %v1061
      %v1063 = vlaneseq
      %v1064 = vshrl.u32 %v1063, 7
      %v1065 = vsub.s32 %v1062, %v1064
      %v1066 = vrot.slane %v903, %v1065
      %v1068 = vunpack.c.l.s4 1983009808
      %v1069 = vunpack.c.0.s8 %v1068
      %v1070 = vlaneseq
      %v1071 = vshrl.u32 %v1070, 7
      %v1072 = vsub.s32 %v1069, %v1071
      %v1073 = vrot.slane %v944, %v1072
      %v1074 = vcombine.high %v1073, %v1073
      %v1076 = vunpack.c.l.s4 1983009808
      %v1077 = vunpack.c.0.s8 %v1076
      %v1078 = vlaneseq
      %v1079 = vshrl.u32 %v1078, 7
      %v1080 = vsub.s32 %v1077, %v1079
      %v1081 = vrot.slane %v905, %v1080
      %v1082 = vcombine.high %v1081, %v1081
      %v1084 = vunpack.c.l.s4 1983009808
      %v1085 = vunpack.c.0.s8 %v1084
      %v1086 = vlaneseq
      %v1087 = vshrl.u32 %v1086, 7
      %v1088 = vsub.s32 %v1085, %v1087
      %v1089 = vrot.slane %v945, %v1088
      %v1091 = vunpack.c.l.s4 1983009808
      %v1092 = vunpack.c.0.s8 %v1091
      %v1093 = vlaneseq
      %v1094 = vshrl.u32 %v1093, 7
      %v1095 = vsub.s32 %v1092, %v1094
      %v1096 = vrot.slane %v907, %v1095
      %v1097 = vcombine.high %v1096, %v1096
      %v1099 = vunpack.c.l.s4 1983009808
      %v1100 = vunpack.c.0.s8 %v1099
      %v1101 = vlaneseq
      %v1102 = vshrl.u32 %v1101, 7
      %v1103 = vsub.s32 %v1100, %v1102
      %v1104 = vrot.slane %v947, %v1103
      %v1105 = vcombine.high %v1104, %v1104
      %v1107 = vunpack.c.l.s4 1983009808
      %v1108 = vunpack.c.0.s8 %v1107
      %v1109 = vlaneseq
      %v1110 = vshrl.u32 %v1109, 7
      %v1111 = vsub.s32 %v1108, %v1110
      %v1112 = vrot.slane %v908, %v1111
      %v1114 = vunpack.c.l.s4 1983009808
      %v1115 = vunpack.c.0.s8 %v1114
      %v1116 = vlaneseq
      %v1117 = vshrl.u32 %v1116, 7
      %v1118 = vsub.s32 %v1115, %v1117
      %v1119 = vrot.slane %v949, %v1118
      %v1120 = vcombine.high %v1119, %v1119
      %v1122 = vunpack.c.l.s4 1983009808
      %v1123 = vunpack.c.0.s8 %v1122
      %v1124 = vlaneseq
      %v1125 = vshrl.u32 %v1124, 7
      %v1126 = vsub.s32 %v1123, %v1125
      %v1127 = vrot.slane %v910, %v1126
      %v1128 = vcombine.high %v1127, %v1127
      %v1130 = vunpack.c.l.s4 1983009808
      %v1131 = vunpack.c.0.s8 %v1130
      %v1132 = vlaneseq
      %v1133 = vshrl.u32 %v1132, 7
      %v1134 = vsub.s32 %v1131, %v1133
      %v1135 = vrot.slane %v950, %v1134
      %v1136 = vld [vmem:[%s3] sm:$0x1f]
      %v1137 = vcombine.high %v974, %v974
      %v1138 = vcombine.high %v997, %v997
      %v1139 = vcombine.high %v1020, %v1020
      %v1140 = vcombine.high %v1043, %v1043
      %v1141 = vcombine.high %v1066, %v1066
      %v1142 = vcombine.high %v1089, %v1089
      %v1143 = vcombine.high %v1112, %v1112
      %v1144 = vcombine.high %v1135, %v1135
      %vm1145 = vcmask 1040384
      %vm1146 = vcmask 1042434
      %vm1147 = vmor %vm1145, %vm1146
      %vm1148 = vcmask 1044484
      %vm1149 = vmor %vm1147, %vm1148
      %vm1150 = vcmask 1046534
      %vm1151 = vmor %vm1149, %vm1150
      %v1152 = vrot.slane %v958, 7
      %v1153 = vrot.slane %v1152, 2
      %v1154 = vrot.slane %v959, 7
      %v1155 = vsel %vm1151, %v1153, %v1154
      %v1156 = vrot.slane %v1154, 2
      %v1157 = vrot.slane %v966, 7
      %v1158 = vsel %vm1151, %v1156, %v1157
      %v1159 = vrot.slane %v1157, 2
      %v1160 = vrot.slane %v967, 7
      %v1161 = vsel %vm1151, %v1159, %v1160
      %v1162 = vrot.slane %v1160, 2
      %v1163 = vrot.slane %v974, 7
      %v1164 = vsel %vm1151, %v1162, %v1163
      %v1165 = vrot.slane %v1163, 2
      %v1166 = vrot.slane %v1137, 7
      %v1167 = vsel %vm1151, %v1165, %v1166
      %v1168 = vrot.slane %v981, 7
      %v1169 = vrot.slane %v1168, 2
      %v1170 = vrot.slane %v982, 7
      %v1171 = vsel %vm1151, %v1169, %v1170
      %v1172 = vrot.slane %v1170, 2
      %v1173 = vrot.slane %v989, 7
      %v1174 = vsel %vm1151, %v1172, %v1173
      %v1175 = vrot.slane %v1173, 2
      %v1176 = vrot.slane %v990, 7
      %v1177 = vsel %vm1151, %v1175, %v1176
      %v1178 = vrot.slane %v1176, 2
      %v1179 = vrot.slane %v997, 7
      %v1180 = vsel %vm1151, %v1178, %v1179
      %v1181 = vrot.slane %v1179, 2
      %v1182 = vrot.slane %v1138, 7
      %v1183 = vsel %vm1151, %v1181, %v1182
      %v1184 = vrot.slane %v1004, 7
      %v1185 = vrot.slane %v1184, 2
      %v1186 = vrot.slane %v1005, 7
      %v1187 = vsel %vm1151, %v1185, %v1186
      %v1188 = vrot.slane %v1186, 2
      %v1189 = vrot.slane %v1012, 7
      %v1190 = vsel %vm1151, %v1188, %v1189
      %v1191 = vrot.slane %v1189, 2
      %v1192 = vrot.slane %v1013, 7
      %v1193 = vsel %vm1151, %v1191, %v1192
      %v1194 = vrot.slane %v1192, 2
      %v1195 = vrot.slane %v1020, 7
      %v1196 = vsel %vm1151, %v1194, %v1195
      %v1197 = vrot.slane %v1195, 2
      %v1198 = vrot.slane %v1139, 7
      %v1199 = vsel %vm1151, %v1197, %v1198
      %v1200 = vrot.slane %v1027, 7
      %v1201 = vrot.slane %v1200, 2
      %v1202 = vrot.slane %v1028, 7
      %v1203 = vsel %vm1151, %v1201, %v1202
      %v1204 = vrot.slane %v1202, 2
      %v1205 = vrot.slane %v1035, 7
      %v1206 = vsel %vm1151, %v1204, %v1205
      %v1207 = vrot.slane %v1205, 2
      %v1208 = vrot.slane %v1036, 7
      %v1209 = vsel %vm1151, %v1207, %v1208
      %v1210 = vrot.slane %v1208, 2
      %v1211 = vrot.slane %v1043, 7
      %v1212 = vsel %vm1151, %v1210, %v1211
      %v1213 = vrot.slane %v1211, 2
      %v1214 = vrot.slane %v1140, 7
      %v1215 = vsel %vm1151, %v1213, %v1214
      %v1216 = vrot.slane %v1050, 7
      %v1217 = vrot.slane %v1216, 2
      %v1218 = vrot.slane %v1051, 7
      %v1219 = vsel %vm1151, %v1217, %v1218
      %v1220 = vrot.slane %v1218, 2
      %v1221 = vrot.slane %v1058, 7
      %v1222 = vsel %vm1151, %v1220, %v1221
      %v1223 = vrot.slane %v1221, 2
      %v1224 = vrot.slane %v1059, 7
      %v1225 = vsel %vm1151, %v1223, %v1224
      %v1226 = vrot.slane %v1224, 2
      %v1227 = vrot.slane %v1066, 7
      %v1228 = vsel %vm1151, %v1226, %v1227
      %v1229 = vrot.slane %v1227, 2
      %v1230 = vrot.slane %v1141, 7
      %v1231 = vsel %vm1151, %v1229, %v1230
      %v1232 = vrot.slane %v1073, 7
      %v1233 = vrot.slane %v1232, 2
      %v1234 = vrot.slane %v1074, 7
      %v1235 = vsel %vm1151, %v1233, %v1234
      %v1236 = vrot.slane %v1234, 2
      %v1237 = vrot.slane %v1081, 7
      %v1238 = vsel %vm1151, %v1236, %v1237
      %v1239 = vrot.slane %v1237, 2
      %v1240 = vrot.slane %v1082, 7
      %v1241 = vsel %vm1151, %v1239, %v1240
      %v1242 = vrot.slane %v1240, 2
      %v1243 = vrot.slane %v1089, 7
      %v1244 = vsel %vm1151, %v1242, %v1243
      %v1245 = vrot.slane %v1243, 2
      %v1246 = vrot.slane %v1142, 7
      %v1247 = vsel %vm1151, %v1245, %v1246
      %v1248 = vrot.slane %v1096, 7
      %v1249 = vrot.slane %v1248, 2
      %v1250 = vrot.slane %v1097, 7
      %v1251 = vsel %vm1151, %v1249, %v1250
      %v1252 = vrot.slane %v1250, 2
      %v1253 = vrot.slane %v1104, 7
      %v1254 = vsel %vm1151, %v1252, %v1253
      %v1255 = vrot.slane %v1253, 2
      %v1256 = vrot.slane %v1105, 7
      %v1257 = vsel %vm1151, %v1255, %v1256
      %v1258 = vrot.slane %v1256, 2
      %v1259 = vrot.slane %v1112, 7
      %v1260 = vsel %vm1151, %v1258, %v1259
      %v1261 = vrot.slane %v1259, 2
      %v1262 = vrot.slane %v1143, 7
      %v1263 = vsel %vm1151, %v1261, %v1262
      %v1264 = vrot.slane %v1119, 7
      %v1265 = vrot.slane %v1264, 2
      %v1266 = vrot.slane %v1120, 7
      %v1267 = vsel %vm1151, %v1265, %v1266
      %v1268 = vrot.slane %v1266, 2
      %v1269 = vrot.slane %v1127, 7
      %v1270 = vsel %vm1151, %v1268, %v1269
      %v1271 = vrot.slane %v1269, 2
      %v1272 = vrot.slane %v1128, 7
      %v1273 = vsel %vm1151, %v1271, %v1272
      %v1274 = vrot.slane %v1272, 2
      %v1275 = vrot.slane %v1135, 7
      %v1276 = vsel %vm1151, %v1274, %v1275
      %v1277 = vrot.slane %v1275, 2
      %v1278 = vrot.slane %v1144, 7
      %v1279 = vsel %vm1151, %v1277, %v1278
      %s1280 = scalar_lea.vmem %s3, 8
      %v1281 = vld [vmem:[%s1280] sm:$0x1f]
      %v1282 = vcombine.low %v1155, %v1158
      %v1283 = vcombine.low %v1161, %v1164
      %v1285 = vunpack.c.l.s4 1983009808
      %v1286 = vunpack.c.0.s8 %v1285
      %v1287 = vlaneseq
      %v1288 = vshrl.u32 %v1287, 7
      %v1289 = vsub.s32 %v1286, %v1288
      %v1290 = vrot.slane %v1282, %v1289
      %v1292 = vunpack.c.l.s4 1983009808
      %v1293 = vunpack.c.0.s8 %v1292
      %v1294 = vlaneseq
      %v1295 = vshrl.u32 %v1294, 7
      %v1296 = vsub.s32 %v1293, %v1295
      %v1297 = vrot.slane %v1283, %v1296
      %v1298 = vcombine.low %v1290, %v1297
      %v1299 = vcombine.low %v1167, %v1171
      %v1300 = vcombine.low %v1174, %v1177
      %v1302 = vunpack.c.l.s4 1983009808
      %v1303 = vunpack.c.0.s8 %v1302
      %v1304 = vlaneseq
      %v1305 = vshrl.u32 %v1304, 7
      %v1306 = vsub.s32 %v1303, %v1305
      %v1307 = vrot.slane %v1299, %v1306
      %v1309 = vunpack.c.l.s4 1983009808
      %v1310 = vunpack.c.0.s8 %v1309
      %v1311 = vlaneseq
      %v1312 = vshrl.u32 %v1311, 7
      %v1313 = vsub.s32 %v1310, %v1312
      %v1314 = vrot.slane %v1300, %v1313
      %v1315 = vcombine.low %v1307, %v1314
      %v1316 = vcombine.low %v1180, %v1183
      %v1317 = vcombine.low %v1187, %v1190
      %v1319 = vunpack.c.l.s4 1983009808
      %v1320 = vunpack.c.0.s8 %v1319
      %v1321 = vlaneseq
      %v1322 = vshrl.u32 %v1321, 7
      %v1323 = vsub.s32 %v1320, %v1322
      %v1324 = vrot.slane %v1316, %v1323
      %v1326 = vunpack.c.l.s4 1983009808
      %v1327 = vunpack.c.0.s8 %v1326
      %v1328 = vlaneseq
      %v1329 = vshrl.u32 %v1328, 7
      %v1330 = vsub.s32 %v1327, %v1329
      %v1331 = vrot.slane %v1317, %v1330
      %v1332 = vcombine.low %v1324, %v1331
      %v1333 = vcombine.low %v1193, %v1196
      %v1334 = vcombine.low %v1199, %v1203
      %v1336 = vunpack.c.l.s4 1983009808
      %v1337 = vunpack.c.0.s8 %v1336
      %v1338 = vlaneseq
      %v1339 = vshrl.u32 %v1338, 7
      %v1340 = vsub.s32 %v1337, %v1339
      %v1341 = vrot.slane %v1333, %v1340
      %v1343 = vunpack.c.l.s4 1983009808
      %v1344 = vunpack.c.0.s8 %v1343
      %v1345 = vlaneseq
      %v1346 = vshrl.u32 %v1345, 7
      %v1347 = vsub.s32 %v1344, %v1346
      %v1348 = vrot.slane %v1334, %v1347
      %v1349 = vcombine.low %v1341, %v1348
      %v1350 = vcombine.low %v1206, %v1209
      %v1351 = vcombine.low %v1212, %v1215
      %v1353 = vunpack.c.l.s4 1983009808
      %v1354 = vunpack.c.0.s8 %v1353
      %v1355 = vlaneseq
      %v1356 = vshrl.u32 %v1355, 7
      %v1357 = vsub.s32 %v1354, %v1356
      %v1358 = vrot.slane %v1350, %v1357
      %v1360 = vunpack.c.l.s4 1983009808
      %v1361 = vunpack.c.0.s8 %v1360
      %v1362 = vlaneseq
      %v1363 = vshrl.u32 %v1362, 7
      %v1364 = vsub.s32 %v1361, %v1363
      %v1365 = vrot.slane %v1351, %v1364
      %v1366 = vcombine.low %v1358, %v1365
      %v1367 = vcombine.low %v1219, %v1222
      %v1368 = vcombine.low %v1225, %v1228
      %v1370 = vunpack.c.l.s4 1983009808
      %v1371 = vunpack.c.0.s8 %v1370
      %v1372 = vlaneseq
      %v1373 = vshrl.u32 %v1372, 7
      %v1374 = vsub.s32 %v1371, %v1373
      %v1375 = vrot.slane %v1367, %v1374
      %v1377 = vunpack.c.l.s4 1983009808
      %v1378 = vunpack.c.0.s8 %v1377
      %v1379 = vlaneseq
      %v1380 = vshrl.u32 %v1379, 7
      %v1381 = vsub.s32 %v1378, %v1380
      %v1382 = vrot.slane %v1368, %v1381
      %v1383 = vcombine.low %v1375, %v1382
      %v1384 = vcombine.low %v1231, %v1235
      %v1385 = vcombine.low %v1238, %v1241
      %v1387 = vunpack.c.l.s4 1983009808
      %v1388 = vunpack.c.0.s8 %v1387
      %v1389 = vlaneseq
      %v1390 = vshrl.u32 %v1389, 7
      %v1391 = vsub.s32 %v1388, %v1390
      %v1392 = vrot.slane %v1384, %v1391
      %v1394 = vunpack.c.l.s4 1983009808
      %v1395 = vunpack.c.0.s8 %v1394
      %v1396 = vlaneseq
      %v1397 = vshrl.u32 %v1396, 7
      %v1398 = vsub.s32 %v1395, %v1397
      %v1399 = vrot.slane %v1385, %v1398
      %v1400 = vcombine.low %v1392, %v1399
      %v1401 = vcombine.low %v1244, %v1247
      %v1402 = vcombine.low %v1251, %v1254
      %v1404 = vunpack.c.l.s4 1983009808
      %v1405 = vunpack.c.0.s8 %v1404
      %v1406 = vlaneseq
      %v1407 = vshrl.u32 %v1406, 7
      %v1408 = vsub.s32 %v1405, %v1407
      %v1409 = vrot.slane %v1401, %v1408
      %v1411 = vunpack.c.l.s4 1983009808
      %v1412 = vunpack.c.0.s8 %v1411
      %v1413 = vlaneseq
      %v1414 = vshrl.u32 %v1413, 7
      %v1415 = vsub.s32 %v1412, %v1414
      %v1416 = vrot.slane %v1402, %v1415
      %v1417 = vcombine.low %v1409, %v1416
      %v1418 = vcombine.low %v1257, %v1260
      %v1419 = vcombine.low %v1263, %v1267
      %v1421 = vunpack.c.l.s4 1983009808
      %v1422 = vunpack.c.0.s8 %v1421
      %v1423 = vlaneseq
      %v1424 = vshrl.u32 %v1423, 7
      %v1425 = vsub.s32 %v1422, %v1424
      %v1426 = vrot.slane %v1418, %v1425
      %v1428 = vunpack.c.l.s4 1983009808
      %v1429 = vunpack.c.0.s8 %v1428
      %v1430 = vlaneseq
      %v1431 = vshrl.u32 %v1430, 7
      %v1432 = vsub.s32 %v1429, %v1431
      %v1433 = vrot.slane %v1419, %v1432
      %v1434 = vcombine.low %v1426, %v1433
      %v1435 = vcombine.low %v1270, %v1273
      %v1436 = vcombine.low %v1276, %v1279
      %v1438 = vunpack.c.l.s4 1983009808
      %v1439 = vunpack.c.0.s8 %v1438
      %v1440 = vlaneseq
      %v1441 = vshrl.u32 %v1440, 7
      %v1442 = vsub.s32 %v1439, %v1441
      %v1443 = vrot.slane %v1435, %v1442
      %v1445 = vunpack.c.l.s4 1983009808
      %v1446 = vunpack.c.0.s8 %v1445
      %v1447 = vlaneseq
      %v1448 = vshrl.u32 %v1447, 7
      %v1449 = vsub.s32 %v1446, %v1448
      %v1450 = vrot.slane %v1436, %v1449
      %v1451 = vcombine.low %v1443, %v1450
      %vm1452 = vcmask 39936
      %v1453 = vsel %vm1452, %v1298, 0
      %v1455 = vsel %vm1452, %v1315, 0
      %v1457 = vsel %vm1452, %v1332, 0
      %v1459 = vsel %vm1452, %v1349, 0
      %v1461 = vsel %vm1452, %v1366, 0
      %v1463 = vsel %vm1452, %v1383, 0
      %v1465 = vsel %vm1452, %v1400, 0
      %v1467 = vsel %vm1452, %v1417, 0
      %v1469 = vsel %vm1452, %v1434, 0
      %v1471 = vsel %vm1452, %v1451, 0
      %vm1473 = vcmask 1044480
      %v1475 = vsel %vm1473, %v1281, 0
      %1477 = vmatprep.subr.mxu0 0.0
      %1478 = vmatpush1.msra.mxu0 %v1475
      %1479 = vmatprep.subr.mxu0 0.0
      %1480 = vmatpush1.msra.mxu0 0.0
      %1481 = vmatprep.subr.mxu0 0.0
      %1482 = vmatpush1.msra.mxu0 0.0
      %1483 = vmatprep.subr.mxu0 0.0
      %1484 = vmatpush1.msra.mxu0 0.0
      %1485 = vmatprep.subr.mxu0 0.0
      %1486 = vmatpush1.msra.mxu0 0.0
      %1487 = vmatprep.subr.mxu0 0.0
      %1488 = vmatpush1.msra.mxu0 0.0
      %1489 = vmatprep.subr.mxu0 0.0
      %1490 = vmatpush1.msra.mxu0 0.0
      %1491 = vmatprep.subr.mxu0 0.0
      %1492 = vmatpush1.msra.mxu0 0.0
      %1493 = vmatprep.subr.mxu0 0.0
      %1494 = vmatpush1.msra.mxu0 0.0
      %1495 = vmatprep.subr.mxu0 0.0
      %1496 = vmatpush1.msra.mxu0 0.0
      %1497 = vmatprep.subr.mxu0 0.0
      %1498 = vmatpush1.msra.mxu0 0.0
      %1499 = vmatprep.subr.mxu0 0.0
      %1500 = vmatpush1.msra.mxu0 0.0
      %1501 = vmatprep.subr.mxu0 0.0
      %1502 = vmatpush1.msra.mxu0 0.0
      %1503 = vmatprep.subr.mxu0 0.0
      %1504 = vmatpush1.msra.mxu0 0.0
      %1505 = vmatprep.subr.mxu0 0.0
      %1506 = vmatpush1.msra.mxu0 0.0
      %1507 = vmatprep.subr.mxu0 0.0
      %1508 = vmatpush1.msra.mxu0 0.0
      %1509 = vmatprep.subr.mxu0 0.0
      %1510 = vmatpush1.msra.mxu0 0.0
      %1511 = vmatprep.subr.mxu0 0.0
      %1512 = vmatpush1.msra.mxu0 0.0
      %1513 = vmatprep.subr.mxu0 0.0
      %1514 = vmatpush1.msra.mxu0 0.0
      %1515 = vmatprep.subr.mxu0 0.0
      %1516 = vmatpush1.msra.mxu0 0.0
      %1517 = vmatprep.subr.mxu0 0.0
      %1518 = vmatpush1.msra.mxu0 0.0
      %1519 = vmatprep.subr.mxu0 0.0
      %1520 = vmatpush1.msra.mxu0 0.0
      %1521 = vmatprep.subr.mxu0 0.0
      %1522 = vmatpush1.msra.mxu0 0.0
      %1523 = vmatprep.subr.mxu0 0.0
      %1524 = vmatpush1.msra.mxu0 0.0
      %1525 = vmatprep.subr.mxu0 0.0
      %1526 = vmatpush1.msra.mxu0 0.0
      %1527 = vmatprep.subr.mxu0 0.0
      %1528 = vmatpush1.msra.mxu0 0.0
      %1529 = vmatprep.subr.mxu0 0.0
      %1530 = vmatpush1.msra.mxu0 0.0
      %1531 = vmatprep.subr.mxu0 0.0
      %1532 = vmatpush1.msra.mxu0 0.0
      %1533 = vmatprep.subr.mxu0 0.0
      %1534 = vmatpush1.msra.mxu0 0.0
      %1535 = vmatprep.subr.mxu0 0.0
      %1536 = vmatpush1.msra.mxu0 0.0
      %1537 = vmatprep.subr.mxu0 0.0
      %1538 = vmatpush1.msra.mxu0 0.0
      %1539 = vmatprep.subr.mxu0 0.0
      %1540 = vmatpush1.msra.mxu0 0.0
      %1541 = vmatprep.mubr.f32.mxu0 0.0
      %1542 = vmatmul.mubr.f32.gmra.mrb[0].mxu0 %v1453
      %v1543 = vpop.f32.mrb[0].mxu0
      %v1544 = vadd.f32 0.0, %v1543
      %v1545 = vpop.f32.mrb[0].mxu0
      %1546 = vmatprep.mubr.f32.mxu0 0.0
      %1547 = vmatmul.mubr.f32.gmra.mrb[0].mxu0 %v1455
      %v1548 = vpop.f32.mrb[0].mxu0
      %v1549 = vadd.f32 0.0, %v1548
      %v1550 = vpop.f32.mrb[0].mxu0
      %1551 = vmatprep.mubr.f32.mxu0 0.0
      %1552 = vmatmul.mubr.f32.gmra.mrb[0].mxu0 %v1457
      %v1553 = vpop.f32.mrb[0].mxu0
      %v1554 = vadd.f32 0.0, %v1553
      %v1555 = vpop.f32.mrb[0].mxu0
      %1556 = vmatprep.mubr.f32.mxu0 0.0
      %1557 = vmatmul.mubr.f32.gmra.mrb[0].mxu0 %v1459
      %v1558 = vpop.f32.mrb[0].mxu0
      %v1559 = vadd.f32 0.0, %v1558
      %v1560 = vpop.f32.mrb[0].mxu0
      %1561 = vmatprep.mubr.f32.mxu0 0.0
      %1562 = vmatmul.mubr.f32.gmra.mrb[0].mxu0 %v1461
      %v1563 = vpop.f32.mrb[0].mxu0
      %v1564 = vadd.f32 0.0, %v1563
      %v1565 = vpop.f32.mrb[0].mxu0
      %1566 = vmatprep.mubr.f32.mxu0 0.0
      %1567 = vmatmul.mubr.f32.gmra.mrb[0].mxu0 %v1463
      %v1568 = vpop.f32.mrb[0].mxu0
      %v1569 = vadd.f32 0.0, %v1568
      %v1570 = vpop.f32.mrb[0].mxu0
      %1571 = vmatprep.mubr.f32.mxu0 0.0
      %1572 = vmatmul.mubr.f32.gmra.mrb[0].mxu0 %v1465
      %v1573 = vpop.f32.mrb[0].mxu0
      %v1574 = vadd.f32 0.0, %v1573
      %v1575 = vpop.f32.mrb[0].mxu0
      %1576 = vmatprep.mubr.f32.mxu0 0.0
      %1577 = vmatmul.mubr.f32.gmra.mrb[0].mxu0 %v1467
      %v1578 = vpop.f32.mrb[0].mxu0
      %v1579 = vadd.f32 0.0, %v1578
      %v1580 = vpop.f32.mrb[0].mxu0
      %1581 = vmatprep.mubr.f32.mxu0 0.0
      %1582 = vmatmul.mubr.f32.gmra.mrb[0].mxu0 %v1469
      %v1583 = vpop.f32.mrb[0].mxu0
      %v1584 = vadd.f32 0.0, %v1583
      %v1585 = vpop.f32.mrb[0].mxu0
      %1586 = vmatprep.mubr.f32.mxu0 0.0
      %1587 = vmatmul.mubr.f32.gmra.mrb[0].mxu0 %v1471
      %v1588 = vpop.f32.mrb[0].mxu0
      %v1589 = vadd.f32 0.0, %v1588
      %v1590 = vpop.f32.mrb[0].mxu0
      %1591 = vdwg.mxu0
      %v1592 = vcombine.low %v958, %v959
      %v1593 = vcombine.low %v966, %v967
      %v1595 = vunpack.c.l.s4 1983009808
      %v1596 = vunpack.c.0.s8 %v1595
      %v1597 = vlaneseq
      %v1598 = vshrl.u32 %v1597, 7
      %v1599 = vsub.s32 %v1596, %v1598
      %v1600 = vrot.slane %v1592, %v1599
      %v1602 = vunpack.c.l.s4 1983009808
      %v1603 = vunpack.c.0.s8 %v1602
      %v1604 = vlaneseq
      %v1605 = vshrl.u32 %v1604, 7
      %v1606 = vsub.s32 %v1603, %v1605
      %v1607 = vrot.slane %v1593, %v1606
      %v1608 = vcombine.low %v1600, %v1607
      %v1609 = vcombine.low %v974, %v981
      %v1610 = vcombine.low %v982, %v989
      %v1612 = vunpack.c.l.s4 1983009808
      %v1613 = vunpack.c.0.s8 %v1612
      %v1614 = vlaneseq
      %v1615 = vshrl.u32 %v1614, 7
      %v1616 = vsub.s32 %v1613, %v1615
      %v1617 = vrot.slane %v1609, %v1616
      %v1619 = vunpack.c.l.s4 1983009808
      %v1620 = vunpack.c.0.s8 %v1619
      %v1621 = vlaneseq
      %v1622 = vshrl.u32 %v1621, 7
      %v1623 = vsub.s32 %v1620, %v1622
      %v1624 = vrot.slane %v1610, %v1623
      %v1625 = vcombine.low %v1617, %v1624
      %v1626 = vcombine.low %v990, %v997
      %v1627 = vcombine.low %v1004, %v1005
      %v1629 = vunpack.c.l.s4 1983009808
      %v1630 = vunpack.c.0.s8 %v1629
      %v1631 = vlaneseq
      %v1632 = vshrl.u32 %v1631, 7
      %v1633 = vsub.s32 %v1630, %v1632
      %v1634 = vrot.slane %v1626, %v1633
      %v1636 = vunpack.c.l.s4 1983009808
      %v1637 = vunpack.c.0.s8 %v1636
      %v1638 = vlaneseq
      %v1639 = vshrl.u32 %v1638, 7
      %v1640 = vsub.s32 %v1637, %v1639
      %v1641 = vrot.slane %v1627, %v1640
      %v1642 = vcombine.low %v1634, %v1641
      %v1643 = vcombine.low %v1012, %v1013
      %v1644 = vcombine.low %v1020, %v1027
      %v1646 = vunpack.c.l.s4 1983009808
      %v1647 = vunpack.c.0.s8 %v1646
      %v1648 = vlaneseq
      %v1649 = vshrl.u32 %v1648, 7
      %v1650 = vsub.s32 %v1647, %v1649
      %v1651 = vrot.slane %v1643, %v1650
      %v1653 = vunpack.c.l.s4 1983009808
      %v1654 = vunpack.c.0.s8 %v1653
      %v1655 = vlaneseq
      %v1656 = vshrl.u32 %v1655, 7
      %v1657 = vsub.s32 %v1654, %v1656
      %v1658 = vrot.slane %v1644, %v1657
      %v1659 = vcombine.low %v1651, %v1658
      %v1660 = vcombine.low %v1028, %v1035
      %v1661 = vcombine.low %v1036, %v1043
      %v1663 = vunpack.c.l.s4 1983009808
      %v1664 = vunpack.c.0.s8 %v1663
      %v1665 = vlaneseq
      %v1666 = vshrl.u32 %v1665, 7
      %v1667 = vsub.s32 %v1664, %v1666
      %v1668 = vrot.slane %v1660, %v1667
      %v1670 = vunpack.c.l.s4 1983009808
      %v1671 = vunpack.c.0.s8 %v1670
      %v1672 = vlaneseq
      %v1673 = vshrl.u32 %v1672, 7
      %v1674 = vsub.s32 %v1671, %v1673
      %v1675 = vrot.slane %v1661, %v1674
      %v1676 = vcombine.low %v1668, %v1675
      %v1677 = vcombine.low %v1050, %v1051
      %v1678 = vcombine.low %v1058, %v1059
      %v1680 = vunpack.c.l.s4 1983009808
      %v1681 = vunpack.c.0.s8 %v1680
      %v1682 = vlaneseq
      %v1683 = vshrl.u32 %v1682, 7
      %v1684 = vsub.s32 %v1681, %v1683
      %v1685 = vrot.slane %v1677, %v1684
      %v1687 = vunpack.c.l.s4 1983009808
      %v1688 = vunpack.c.0.s8 %v1687
      %v1689 = vlaneseq
      %v1690 = vshrl.u32 %v1689, 7
      %v1691 = vsub.s32 %v1688, %v1690
      %v1692 = vrot.slane %v1678, %v1691
      %v1693 = vcombine.low %v1685, %v1692
      %v1694 = vcombine.low %v1066, %v1073
      %v1695 = vcombine.low %v1074, %v1081
      %v1697 = vunpack.c.l.s4 1983009808
      %v1698 = vunpack.c.0.s8 %v1697
      %v1699 = vlaneseq
      %v1700 = vshrl.u32 %v1699, 7
      %v1701 = vsub.s32 %v1698, %v1700
      %v1702 = vrot.slane %v1694, %v1701
      %v1704 = vunpack.c.l.s4 1983009808
      %v1705 = vunpack.c.0.s8 %v1704
      %v1706 = vlaneseq
      %v1707 = vshrl.u32 %v1706, 7
      %v1708 = vsub.s32 %v1705, %v1707
      %v1709 = vrot.slane %v1695, %v1708
      %v1710 = vcombine.low %v1702, %v1709
      %v1711 = vcombine.low %v1082, %v1089
      %v1712 = vcombine.low %v1096, %v1097
      %v1714 = vunpack.c.l.s4 1983009808
      %v1715 = vunpack.c.0.s8 %v1714
      %v1716 = vlaneseq
      %v1717 = vshrl.u32 %v1716, 7
      %v1718 = vsub.s32 %v1715, %v1717
      %v1719 = vrot.slane %v1711, %v1718
      %v1721 = vunpack.c.l.s4 1983009808
      %v1722 = vunpack.c.0.s8 %v1721
      %v1723 = vlaneseq
      %v1724 = vshrl.u32 %v1723, 7
      %v1725 = vsub.s32 %v1722, %v1724
      %v1726 = vrot.slane %v1712, %v1725
      %v1727 = vcombine.low %v1719, %v1726
      %v1728 = vcombine.low %v1104, %v1105
      %v1729 = vcombine.low %v1112, %v1119
      %v1731 = vunpack.c.l.s4 1983009808
      %v1732 = vunpack.c.0.s8 %v1731
      %v1733 = vlaneseq
      %v1734 = vshrl.u32 %v1733, 7
      %v1735 = vsub.s32 %v1732, %v1734
      %v1736 = vrot.slane %v1728, %v1735
      %v1738 = vunpack.c.l.s4 1983009808
      %v1739 = vunpack.c.0.s8 %v1738
      %v1740 = vlaneseq
      %v1741 = vshrl.u32 %v1740, 7
      %v1742 = vsub.s32 %v1739, %v1741
      %v1743 = vrot.slane %v1729, %v1742
      %v1744 = vcombine.low %v1736, %v1743
      %v1745 = vcombine.low %v1120, %v1127
      %v1746 = vcombine.low %v1128, %v1135
      %v1748 = vunpack.c.l.s4 1983009808
      %v1749 = vunpack.c.0.s8 %v1748
      %v1750 = vlaneseq
      %v1751 = vshrl.u32 %v1750, 7
      %v1752 = vsub.s32 %v1749, %v1751
      %v1753 = vrot.slane %v1745, %v1752
      %v1755 = vunpack.c.l.s4 1983009808
      %v1756 = vunpack.c.0.s8 %v1755
      %v1757 = vlaneseq
      %v1758 = vshrl.u32 %v1757, 7
      %v1759 = vsub.s32 %v1756, %v1758
      %v1760 = vrot.slane %v1746, %v1759
      %v1761 = vcombine.low %v1753, %v1760
      %v1762 = vsel %vm1452, %v1608, 0
      %v1764 = vsel %vm1452, %v1625, 0
      %v1766 = vsel %vm1452, %v1642, 0
      %v1768 = vsel %vm1452, %v1659, 0
      %v1770 = vsel %vm1452, %v1676, 0
      %v1772 = vsel %vm1452, %v1693, 0
      %v1774 = vsel %vm1452, %v1710, 0
      %v1776 = vsel %vm1452, %v1727, 0
      %v1778 = vsel %vm1452, %v1744, 0
      %v1780 = vsel %vm1452, %v1761, 0
      %v1783 = vsel %vm1473, %v1136, 0
      %1785 = vmatprep.subr.mxu0 0.0
      %1786 = vmatpush1.msra.mxu0 %v1783
      %1787 = vmatprep.subr.mxu0 0.0
      %1788 = vmatpush1.msra.mxu0 0.0
      %1789 = vmatprep.subr.mxu0 0.0
      %1790 = vmatpush1.msra.mxu0 0.0
      %1791 = vmatprep.subr.mxu0 0.0
      %1792 = vmatpush1.msra.mxu0 0.0
      %1793 = vmatprep.subr.mxu0 0.0
      %1794 = vmatpush1.msra.mxu0 0.0
      %1795 = vmatprep.subr.mxu0 0.0
      %1796 = vmatpush1.msra.mxu0 0.0
      %1797 = vmatprep.subr.mxu0 0.0
      %1798 = vmatpush1.msra.mxu0 0.0
      %1799 = vmatprep.subr.mxu0 0.0
      %1800 = vmatpush1.msra.mxu0 0.0
      %1801 = vmatprep.subr.mxu0 0.0
      %1802 = vmatpush1.msra.mxu0 0.0
      %1803 = vmatprep.subr.mxu0 0.0
      %1804 = vmatpush1.msra.mxu0 0.0
      %1805 = vmatprep.subr.mxu0 0.0
      %1806 = vmatpush1.msra.mxu0 0.0
      %1807 = vmatprep.subr.mxu0 0.0
      %1808 = vmatpush1.msra.mxu0 0.0
      %1809 = vmatprep.subr.mxu0 0.0
      %1810 = vmatpush1.msra.mxu0 0.0
      %1811 = vmatprep.subr.mxu0 0.0
      %1812 = vmatpush1.msra.mxu0 0.0
      %1813 = vmatprep.subr.mxu0 0.0
      %1814 = vmatpush1.msra.mxu0 0.0
      %1815 = vmatprep.subr.mxu0 0.0
      %1816 = vmatpush1.msra.mxu0 0.0
      %1817 = vmatprep.subr.mxu0 0.0
      %1818 = vmatpush1.msra.mxu0 0.0
      %1819 = vmatprep.subr.mxu0 0.0
      %1820 = vmatpush1.msra.mxu0 0.0
      %1821 = vmatprep.subr.mxu0 0.0
      %1822 = vmatpush1.msra.mxu0 0.0
      %1823 = vmatprep.subr.mxu0 0.0
      %1824 = vmatpush1.msra.mxu0 0.0
      %1825 = vmatprep.subr.mxu0 0.0
      %1826 = vmatpush1.msra.mxu0 0.0
      %1827 = vmatprep.subr.mxu0 0.0
      %1828 = vmatpush1.msra.mxu0 0.0
      %1829 = vmatprep.subr.mxu0 0.0
      %1830 = vmatpush1.msra.mxu0 0.0
      %1831 = vmatprep.subr.mxu0 0.0
      %1832 = vmatpush1.msra.mxu0 0.0
      %1833 = vmatprep.subr.mxu0 0.0
      %1834 = vmatpush1.msra.mxu0 0.0
      %1835 = vmatprep.subr.mxu0 0.0
      %1836 = vmatpush1.msra.mxu0 0.0
      %1837 = vmatprep.subr.mxu0 0.0
      %1838 = vmatpush1.msra.mxu0 0.0
      %1839 = vmatprep.subr.mxu0 0.0
      %1840 = vmatpush1.msra.mxu0 0.0
      %1841 = vmatprep.subr.mxu0 0.0
      %1842 = vmatpush1.msra.mxu0 0.0
      %1843 = vmatprep.subr.mxu0 0.0
      %1844 = vmatpush1.msra.mxu0 0.0
      %1845 = vmatprep.subr.mxu0 0.0
      %1846 = vmatpush1.msra.mxu0 0.0
      %1847 = vmatprep.subr.mxu0 0.0
      %1848 = vmatpush1.msra.mxu0 0.0
      %1849 = vmatprep.mubr.f32.mxu0 0.0
      %1850 = vmatmul.mubr.f32.gmra.mrb[0].mxu0 %v1762
      %v1851 = vpop.f32.mrb[0].mxu0
      %v1852 = vadd.f32 %v1544, %v1851
      %v1853 = vpop.f32.mrb[0].mxu0
      %1854 = vmatprep.mubr.f32.mxu0 0.0
      %1855 = vmatmul.mubr.f32.gmra.mrb[0].mxu0 %v1764
      %v1856 = vpop.f32.mrb[0].mxu0
      %v1857 = vadd.f32 %v1549, %v1856
      %v1858 = vpop.f32.mrb[0].mxu0
      %1859 = vmatprep.mubr.f32.mxu0 0.0
      %1860 = vmatmul.mubr.f32.gmra.mrb[0].mxu0 %v1766
      %v1861 = vpop.f32.mrb[0].mxu0
      %v1862 = vadd.f32 %v1554, %v1861
      %v1863 = vpop.f32.mrb[0].mxu0
      %1864 = vmatprep.mubr.f32.mxu0 0.0
      %1865 = vmatmul.mubr.f32.gmra.mrb[0].mxu0 %v1768
      %v1866 = vpop.f32.mrb[0].mxu0
      %v1867 = vadd.f32 %v1559, %v1866
      %v1868 = vpop.f32.mrb[0].mxu0
      %1869 = vmatprep.mubr.f32.mxu0 0.0
      %1870 = vmatmul.mubr.f32.gmra.mrb[0].mxu0 %v1770
      %v1871 = vpop.f32.mrb[0].mxu0
      %v1872 = vadd.f32 %v1564, %v1871
      %v1873 = vpop.f32.mrb[0].mxu0
      %1874 = vmatprep.mubr.f32.mxu0 0.0
      %1875 = vmatmul.mubr.f32.gmra.mrb[0].mxu0 %v1772
      %v1876 = vpop.f32.mrb[0].mxu0
      %v1877 = vadd.f32 %v1569, %v1876
      %v1878 = vpop.f32.mrb[0].mxu0
      %1879 = vmatprep.mubr.f32.mxu0 0.0
      %1880 = vmatmul.mubr.f32.gmra.mrb[0].mxu0 %v1774
      %v1881 = vpop.f32.mrb[0].mxu0
      %v1882 = vadd.f32 %v1574, %v1881
      %v1883 = vpop.f32.mrb[0].mxu0
      %1884 = vmatprep.mubr.f32.mxu0 0.0
      %1885 = vmatmul.mubr.f32.gmra.mrb[0].mxu0 %v1776
      %v1886 = vpop.f32.mrb[0].mxu0
      %v1887 = vadd.f32 %v1579, %v1886
      %v1888 = vpop.f32.mrb[0].mxu0
      %1889 = vmatprep.mubr.f32.mxu0 0.0
      %1890 = vmatmul.mubr.f32.gmra.mrb[0].mxu0 %v1778
      %v1891 = vpop.f32.mrb[0].mxu0
      %v1892 = vadd.f32 %v1584, %v1891
      %v1893 = vpop.f32.mrb[0].mxu0
      %1894 = vmatprep.mubr.f32.mxu0 0.0
      %1895 = vmatmul.mubr.f32.gmra.mrb[0].mxu0 %v1780
      %v1896 = vpop.f32.mrb[0].mxu0
      %v1897 = vadd.f32 %v1589, %v1896
      %v1898 = vpop.f32.mrb[0].mxu0
      %1899 = vdwg.mxu0
      %s1900 = scalar_lea.vmem %s3, 16
      %v1901 = vld [vmem:[%s1900] sm:$0x1f]
      %v1902 = vcombine.low %v959, %v966
      %v1903 = vcombine.low %v967, %v974
      %v1905 = vunpack.c.l.s4 1983009808
      %v1906 = vunpack.c.0.s8 %v1905
      %v1907 = vlaneseq
      %v1908 = vshrl.u32 %v1907, 7
      %v1909 = vsub.s32 %v1906, %v1908
      %v1910 = vrot.slane %v1902, %v1909
      %v1912 = vunpack.c.l.s4 1983009808
      %v1913 = vunpack.c.0.s8 %v1912
      %v1914 = vlaneseq
      %v1915 = vshrl.u32 %v1914, 7
      %v1916 = vsub.s32 %v1913, %v1915
      %v1917 = vrot.slane %v1903, %v1916
      %v1918 = vcombine.low %v1910, %v1917
      %v1919 = vcombine.low %v1137, %v982
      %v1920 = vcombine.low %v989, %v990
      %v1922 = vunpack.c.l.s4 1983009808
      %v1923 = vunpack.c.0.s8 %v1922
      %v1924 = vlaneseq
      %v1925 = vshrl.u32 %v1924, 7
      %v1926 = vsub.s32 %v1923, %v1925
      %v1927 = vrot.slane %v1919, %v1926
      %v1929 = vunpack.c.l.s4 1983009808
      %v1930 = vunpack.c.0.s8 %v1929
      %v1931 = vlaneseq
      %v1932 = vshrl.u32 %v1931, 7
      %v1933 = vsub.s32 %v1930, %v1932
      %v1934 = vrot.slane %v1920, %v1933
      %v1935 = vcombine.low %v1927, %v1934
      %v1936 = vcombine.low %v997, %v1138
      %v1937 = vcombine.low %v1005, %v1012
      %v1939 = vunpack.c.l.s4 1983009808
      %v1940 = vunpack.c.0.s8 %v1939
      %v1941 = vlaneseq
      %v1942 = vshrl.u32 %v1941, 7
      %v1943 = vsub.s32 %v1940, %v1942
      %v1944 = vrot.slane %v1936, %v1943
      %v1946 = vunpack.c.l.s4 1983009808
      %v1947 = vunpack.c.0.s8 %v1946
      %v1948 = vlaneseq
      %v1949 = vshrl.u32 %v1948, 7
      %v1950 = vsub.s32 %v1947, %v1949
      %v1951 = vrot.slane %v1937, %v1950
      %v1952 = vcombine.low %v1944, %v1951
      %v1953 = vcombine.low %v1013, %v1020
      %v1954 = vcombine.low %v1139, %v1028
      %v1956 = vunpack.c.l.s4 1983009808
      %v1957 = vunpack.c.0.s8 %v1956
      %v1958 = vlaneseq
      %v1959 = vshrl.u32 %v1958, 7
      %v1960 = vsub.s32 %v1957, %v1959
      %v1961 = vrot.slane %v1953, %v1960
      %v1963 = vunpack.c.l.s4 1983009808
      %v1964 = vunpack.c.0.s8 %v1963
      %v1965 = vlaneseq
      %v1966 = vshrl.u32 %v1965, 7
      %v1967 = vsub.s32 %v1964, %v1966
      %v1968 = vrot.slane %v1954, %v1967
      %v1969 = vcombine.low %v1961, %v1968
      %v1970 = vcombine.low %v1035, %v1036
      %v1971 = vcombine.low %v1043, %v1140
      %v1973 = vunpack.c.l.s4 1983009808
      %v1974 = vunpack.c.0.s8 %v1973
      %v1975 = vlaneseq
      %v1976 = vshrl.u32 %v1975, 7
      %v1977 = vsub.s32 %v1974, %v1976
      %v1978 = vrot.slane %v1970, %v1977
      %v1980 = vunpack.c.l.s4 1983009808
      %v1981 = vunpack.c.0.s8 %v1980
      %v1982 = vlaneseq
      %v1983 = vshrl.u32 %v1982, 7
      %v1984 = vsub.s32 %v1981, %v1983
      %v1985 = vrot.slane %v1971, %v1984
      %v1986 = vcombine.low %v1978, %v1985
      %v1987 = vcombine.low %v1051, %v1058
      %v1988 = vcombine.low %v1059, %v1066
      %v1990 = vunpack.c.l.s4 1983009808
      %v1991 = vunpack.c.0.s8 %v1990
      %v1992 = vlaneseq
      %v1993 = vshrl.u32 %v1992, 7
      %v1994 = vsub.s32 %v1991, %v1993
      %v1995 = vrot.slane %v1987, %v1994
      %v1997 = vunpack.c.l.s4 1983009808
      %v1998 = vunpack.c.0.s8 %v1997
      %v1999 = vlaneseq
      %v2000 = vshrl.u32 %v1999, 7
      %v2001 = vsub.s32 %v1998, %v2000
      %v2002 = vrot.slane %v1988, %v2001
      %v2003 = vcombine.low %v1995, %v2002
      %v2004 = vcombine.low %v1141, %v1074
      %v2005 = vcombine.low %v1081, %v1082
      %v2007 = vunpack.c.l.s4 1983009808
      %v2008 = vunpack.c.0.s8 %v2007
      %v2009 = vlaneseq
      %v2010 = vshrl.u32 %v2009, 7
      %v2011 = vsub.s32 %v2008, %v2010
      %v2012 = vrot.slane %v2004, %v2011
      %v2014 = vunpack.c.l.s4 1983009808
      %v2015 = vunpack.c.0.s8 %v2014
      %v2016 = vlaneseq
      %v2017 = vshrl.u32 %v2016, 7
      %v2018 = vsub.s32 %v2015, %v2017
      %v2019 = vrot.slane %v2005, %v2018
      %v2020 = vcombine.low %v2012, %v2019
      %v2021 = vcombine.low %v1089, %v1142
      %v2022 = vcombine.low %v1097, %v1104
      %v2024 = vunpack.c.l.s4 1983009808
      %v2025 = vunpack.c.0.s8 %v2024
      %v2026 = vlaneseq
      %v2027 = vshrl.u32 %v2026, 7
      %v2028 = vsub.s32 %v2025, %v2027
      %v2029 = vrot.slane %v2021, %v2028
      %v2031 = vunpack.c.l.s4 1983009808
      %v2032 = vunpack.c.0.s8 %v2031
      %v2033 = vlaneseq
      %v2034 = vshrl.u32 %v2033, 7
      %v2035 = vsub.s32 %v2032, %v2034
      %v2036 = vrot.slane %v2022, %v2035
      %v2037 = vcombine.low %v2029, %v2036
      %v2038 = vcombine.low %v1105, %v1112
      %v2039 = vcombine.low %v1143, %v1120
      %v2041 = vunpack.c.l.s4 1983009808
      %v2042 = vunpack.c.0.s8 %v2041
      %v2043 = vlaneseq
      %v2044 = vshrl.u32 %v2043, 7
      %v2045 = vsub.s32 %v2042, %v2044
      %v2046 = vrot.slane %v2038, %v2045
      %v2048 = vunpack.c.l.s4 1983009808
      %v2049 = vunpack.c.0.s8 %v2048
      %v2050 = vlaneseq
      %v2051 = vshrl.u32 %v2050, 7
      %v2052 = vsub.s32 %v2049, %v2051
      %v2053 = vrot.slane %v2039, %v2052
      %v2054 = vcombine.low %v2046, %v2053
      %v2055 = vcombine.low %v1127, %v1128
      %v2056 = vcombine.low %v1135, %v1144
      %v2058 = vunpack.c.l.s4 1983009808
      %v2059 = vunpack.c.0.s8 %v2058
      %v2060 = vlaneseq
      %v2061 = vshrl.u32 %v2060, 7
      %v2062 = vsub.s32 %v2059, %v2061
      %v2063 = vrot.slane %v2055, %v2062
      %v2065 = vunpack.c.l.s4 1983009808
      %v2066 = vunpack.c.0.s8 %v2065
      %v2067 = vlaneseq
      %v2068 = vshrl.u32 %v2067, 7
      %v2069 = vsub.s32 %v2066, %v2068
      %v2070 = vrot.slane %v2056, %v2069
      %v2071 = vcombine.low %v2063, %v2070
      %v2072 = vsel %vm1452, %v1918, 0
      %v2074 = vsel %vm1452, %v1935, 0
      %v2076 = vsel %vm1452, %v1952, 0
      %v2078 = vsel %vm1452, %v1969, 0
      %v2080 = vsel %vm1452, %v1986, 0
      %v2082 = vsel %vm1452, %v2003, 0
      %v2084 = vsel %vm1452, %v2020, 0
      %v2086 = vsel %vm1452, %v2037, 0
      %v2088 = vsel %vm1452, %v2054, 0
      %v2090 = vsel %vm1452, %v2071, 0
      %v2093 = vsel %vm1473, %v1901, 0
      %2095 = vmatprep.subr.mxu0 0.0
      %2096 = vmatpush1.msra.mxu0 %v2093
      %2097 = vmatprep.subr.mxu0 0.0
      %2098 = vmatpush1.msra.mxu0 0.0
      %2099 = vmatprep.subr.mxu0 0.0
      %2100 = vmatpush1.msra.mxu0 0.0
      %2101 = vmatprep.subr.mxu0 0.0
      %2102 = vmatpush1.msra.mxu0 0.0
      %2103 = vmatprep.subr.mxu0 0.0
      %2104 = vmatpush1.msra.mxu0 0.0
      %2105 = vmatprep.subr.mxu0 0.0
      %2106 = vmatpush1.msra.mxu0 0.0
      %2107 = vmatprep.subr.mxu0 0.0
      %2108 = vmatpush1.msra.mxu0 0.0
      %2109 = vmatprep.subr.mxu0 0.0
      %2110 = vmatpush1.msra.mxu0 0.0
      %2111 = vmatprep.subr.mxu0 0.0
      %2112 = vmatpush1.msra.mxu0 0.0
      %2113 = vmatprep.subr.mxu0 0.0
      %2114 = vmatpush1.msra.mxu0 0.0
      %2115 = vmatprep.subr.mxu0 0.0
      %2116 = vmatpush1.msra.mxu0 0.0
      %2117 = vmatprep.subr.mxu0 0.0
      %2118 = vmatpush1.msra.mxu0 0.0
      %2119 = vmatprep.subr.mxu0 0.0
      %2120 = vmatpush1.msra.mxu0 0.0
      %2121 = vmatprep.subr.mxu0 0.0
      %2122 = vmatpush1.msra.mxu0 0.0
      %2123 = vmatprep.subr.mxu0 0.0
      %2124 = vmatpush1.msra.mxu0 0.0
      %2125 = vmatprep.subr.mxu0 0.0
      %2126 = vmatpush1.msra.mxu0 0.0
      %2127 = vmatprep.subr.mxu0 0.0
      %2128 = vmatpush1.msra.mxu0 0.0
      %2129 = vmatprep.subr.mxu0 0.0
      %2130 = vmatpush1.msra.mxu0 0.0
      %2131 = vmatprep.subr.mxu0 0.0
      %2132 = vmatpush1.msra.mxu0 0.0
      %2133 = vmatprep.subr.mxu0 0.0
      %2134 = vmatpush1.msra.mxu0 0.0
      %2135 = vmatprep.subr.mxu0 0.0
      %2136 = vmatpush1.msra.mxu0 0.0
      %2137 = vmatprep.subr.mxu0 0.0
      %2138 = vmatpush1.msra.mxu0 0.0
      %2139 = vmatprep.subr.mxu0 0.0
      %2140 = vmatpush1.msra.mxu0 0.0
      %2141 = vmatprep.subr.mxu0 0.0
      %2142 = vmatpush1.msra.mxu0 0.0
      %2143 = vmatprep.subr.mxu0 0.0
      %2144 = vmatpush1.msra.mxu0 0.0
      %2145 = vmatprep.subr.mxu0 0.0
      %2146 = vmatpush1.msra.mxu0 0.0
      %2147 = vmatprep.subr.mxu0 0.0
      %2148 = vmatpush1.msra.mxu0 0.0
      %2149 = vmatprep.subr.mxu0 0.0
      %2150 = vmatpush1.msra.mxu0 0.0
      %2151 = vmatprep.subr.mxu0 0.0
      %2152 = vmatpush1.msra.mxu0 0.0
      %2153 = vmatprep.subr.mxu0 0.0
      %2154 = vmatpush1.msra.mxu0 0.0
      %2155 = vmatprep.subr.mxu0 0.0
      %2156 = vmatpush1.msra.mxu0 0.0
      %2157 = vmatprep.subr.mxu0 0.0
      %2158 = vmatpush1.msra.mxu0 0.0
      %2159 = vmatprep.mubr.f32.mxu0 0.0
      %2160 = vmatmul.mubr.f32.gmra.mrb[0].mxu0 %v2072
      %v2161 = vpop.f32.mrb[0].mxu0
      %v2162 = vadd.f32 0.0, %v2161
      %v2163 = vpop.f32.mrb[0].mxu0
      %2164 = vmatprep.mubr.f32.mxu0 0.0
      %2165 = vmatmul.mubr.f32.gmra.mrb[0].mxu0 %v2074
      %v2166 = vpop.f32.mrb[0].mxu0
      %v2167 = vadd.f32 0.0, %v2166
      %v2168 = vpop.f32.mrb[0].mxu0
      %2169 = vmatprep.mubr.f32.mxu0 0.0
      %2170 = vmatmul.mubr.f32.gmra.mrb[0].mxu0 %v2076
      %v2171 = vpop.f32.mrb[0].mxu0
      %v2172 = vadd.f32 0.0, %v2171
      %v2173 = vpop.f32.mrb[0].mxu0
      %2174 = vmatprep.mubr.f32.mxu0 0.0
      %2175 = vmatmul.mubr.f32.gmra.mrb[0].mxu0 %v2078
      %v2176 = vpop.f32.mrb[0].mxu0
      %v2177 = vadd.f32 0.0, %v2176
      %v2178 = vpop.f32.mrb[0].mxu0
      %2179 = vmatprep.mubr.f32.mxu0 0.0
      %2180 = vmatmul.mubr.f32.gmra.mrb[0].mxu0 %v2080
      %v2181 = vpop.f32.mrb[0].mxu0
      %v2182 = vadd.f32 0.0, %v2181
      %v2183 = vpop.f32.mrb[0].mxu0
      %2184 = vmatprep.mubr.f32.mxu0 0.0
      %2185 = vmatmul.mubr.f32.gmra.mrb[0].mxu0 %v2082
      %v2186 = vpop.f32.mrb[0].mxu0
      %v2187 = vadd.f32 0.0, %v2186
      %v2188 = vpop.f32.mrb[0].mxu0
      %2189 = vmatprep.mubr.f32.mxu0 0.0
      %2190 = vmatmul.mubr.f32.gmra.mrb[0].mxu0 %v2084
      %v2191 = vpop.f32.mrb[0].mxu0
      %v2192 = vadd.f32 0.0, %v2191
      %v2193 = vpop.f32.mrb[0].mxu0
      %2194 = vmatprep.mubr.f32.mxu0 0.0
      %2195 = vmatmul.mubr.f32.gmra.mrb[0].mxu0 %v2086
      %v2196 = vpop.f32.mrb[0].mxu0
      %v2197 = vadd.f32 0.0, %v2196
      %v2198 = vpop.f32.mrb[0].mxu0
      %2199 = vmatprep.mubr.f32.mxu0 0.0
      %2200 = vmatmul.mubr.f32.gmra.mrb[0].mxu0 %v2088
      %v2201 = vpop.f32.mrb[0].mxu0
      %v2202 = vadd.f32 0.0, %v2201
      %v2203 = vpop.f32.mrb[0].mxu0
      %2204 = vmatprep.mubr.f32.mxu0 0.0
      %2205 = vmatmul.mubr.f32.gmra.mrb[0].mxu0 %v2090
      %v2206 = vpop.f32.mrb[0].mxu0
      %v2207 = vadd.f32 0.0, %v2206
      %v2208 = vpop.f32.mrb[0].mxu0
      %2209 = vdwg.mxu0
      %v2210 = vadd.f32 %v1852, %v2162
      %v2211 = vadd.f32 %v1857, %v2167
      %v2212 = vadd.f32 %v1862, %v2172
      %v2213 = vadd.f32 %v1867, %v2177
      %v2214 = vadd.f32 %v1872, %v2182
      %v2215 = vadd.f32 %v1877, %v2187
      %v2216 = vadd.f32 %v1882, %v2192
      %v2217 = vadd.f32 %v1887, %v2197
      %v2218 = vadd.f32 %v1892, %v2202
      %v2219 = vadd.f32 %v1897, %v2207
      %v2221 = vunpack.c.l.s4 1983009808
      %v2222 = vunpack.c.0.s8 %v2221
      %v2223 = vlaneseq
      %v2224 = vshrl.u32 %v2223, 7
      %v2225 = vsub.s32 %v2222, %v2224
      %v2226 = vrot.slane %v933, %v2225
      %v2228 = vunpack.c.l.s4 1983009808
      %v2229 = vunpack.c.0.s8 %v2228
      %v2230 = vlaneseq
      %v2231 = vshrl.u32 %v2230, 7
      %v2232 = vsub.s32 %v2229, %v2231
      %v2233 = vrot.slane %v896, %v2232
      %v2235 = vunpack.c.l.s4 1983009808
      %v2236 = vunpack.c.0.s8 %v2235
      %v2237 = vlaneseq
      %v2238 = vshrl.u32 %v2237, 7
      %v2239 = vsub.s32 %v2236, %v2238
      %v2240 = vrot.slane %v938, %v2239
      %v2242 = vunpack.c.l.s4 1983009808
      %v2243 = vunpack.c.0.s8 %v2242
      %v2244 = vlaneseq
      %v2245 = vshrl.u32 %v2244, 7
      %v2246 = vsub.s32 %v2243, %v2245
      %v2247 = vrot.slane %v901, %v2246
      %v2249 = vunpack.c.l.s4 1983009808
      %v2250 = vunpack.c.0.s8 %v2249
      %v2251 = vlaneseq
      %v2252 = vshrl.u32 %v2251, 7
      %v2253 = vsub.s32 %v2250, %v2252
      %v2254 = vrot.slane %v943, %v2253
      %v2256 = vunpack.c.l.s4 1983009808
      %v2257 = vunpack.c.0.s8 %v2256
      %v2258 = vlaneseq
      %v2259 = vshrl.u32 %v2258, 7
      %v2260 = vsub.s32 %v2257, %v2259
      %v2261 = vrot.slane %v906, %v2260
      %v2263 = vunpack.c.l.s4 1983009808
      %v2264 = vunpack.c.0.s8 %v2263
      %v2265 = vlaneseq
      %v2266 = vshrl.u32 %v2265, 7
      %v2267 = vsub.s32 %v2264, %v2266
      %v2268 = vrot.slane %v948, %v2267
      %v2270 = vunpack.c.l.s4 1983009808
      %v2271 = vunpack.c.0.s8 %v2270
      %v2272 = vlaneseq
      %v2273 = vshrl.u32 %v2272, 7
      %v2274 = vsub.s32 %v2271, %v2273
      %v2275 = vrot.slane %v911, %v2274
      %v2276 = vrot.slane %v1166, 2
      %v2277 = vrot.slane %v2226, 7
      %v2278 = vsel %vm1151, %v2276, %v2277
      %v2279 = vrot.slane %v1182, 2
      %v2280 = vrot.slane %v2233, 7
      %v2281 = vsel %vm1151, %v2279, %v2280
      %v2282 = vrot.slane %v1198, 2
      %v2283 = vrot.slane %v2240, 7
      %v2284 = vsel %vm1151, %v2282, %v2283
      %v2285 = vrot.slane %v1214, 2
      %v2286 = vrot.slane %v2247, 7
      %v2287 = vsel %vm1151, %v2285, %v2286
      %v2288 = vrot.slane %v1230, 2
      %v2289 = vrot.slane %v2254, 7
      %v2290 = vsel %vm1151, %v2288, %v2289
      %v2291 = vrot.slane %v1246, 2
      %v2292 = vrot.slane %v2261, 7
      %v2293 = vsel %vm1151, %v2291, %v2292
      %v2294 = vrot.slane %v1262, 2
      %v2295 = vrot.slane %v2268, 7
      %v2296 = vsel %vm1151, %v2294, %v2295
      %v2297 = vrot.slane %v1278, 2
      %v2298 = vrot.slane %v2275, 7
      %v2299 = vsel %vm1151, %v2297, %v2298
      %s2300 = scalar_lea.vmem %s3, 24
      %v2301 = vld [vmem:[%s2300] sm:$0x1f]
      %v2302 = vcombine.low %v1158, %v1161
      %v2303 = vcombine.low %v1164, %v1167
      %v2305 = vunpack.c.l.s4 1983009808
      %v2306 = vunpack.c.0.s8 %v2305
      %v2307 = vlaneseq
      %v2308 = vshrl.u32 %v2307, 7
      %v2309 = vsub.s32 %v2306, %v2308
      %v2310 = vrot.slane %v2302, %v2309
      %v2312 = vunpack.c.l.s4 1983009808
      %v2313 = vunpack.c.0.s8 %v2312
      %v2314 = vlaneseq
      %v2315 = vshrl.u32 %v2314, 7
      %v2316 = vsub.s32 %v2313, %v2315
      %v2317 = vrot.slane %v2303, %v2316
      %v2318 = vcombine.low %v2310, %v2317
      %v2319 = vcombine.low %v2278, %v1174
      %v2320 = vcombine.low %v1177, %v1180
      %v2322 = vunpack.c.l.s4 1983009808
      %v2323 = vunpack.c.0.s8 %v2322
      %v2324 = vlaneseq
      %v2325 = vshrl.u32 %v2324, 7
      %v2326 = vsub.s32 %v2323, %v2325
      %v2327 = vrot.slane %v2319, %v2326
      %v2329 = vunpack.c.l.s4 1983009808
      %v2330 = vunpack.c.0.s8 %v2329
      %v2331 = vlaneseq
      %v2332 = vshrl.u32 %v2331, 7
      %v2333 = vsub.s32 %v2330, %v2332
      %v2334 = vrot.slane %v2320, %v2333
      %v2335 = vcombine.low %v2327, %v2334
      %v2336 = vcombine.low %v1183, %v2281
      %v2337 = vcombine.low %v1190, %v1193
      %v2339 = vunpack.c.l.s4 1983009808
      %v2340 = vunpack.c.0.s8 %v2339
      %v2341 = vlaneseq
      %v2342 = vshrl.u32 %v2341, 7
      %v2343 = vsub.s32 %v2340, %v2342
      %v2344 = vrot.slane %v2336, %v2343
      %v2346 = vunpack.c.l.s4 1983009808
      %v2347 = vunpack.c.0.s8 %v2346
      %v2348 = vlaneseq
      %v2349 = vshrl.u32 %v2348, 7
      %v2350 = vsub.s32 %v2347, %v2349
      %v2351 = vrot.slane %v2337, %v2350
      %v2352 = vcombine.low %v2344, %v2351
      %v2353 = vcombine.low %v1196, %v1199
      %v2354 = vcombine.low %v2284, %v1206
      %v2356 = vunpack.c.l.s4 1983009808
      %v2357 = vunpack.c.0.s8 %v2356
      %v2358 = vlaneseq
      %v2359 = vshrl.u32 %v2358, 7
      %v2360 = vsub.s32 %v2357, %v2359
      %v2361 = vrot.slane %v2353, %v2360
      %v2363 = vunpack.c.l.s4 1983009808
      %v2364 = vunpack.c.0.s8 %v2363
      %v2365 = vlaneseq
      %v2366 = vshrl.u32 %v2365, 7
      %v2367 = vsub.s32 %v2364, %v2366
      %v2368 = vrot.slane %v2354, %v2367
      %v2369 = vcombine.low %v2361, %v2368
      %v2370 = vcombine.low %v1209, %v1212
      %v2371 = vcombine.low %v1215, %v2287
      %v2373 = vunpack.c.l.s4 1983009808
      %v2374 = vunpack.c.0.s8 %v2373
      %v2375 = vlaneseq
      %v2376 = vshrl.u32 %v2375, 7
      %v2377 = vsub.s32 %v2374, %v2376
      %v2378 = vrot.slane %v2370, %v2377
      %v2380 = vunpack.c.l.s4 1983009808
      %v2381 = vunpack.c.0.s8 %v2380
      %v2382 = vlaneseq
      %v2383 = vshrl.u32 %v2382, 7
      %v2384 = vsub.s32 %v2381, %v2383
      %v2385 = vrot.slane %v2371, %v2384
      %v2386 = vcombine.low %v2378, %v2385
      %v2387 = vcombine.low %v1222, %v1225
      %v2388 = vcombine.low %v1228, %v1231
      %v2390 = vunpack.c.l.s4 1983009808
      %v2391 = vunpack.c.0.s8 %v2390
      %v2392 = vlaneseq
      %v2393 = vshrl.u32 %v2392, 7
      %v2394 = vsub.s32 %v2391, %v2393
      %v2395 = vrot.slane %v2387, %v2394
      %v2397 = vunpack.c.l.s4 1983009808
      %v2398 = vunpack.c.0.s8 %v2397
      %v2399 = vlaneseq
      %v2400 = vshrl.u32 %v2399, 7
      %v2401 = vsub.s32 %v2398, %v2400
      %v2402 = vrot.slane %v2388, %v2401
      %v2403 = vcombine.low %v2395, %v2402
      %v2404 = vcombine.low %v2290, %v1238
      %v2405 = vcombine.low %v1241, %v1244
      %v2407 = vunpack.c.l.s4 1983009808
      %v2408 = vunpack.c.0.s8 %v2407
      %v2409 = vlaneseq
      %v2410 = vshrl.u32 %v2409, 7
      %v2411 = vsub.s32 %v2408, %v2410
      %v2412 = vrot.slane %v2404, %v2411
      %v2414 = vunpack.c.l.s4 1983009808
      %v2415 = vunpack.c.0.s8 %v2414
      %v2416 = vlaneseq
      %v2417 = vshrl.u32 %v2416, 7
      %v2418 = vsub.s32 %v2415, %v2417
      %v2419 = vrot.slane %v2405, %v2418
      %v2420 = vcombine.low %v2412, %v2419
      %v2421 = vcombine.low %v1247, %v2293
      %v2422 = vcombine.low %v1254, %v1257
      %v2424 = vunpack.c.l.s4 1983009808
      %v2425 = vunpack.c.0.s8 %v2424
      %v2426 = vlaneseq
      %v2427 = vshrl.u32 %v2426, 7
      %v2428 = vsub.s32 %v2425, %v2427
      %v2429 = vrot.slane %v2421, %v2428
      %v2431 = vunpack.c.l.s4 1983009808
      %v2432 = vunpack.c.0.s8 %v2431
      %v2433 = vlaneseq
      %v2434 = vshrl.u32 %v2433, 7
      %v2435 = vsub.s32 %v2432, %v2434
      %v2436 = vrot.slane %v2422, %v2435
      %v2437 = vcombine.low %v2429, %v2436
      %v2438 = vcombine.low %v1260, %v1263
      %v2439 = vcombine.low %v2296, %v1270
      %v2441 = vunpack.c.l.s4 1983009808
      %v2442 = vunpack.c.0.s8 %v2441
      %v2443 = vlaneseq
      %v2444 = vshrl.u32 %v2443, 7
      %v2445 = vsub.s32 %v2442, %v2444
      %v2446 = vrot.slane %v2438, %v2445
      %v2448 = vunpack.c.l.s4 1983009808
      %v2449 = vunpack.c.0.s8 %v2448
      %v2450 = vlaneseq
      %v2451 = vshrl.u32 %v2450, 7
      %v2452 = vsub.s32 %v2449, %v2451
      %v2453 = vrot.slane %v2439, %v2452
      %v2454 = vcombine.low %v2446, %v2453
      %v2455 = vcombine.low %v1273, %v1276
      %v2456 = vcombine.low %v1279, %v2299
      %v2458 = vunpack.c.l.s4 1983009808
      %v2459 = vunpack.c.0.s8 %v2458
      %v2460 = vlaneseq
      %v2461 = vshrl.u32 %v2460, 7
      %v2462 = vsub.s32 %v2459, %v2461
      %v2463 = vrot.slane %v2455, %v2462
      %v2465 = vunpack.c.l.s4 1983009808
      %v2466 = vunpack.c.0.s8 %v2465
      %v2467 = vlaneseq
      %v2468 = vshrl.u32 %v2467, 7
      %v2469 = vsub.s32 %v2466, %v2468
      %v2470 = vrot.slane %v2456, %v2469
      %v2471 = vcombine.low %v2463, %v2470
      %v2472 = vsel %vm1452, %v2318, 0
      %v2474 = vsel %vm1452, %v2335, 0
      %v2476 = vsel %vm1452, %v2352, 0
      %v2478 = vsel %vm1452, %v2369, 0
      %v2480 = vsel %vm1452, %v2386, 0
      %v2482 = vsel %vm1452, %v2403, 0
      %v2484 = vsel %vm1452, %v2420, 0
      %v2486 = vsel %vm1452, %v2437, 0
      %v2488 = vsel %vm1452, %v2454, 0
      %v2490 = vsel %vm1452, %v2471, 0
      %v2493 = vsel %vm1473, %v2301, 0
      %2495 = vmatprep.subr.mxu0 0.0
      %2496 = vmatpush1.msra.mxu0 %v2493
      %2497 = vmatprep.subr.mxu0 0.0
      %2498 = vmatpush1.msra.mxu0 0.0
      %2499 = vmatprep.subr.mxu0 0.0
      %2500 = vmatpush1.msra.mxu0 0.0
      %2501 = vmatprep.subr.mxu0 0.0
      %2502 = vmatpush1.msra.mxu0 0.0
      %2503 = vmatprep.subr.mxu0 0.0
      %2504 = vmatpush1.msra.mxu0 0.0
      %2505 = vmatprep.subr.mxu0 0.0
      %2506 = vmatpush1.msra.mxu0 0.0
      %2507 = vmatprep.subr.mxu0 0.0
      %2508 = vmatpush1.msra.mxu0 0.0
      %2509 = vmatprep.subr.mxu0 0.0
      %2510 = vmatpush1.msra.mxu0 0.0
      %2511 = vmatprep.subr.mxu0 0.0
      %2512 = vmatpush1.msra.mxu0 0.0
      %2513 = vmatprep.subr.mxu0 0.0
      %2514 = vmatpush1.msra.mxu0 0.0
      %2515 = vmatprep.subr.mxu0 0.0
      %2516 = vmatpush1.msra.mxu0 0.0
      %2517 = vmatprep.subr.mxu0 0.0
      %2518 = vmatpush1.msra.mxu0 0.0
      %2519 = vmatprep.subr.mxu0 0.0
      %2520 = vmatpush1.msra.mxu0 0.0
      %2521 = vmatprep.subr.mxu0 0.0
      %2522 = vmatpush1.msra.mxu0 0.0
      %2523 = vmatprep.subr.mxu0 0.0
      %2524 = vmatpush1.msra.mxu0 0.0
      %2525 = vmatprep.subr.mxu0 0.0
      %2526 = vmatpush1.msra.mxu0 0.0
      %2527 = vmatprep.subr.mxu0 0.0
      %2528 = vmatpush1.msra.mxu0 0.0
      %2529 = vmatprep.subr.mxu0 0.0
      %2530 = vmatpush1.msra.mxu0 0.0
      %2531 = vmatprep.subr.mxu0 0.0
      %2532 = vmatpush1.msra.mxu0 0.0
      %2533 = vmatprep.subr.mxu0 0.0
      %2534 = vmatpush1.msra.mxu0 0.0
      %2535 = vmatprep.subr.mxu0 0.0
      %2536 = vmatpush1.msra.mxu0 0.0
      %2537 = vmatprep.subr.mxu0 0.0
      %2538 = vmatpush1.msra.mxu0 0.0
      %2539 = vmatprep.subr.mxu0 0.0
      %2540 = vmatpush1.msra.mxu0 0.0
      %2541 = vmatprep.subr.mxu0 0.0
      %2542 = vmatpush1.msra.mxu0 0.0
      %2543 = vmatprep.subr.mxu0 0.0
      %2544 = vmatpush1.msra.mxu0 0.0
      %2545 = vmatprep.subr.mxu0 0.0
      %2546 = vmatpush1.msra.mxu0 0.0
      %2547 = vmatprep.subr.mxu0 0.0
      %2548 = vmatpush1.msra.mxu0 0.0
      %2549 = vmatprep.subr.mxu0 0.0
      %2550 = vmatpush1.msra.mxu0 0.0
      %2551 = vmatprep.subr.mxu0 0.0
      %2552 = vmatpush1.msra.mxu0 0.0
      %2553 = vmatprep.subr.mxu0 0.0
      %2554 = vmatpush1.msra.mxu0 0.0
      %2555 = vmatprep.subr.mxu0 0.0
      %2556 = vmatpush1.msra.mxu0 0.0
      %2557 = vmatprep.subr.mxu0 0.0
      %2558 = vmatpush1.msra.mxu0 0.0
      %2559 = vmatprep.mubr.f32.mxu0 0.0
      %2560 = vmatmul.mubr.f32.gmra.mrb[0].mxu0 %v2472
      %v2561 = vpop.f32.mrb[0].mxu0
      %v2562 = vadd.f32 0.0, %v2561
      %v2563 = vpop.f32.mrb[0].mxu0
      %2564 = vmatprep.mubr.f32.mxu0 0.0
      %2565 = vmatmul.mubr.f32.gmra.mrb[0].mxu0 %v2474
      %v2566 = vpop.f32.mrb[0].mxu0
      %v2567 = vadd.f32 0.0, %v2566
      %v2568 = vpop.f32.mrb[0].mxu0
      %2569 = vmatprep.mubr.f32.mxu0 0.0
      %2570 = vmatmul.mubr.f32.gmra.mrb[0].mxu0 %v2476
      %v2571 = vpop.f32.mrb[0].mxu0
      %v2572 = vadd.f32 0.0, %v2571
      %v2573 = vpop.f32.mrb[0].mxu0
      %2574 = vmatprep.mubr.f32.mxu0 0.0
      %2575 = vmatmul.mubr.f32.gmra.mrb[0].mxu0 %v2478
      %v2576 = vpop.f32.mrb[0].mxu0
      %v2577 = vadd.f32 0.0, %v2576
      %v2578 = vpop.f32.mrb[0].mxu0
      %2579 = vmatprep.mubr.f32.mxu0 0.0
      %2580 = vmatmul.mubr.f32.gmra.mrb[0].mxu0 %v2480
      %v2581 = vpop.f32.mrb[0].mxu0
      %v2582 = vadd.f32 0.0, %v2581
      %v2583 = vpop.f32.mrb[0].mxu0
      %2584 = vmatprep.mubr.f32.mxu0 0.0
      %2585 = vmatmul.mubr.f32.gmra.mrb[0].mxu0 %v2482
      %v2586 = vpop.f32.mrb[0].mxu0
      %v2587 = vadd.f32 0.0, %v2586
      %v2588 = vpop.f32.mrb[0].mxu0
      %2589 = vmatprep.mubr.f32.mxu0 0.0
      %2590 = vmatmul.mubr.f32.gmra.mrb[0].mxu0 %v2484
      %v2591 = vpop.f32.mrb[0].mxu0
      %v2592 = vadd.f32 0.0, %v2591
      %v2593 = vpop.f32.mrb[0].mxu0
      %2594 = vmatprep.mubr.f32.mxu0 0.0
      %2595 = vmatmul.mubr.f32.gmra.mrb[0].mxu0 %v2486
      %v2596 = vpop.f32.mrb[0].mxu0
      %v2597 = vadd.f32 0.0, %v2596
      %v2598 = vpop.f32.mrb[0].mxu0
      %2599 = vmatprep.mubr.f32.mxu0 0.0
      %2600 = vmatmul.mubr.f32.gmra.mrb[0].mxu0 %v2488
      %v2601 = vpop.f32.mrb[0].mxu0
      %v2602 = vadd.f32 0.0, %v2601
      %v2603 = vpop.f32.mrb[0].mxu0
      %2604 = vmatprep.mubr.f32.mxu0 0.0
      %2605 = vmatmul.mubr.f32.gmra.mrb[0].mxu0 %v2490
      %v2606 = vpop.f32.mrb[0].mxu0
      %v2607 = vadd.f32 0.0, %v2606
      %v2608 = vpop.f32.mrb[0].mxu0
      %2609 = vdwg.mxu0
      %v2610 = vadd.f32 %v2210, %v2562
      %v2611 = vadd.f32 %v2211, %v2567
      %v2612 = vadd.f32 %v2212, %v2572
      %v2613 = vadd.f32 %v2213, %v2577
      %v2614 = vadd.f32 %v2214, %v2582
      %v2615 = vadd.f32 %v2215, %v2587
      %v2616 = vadd.f32 %v2216, %v2592
      %v2617 = vadd.f32 %v2217, %v2597
      %v2618 = vadd.f32 %v2218, %v2602
      %v2619 = vadd.f32 %v2219, %v2607
      %s2620 = scalar_lea.vmem %s3, 32
      %v2621 = vld [vmem:[%s2620] sm:$0x1f]
      %v2622 = vcombine.low %v974, %v1137
      %v2624 = vunpack.c.l.s4 1983009808
      %v2625 = vunpack.c.0.s8 %v2624
      %v2626 = vlaneseq
      %v2627 = vshrl.u32 %v2626, 7
      %v2628 = vsub.s32 %v2625, %v2627
      %v2629 = vrot.slane %v2622, %v2628
      %v2630 = vcombine.low %v1607, %v2629
      %v2631 = vcombine.low %v2226, %v989
      %v2633 = vunpack.c.l.s4 1983009808
      %v2634 = vunpack.c.0.s8 %v2633
      %v2635 = vlaneseq
      %v2636 = vshrl.u32 %v2635, 7
      %v2637 = vsub.s32 %v2634, %v2636
      %v2638 = vrot.slane %v2631, %v2637
      %v2639 = vcombine.low %v2638, %v1634
      %v2640 = vcombine.low %v1138, %v2233
      %v2642 = vunpack.c.l.s4 1983009808
      %v2643 = vunpack.c.0.s8 %v2642
      %v2644 = vlaneseq
      %v2645 = vshrl.u32 %v2644, 7
      %v2646 = vsub.s32 %v2643, %v2645
      %v2647 = vrot.slane %v2640, %v2646
      %v2648 = vcombine.low %v2647, %v1651
      %v2649 = vcombine.low %v1020, %v1139
      %v2650 = vcombine.low %v2240, %v1035
      %v2652 = vunpack.c.l.s4 1983009808
      %v2653 = vunpack.c.0.s8 %v2652
      %v2654 = vlaneseq
      %v2655 = vshrl.u32 %v2654, 7
      %v2656 = vsub.s32 %v2653, %v2655
      %v2657 = vrot.slane %v2649, %v2656
      %v2659 = vunpack.c.l.s4 1983009808
      %v2660 = vunpack.c.0.s8 %v2659
      %v2661 = vlaneseq
      %v2662 = vshrl.u32 %v2661, 7
      %v2663 = vsub.s32 %v2660, %v2662
      %v2664 = vrot.slane %v2650, %v2663
      %v2665 = vcombine.low %v2657, %v2664
      %v2666 = vcombine.low %v1140, %v2247
      %v2668 = vunpack.c.l.s4 1983009808
      %v2669 = vunpack.c.0.s8 %v2668
      %v2670 = vlaneseq
      %v2671 = vshrl.u32 %v2670, 7
      %v2672 = vsub.s32 %v2669, %v2671
      %v2673 = vrot.slane %v2666, %v2672
      %v2674 = vcombine.low %v1675, %v2673
      %v2675 = vcombine.low %v1066, %v1141
      %v2677 = vunpack.c.l.s4 1983009808
      %v2678 = vunpack.c.0.s8 %v2677
      %v2679 = vlaneseq
      %v2680 = vshrl.u32 %v2679, 7
      %v2681 = vsub.s32 %v2678, %v2680
      %v2682 = vrot.slane %v2675, %v2681
      %v2683 = vcombine.low %v1692, %v2682
      %v2684 = vcombine.low %v2254, %v1081
      %v2686 = vunpack.c.l.s4 1983009808
      %v2687 = vunpack.c.0.s8 %v2686
      %v2688 = vlaneseq
      %v2689 = vshrl.u32 %v2688, 7
      %v2690 = vsub.s32 %v2687, %v2689
      %v2691 = vrot.slane %v2684, %v2690
      %v2692 = vcombine.low %v2691, %v1719
      %v2693 = vcombine.low %v1142, %v2261
      %v2695 = vunpack.c.l.s4 1983009808
      %v2696 = vunpack.c.0.s8 %v2695
      %v2697 = vlaneseq
      %v2698 = vshrl.u32 %v2697, 7
      %v2699 = vsub.s32 %v2696, %v2698
      %v2700 = vrot.slane %v2693, %v2699
      %v2701 = vcombine.low %v2700, %v1736
      %v2702 = vcombine.low %v1112, %v1143
      %v2703 = vcombine.low %v2268, %v1127
      %v2705 = vunpack.c.l.s4 1983009808
      %v2706 = vunpack.c.0.s8 %v2705
      %v2707 = vlaneseq
      %v2708 = vshrl.u32 %v2707, 7
      %v2709 = vsub.s32 %v2706, %v2708
      %v2710 = vrot.slane %v2702, %v2709
      %v2712 = vunpack.c.l.s4 1983009808
      %v2713 = vunpack.c.0.s8 %v2712
      %v2714 = vlaneseq
      %v2715 = vshrl.u32 %v2714, 7
      %v2716 = vsub.s32 %v2713, %v2715
      %v2717 = vrot.slane %v2703, %v2716
      %v2718 = vcombine.low %v2710, %v2717
      %v2719 = vcombine.low %v1144, %v2275
      %v2721 = vunpack.c.l.s4 1983009808
      %v2722 = vunpack.c.0.s8 %v2721
      %v2723 = vlaneseq
      %v2724 = vshrl.u32 %v2723, 7
      %v2725 = vsub.s32 %v2722, %v2724
      %v2726 = vrot.slane %v2719, %v2725
      %v2727 = vcombine.low %v1760, %v2726
      %v2728 = vsel %vm1452, %v2630, 0
      %v2730 = vsel %vm1452, %v2639, 0
      %v2732 = vsel %vm1452, %v2648, 0
      %v2734 = vsel %vm1452, %v2665, 0
      %v2736 = vsel %vm1452, %v2674, 0
      %v2738 = vsel %vm1452, %v2683, 0
      %v2740 = vsel %vm1452, %v2692, 0
      %v2742 = vsel %vm1452, %v2701, 0
      %v2744 = vsel %vm1452, %v2718, 0
      %v2746 = vsel %vm1452, %v2727, 0
      %v2749 = vsel %vm1473, %v2621, 0
      %2751 = vmatprep.subr.mxu0 0.0
      %2752 = vmatpush1.msra.mxu0 %v2749
      %2753 = vmatprep.subr.mxu0 0.0
      %2754 = vmatpush1.msra.mxu0 0.0
      %2755 = vmatprep.subr.mxu0 0.0
      %2756 = vmatpush1.msra.mxu0 0.0
      %2757 = vmatprep.subr.mxu0 0.0
      %2758 = vmatpush1.msra.mxu0 0.0
      %2759 = vmatprep.subr.mxu0 0.0
      %2760 = vmatpush1.msra.mxu0 0.0
      %2761 = vmatprep.subr.mxu0 0.0
      %2762 = vmatpush1.msra.mxu0 0.0
      %2763 = vmatprep.subr.mxu0 0.0
      %2764 = vmatpush1.msra.mxu0 0.0
      %2765 = vmatprep.subr.mxu0 0.0
      %2766 = vmatpush1.msra.mxu0 0.0
      %2767 = vmatprep.subr.mxu0 0.0
      %2768 = vmatpush1.msra.mxu0 0.0
      %2769 = vmatprep.subr.mxu0 0.0
      %2770 = vmatpush1.msra.mxu0 0.0
      %2771 = vmatprep.subr.mxu0 0.0
      %2772 = vmatpush1.msra.mxu0 0.0
      %2773 = vmatprep.subr.mxu0 0.0
      %2774 = vmatpush1.msra.mxu0 0.0
      %2775 = vmatprep.subr.mxu0 0.0
      %2776 = vmatpush1.msra.mxu0 0.0
      %2777 = vmatprep.subr.mxu0 0.0
      %2778 = vmatpush1.msra.mxu0 0.0
      %2779 = vmatprep.subr.mxu0 0.0
      %2780 = vmatpush1.msra.mxu0 0.0
      %2781 = vmatprep.subr.mxu0 0.0
      %2782 = vmatpush1.msra.mxu0 0.0
      %2783 = vmatprep.subr.mxu0 0.0
      %2784 = vmatpush1.msra.mxu0 0.0
      %2785 = vmatprep.subr.mxu0 0.0
      %2786 = vmatpush1.msra.mxu0 0.0
      %2787 = vmatprep.subr.mxu0 0.0
      %2788 = vmatpush1.msra.mxu0 0.0
      %2789 = vmatprep.subr.mxu0 0.0
      %2790 = vmatpush1.msra.mxu0 0.0
      %2791 = vmatprep.subr.mxu0 0.0
      %2792 = vmatpush1.msra.mxu0 0.0
      %2793 = vmatprep.subr.mxu0 0.0
      %2794 = vmatpush1.msra.mxu0 0.0
      %2795 = vmatprep.subr.mxu0 0.0
      %2796 = vmatpush1.msra.mxu0 0.0
      %2797 = vmatprep.subr.mxu0 0.0
      %2798 = vmatpush1.msra.mxu0 0.0
      %2799 = vmatprep.subr.mxu0 0.0
      %2800 = vmatpush1.msra.mxu0 0.0
      %2801 = vmatprep.subr.mxu0 0.0
      %2802 = vmatpush1.msra.mxu0 0.0
      %2803 = vmatprep.subr.mxu0 0.0
      %2804 = vmatpush1.msra.mxu0 0.0
      %2805 = vmatprep.subr.mxu0 0.0
      %2806 = vmatpush1.msra.mxu0 0.0
      %2807 = vmatprep.subr.mxu0 0.0
      %2808 = vmatpush1.msra.mxu0 0.0
      %2809 = vmatprep.subr.mxu0 0.0
      %2810 = vmatpush1.msra.mxu0 0.0
      %2811 = vmatprep.subr.mxu0 0.0
      %2812 = vmatpush1.msra.mxu0 0.0
      %2813 = vmatprep.subr.mxu0 0.0
      %2814 = vmatpush1.msra.mxu0 0.0
      %2815 = vmatprep.mubr.f32.mxu0 0.0
      %2816 = vmatmul.mubr.f32.gmra.mrb[0].mxu0 %v2728
      %v2817 = vpop.f32.mrb[0].mxu0
      %v2818 = vadd.f32 0.0, %v2817
      %v2819 = vpop.f32.mrb[0].mxu0
      %2820 = vmatprep.mubr.f32.mxu0 0.0
      %2821 = vmatmul.mubr.f32.gmra.mrb[0].mxu0 %v2730
      %v2822 = vpop.f32.mrb[0].mxu0
      %v2823 = vadd.f32 0.0, %v2822
      %v2824 = vpop.f32.mrb[0].mxu0
      %2825 = vmatprep.mubr.f32.mxu0 0.0
      %2826 = vmatmul.mubr.f32.gmra.mrb[0].mxu0 %v2732
      %v2827 = vpop.f32.mrb[0].mxu0
      %v2828 = vadd.f32 0.0, %v2827
      %v2829 = vpop.f32.mrb[0].mxu0
      %2830 = vmatprep.mubr.f32.mxu0 0.0
      %2831 = vmatmul.mubr.f32.gmra.mrb[0].mxu0 %v2734
      %v2832 = vpop.f32.mrb[0].mxu0
      %v2833 = vadd.f32 0.0, %v2832
      %v2834 = vpop.f32.mrb[0].mxu0
      %2835 = vmatprep.mubr.f32.mxu0 0.0
      %2836 = vmatmul.mubr.f32.gmra.mrb[0].mxu0 %v2736
      %v2837 = vpop.f32.mrb[0].mxu0
      %v2838 = vadd.f32 0.0, %v2837
      %v2839 = vpop.f32.mrb[0].mxu0
      %2840 = vmatprep.mubr.f32.mxu0 0.0
      %2841 = vmatmul.mubr.f32.gmra.mrb[0].mxu0 %v2738
      %v2842 = vpop.f32.mrb[0].mxu0
      %v2843 = vadd.f32 0.0, %v2842
      %v2844 = vpop.f32.mrb[0].mxu0
      %2845 = vmatprep.mubr.f32.mxu0 0.0
      %2846 = vmatmul.mubr.f32.gmra.mrb[0].mxu0 %v2740
      %v2847 = vpop.f32.mrb[0].mxu0
      %v2848 = vadd.f32 0.0, %v2847
      %v2849 = vpop.f32.mrb[0].mxu0
      %2850 = vmatprep.mubr.f32.mxu0 0.0
      %2851 = vmatmul.mubr.f32.gmra.mrb[0].mxu0 %v2742
      %v2852 = vpop.f32.mrb[0].mxu0
      %v2853 = vadd.f32 0.0, %v2852
      %v2854 = vpop.f32.mrb[0].mxu0
      %2855 = vmatprep.mubr.f32.mxu0 0.0
      %2856 = vmatmul.mubr.f32.gmra.mrb[0].mxu0 %v2744
      %v2857 = vpop.f32.mrb[0].mxu0
      %v2858 = vadd.f32 0.0, %v2857
      %v2859 = vpop.f32.mrb[0].mxu0
      %2860 = vmatprep.mubr.f32.mxu0 0.0
      %2861 = vmatmul.mubr.f32.gmra.mrb[0].mxu0 %v2746
      %v2862 = vpop.f32.mrb[0].mxu0
      %v2863 = vadd.f32 0.0, %v2862
      %v2864 = vpop.f32.mrb[0].mxu0
      %2865 = vdwg.mxu0
      %v2866 = vadd.f32 %v2610, %v2818
      %v2867 = vadd.f32 %v2611, %v2823
      %v2868 = vadd.f32 %v2612, %v2828
      %v2869 = vadd.f32 %v2613, %v2833
      %v2870 = vadd.f32 %v2614, %v2838
      %v2871 = vadd.f32 %v2615, %v2843
      %v2872 = vadd.f32 %v2616, %v2848
      %v2873 = vadd.f32 %v2617, %v2853
      %v2874 = vadd.f32 %v2618, %v2858
      %v2875 = vadd.f32 %v2619, %v2863
      %v2876 = vcombine.high %v2226, %v2226
      %v2877 = vcombine.high %v2233, %v2233
      %v2878 = vcombine.high %v2240, %v2240
      %v2879 = vcombine.high %v2247, %v2247
      %v2880 = vcombine.high %v2254, %v2254
      %v2881 = vcombine.high %v2261, %v2261
      %v2882 = vcombine.high %v2268, %v2268
      %v2883 = vcombine.high %v2275, %v2275
      %v2884 = vrot.slane %v2277, 2
      %v2885 = vrot.slane %v2876, 7
      %v2886 = vsel %vm1151, %v2884, %v2885
      %v2887 = vrot.slane %v2280, 2
      %v2888 = vrot.slane %v2877, 7
      %v2889 = vsel %vm1151, %v2887, %v2888
      %v2890 = vrot.slane %v2283, 2
      %v2891 = vrot.slane %v2878, 7
      %v2892 = vsel %vm1151, %v2890, %v2891
      %v2893 = vrot.slane %v2286, 2
      %v2894 = vrot.slane %v2879, 7
      %v2895 = vsel %vm1151, %v2893, %v2894
      %v2896 = vrot.slane %v2289, 2
      %v2897 = vrot.slane %v2880, 7
      %v2898 = vsel %vm1151, %v2896, %v2897
      %v2899 = vrot.slane %v2292, 2
      %v2900 = vrot.slane %v2881, 7
      %v2901 = vsel %vm1151, %v2899, %v2900
      %v2902 = vrot.slane %v2295, 2
      %v2903 = vrot.slane %v2882, 7
      %v2904 = vsel %vm1151, %v2902, %v2903
      %v2905 = vrot.slane %v2298, 2
      %v2906 = vrot.slane %v2883, 7
      %v2907 = vsel %vm1151, %v2905, %v2906
      %s2908 = scalar_lea.vmem %s3, 40
      %v2909 = vld [vmem:[%s2908] sm:$0x1f]
      %v2910 = vcombine.low %v1167, %v2278
      %v2912 = vunpack.c.l.s4 1983009808
      %v2913 = vunpack.c.0.s8 %v2912
      %v2914 = vlaneseq
      %v2915 = vshrl.u32 %v2914, 7
      %v2916 = vsub.s32 %v2913, %v2915
      %v2917 = vrot.slane %v2910, %v2916
      %v2918 = vcombine.low %v1297, %v2917
      %v2919 = vcombine.low %v2886, %v1177
      %v2921 = vunpack.c.l.s4 1983009808
      %v2922 = vunpack.c.0.s8 %v2921
      %v2923 = vlaneseq
      %v2924 = vshrl.u32 %v2923, 7
      %v2925 = vsub.s32 %v2922, %v2924
      %v2926 = vrot.slane %v2919, %v2925
      %v2927 = vcombine.low %v2926, %v1324
      %v2928 = vcombine.low %v2281, %v2889
      %v2930 = vunpack.c.l.s4 1983009808
      %v2931 = vunpack.c.0.s8 %v2930
      %v2932 = vlaneseq
      %v2933 = vshrl.u32 %v2932, 7
      %v2934 = vsub.s32 %v2931, %v2933
      %v2935 = vrot.slane %v2928, %v2934
      %v2936 = vcombine.low %v2935, %v1341
      %v2937 = vcombine.low %v1199, %v2284
      %v2938 = vcombine.low %v2892, %v1209
      %v2940 = vunpack.c.l.s4 1983009808
      %v2941 = vunpack.c.0.s8 %v2940
      %v2942 = vlaneseq
      %v2943 = vshrl.u32 %v2942, 7
      %v2944 = vsub.s32 %v2941, %v2943
      %v2945 = vrot.slane %v2937, %v2944
      %v2947 = vunpack.c.l.s4 1983009808
      %v2948 = vunpack.c.0.s8 %v2947
      %v2949 = vlaneseq
      %v2950 = vshrl.u32 %v2949, 7
      %v2951 = vsub.s32 %v2948, %v2950
      %v2952 = vrot.slane %v2938, %v2951
      %v2953 = vcombine.low %v2945, %v2952
      %v2954 = vcombine.low %v2287, %v2895
      %v2956 = vunpack.c.l.s4 1983009808
      %v2957 = vunpack.c.0.s8 %v2956
      %v2958 = vlaneseq
      %v2959 = vshrl.u32 %v2958, 7
      %v2960 = vsub.s32 %v2957, %v2959
      %v2961 = vrot.slane %v2954, %v2960
      %v2962 = vcombine.low %v1365, %v2961
      %v2963 = vcombine.low %v1231, %v2290
      %v2965 = vunpack.c.l.s4 1983009808
      %v2966 = vunpack.c.0.s8 %v2965
      %v2967 = vlaneseq
      %v2968 = vshrl.u32 %v2967, 7
      %v2969 = vsub.s32 %v2966, %v2968
      %v2970 = vrot.slane %v2963, %v2969
      %v2971 = vcombine.low %v1382, %v2970
      %v2972 = vcombine.low %v2898, %v1241
      %v2974 = vunpack.c.l.s4 1983009808
      %v2975 = vunpack.c.0.s8 %v2974
      %v2976 = vlaneseq
      %v2977 = vshrl.u32 %v2976, 7
      %v2978 = vsub.s32 %v2975, %v2977
      %v2979 = vrot.slane %v2972, %v2978
      %v2980 = vcombine.low %v2979, %v1409
      %v2981 = vcombine.low %v2293, %v2901
      %v2983 = vunpack.c.l.s4 1983009808
      %v2984 = vunpack.c.0.s8 %v2983
      %v2985 = vlaneseq
      %v2986 = vshrl.u32 %v2985, 7
      %v2987 = vsub.s32 %v2984, %v2986
      %v2988 = vrot.slane %v2981, %v2987
      %v2989 = vcombine.low %v2988, %v1426
      %v2990 = vcombine.low %v1263, %v2296
      %v2991 = vcombine.low %v2904, %v1273
      %v2993 = vunpack.c.l.s4 1983009808
      %v2994 = vunpack.c.0.s8 %v2993
      %v2995 = vlaneseq
      %v2996 = vshrl.u32 %v2995, 7
      %v2997 = vsub.s32 %v2994, %v2996
      %v2998 = vrot.slane %v2990, %v2997
      %v3000 = vunpack.c.l.s4 1983009808
      %v3001 = vunpack.c.0.s8 %v3000
      %v3002 = vlaneseq
      %v3003 = vshrl.u32 %v3002, 7
      %v3004 = vsub.s32 %v3001, %v3003
      %v3005 = vrot.slane %v2991, %v3004
      %v3006 = vcombine.low %v2998, %v3005
      %v3007 = vcombine.low %v2299, %v2907
      %v3009 = vunpack.c.l.s4 1983009808
      %v3010 = vunpack.c.0.s8 %v3009
      %v3011 = vlaneseq
      %v3012 = vshrl.u32 %v3011, 7
      %v3013 = vsub.s32 %v3010, %v3012
      %v3014 = vrot.slane %v3007, %v3013
      %v3015 = vcombine.low %v1450, %v3014
      %v3016 = vsel %vm1452, %v2918, 0
      %v3018 = vsel %vm1452, %v2927, 0
      %v3020 = vsel %vm1452, %v2936, 0
      %v3022 = vsel %vm1452, %v2953, 0
      %v3024 = vsel %vm1452, %v2962, 0
      %v3026 = vsel %vm1452, %v2971, 0
      %v3028 = vsel %vm1452, %v2980, 0
      %v3030 = vsel %vm1452, %v2989, 0
      %v3032 = vsel %vm1452, %v3006, 0
      %v3034 = vsel %vm1452, %v3015, 0
      %v3037 = vsel %vm1473, %v2909, 0
      %3039 = vmatprep.subr.mxu0 0.0
      %3040 = vmatpush1.msra.mxu0 %v3037
      %3041 = vmatprep.subr.mxu0 0.0
      %3042 = vmatpush1.msra.mxu0 0.0
      %3043 = vmatprep.subr.mxu0 0.0
      %3044 = vmatpush1.msra.mxu0 0.0
      %3045 = vmatprep.subr.mxu0 0.0
      %3046 = vmatpush1.msra.mxu0 0.0
      %3047 = vmatprep.subr.mxu0 0.0
      %3048 = vmatpush1.msra.mxu0 0.0
      %3049 = vmatprep.subr.mxu0 0.0
      %3050 = vmatpush1.msra.mxu0 0.0
      %3051 = vmatprep.subr.mxu0 0.0
      %3052 = vmatpush1.msra.mxu0 0.0
      %3053 = vmatprep.subr.mxu0 0.0
      %3054 = vmatpush1.msra.mxu0 0.0
      %3055 = vmatprep.subr.mxu0 0.0
      %3056 = vmatpush1.msra.mxu0 0.0
      %3057 = vmatprep.subr.mxu0 0.0
      %3058 = vmatpush1.msra.mxu0 0.0
      %3059 = vmatprep.subr.mxu0 0.0
      %3060 = vmatpush1.msra.mxu0 0.0
      %3061 = vmatprep.subr.mxu0 0.0
      %3062 = vmatpush1.msra.mxu0 0.0
      %3063 = vmatprep.subr.mxu0 0.0
      %3064 = vmatpush1.msra.mxu0 0.0
      %3065 = vmatprep.subr.mxu0 0.0
      %3066 = vmatpush1.msra.mxu0 0.0
      %3067 = vmatprep.subr.mxu0 0.0
      %3068 = vmatpush1.msra.mxu0 0.0
      %3069 = vmatprep.subr.mxu0 0.0
      %3070 = vmatpush1.msra.mxu0 0.0
      %3071 = vmatprep.subr.mxu0 0.0
      %3072 = vmatpush1.msra.mxu0 0.0
      %3073 = vmatprep.subr.mxu0 0.0
      %3074 = vmatpush1.msra.mxu0 0.0
      %3075 = vmatprep.subr.mxu0 0.0
      %3076 = vmatpush1.msra.mxu0 0.0
      %3077 = vmatprep.subr.mxu0 0.0
      %3078 = vmatpush1.msra.mxu0 0.0
      %3079 = vmatprep.subr.mxu0 0.0
      %3080 = vmatpush1.msra.mxu0 0.0
      %3081 = vmatprep.subr.mxu0 0.0
      %3082 = vmatpush1.msra.mxu0 0.0
      %3083 = vmatprep.subr.mxu0 0.0
      %3084 = vmatpush1.msra.mxu0 0.0
      %3085 = vmatprep.subr.mxu0 0.0
      %3086 = vmatpush1.msra.mxu0 0.0
      %3087 = vmatprep.subr.mxu0 0.0
      %3088 = vmatpush1.msra.mxu0 0.0
      %3089 = vmatprep.subr.mxu0 0.0
      %3090 = vmatpush1.msra.mxu0 0.0
      %3091 = vmatprep.subr.mxu0 0.0
      %3092 = vmatpush1.msra.mxu0 0.0
      %3093 = vmatprep.subr.mxu0 0.0
      %3094 = vmatpush1.msra.mxu0 0.0
      %3095 = vmatprep.subr.mxu0 0.0
      %3096 = vmatpush1.msra.mxu0 0.0
      %3097 = vmatprep.subr.mxu0 0.0
      %3098 = vmatpush1.msra.mxu0 0.0
      %3099 = vmatprep.subr.mxu0 0.0
      %3100 = vmatpush1.msra.mxu0 0.0
      %3101 = vmatprep.subr.mxu0 0.0
      %3102 = vmatpush1.msra.mxu0 0.0
      %3103 = vmatprep.mubr.f32.mxu0 0.0
      %3104 = vmatmul.mubr.f32.gmra.mrb[0].mxu0 %v3016
      %v3105 = vpop.f32.mrb[0].mxu0
      %v3106 = vadd.f32 0.0, %v3105
      %v3107 = vpop.f32.mrb[0].mxu0
      %3108 = vmatprep.mubr.f32.mxu0 0.0
      %3109 = vmatmul.mubr.f32.gmra.mrb[0].mxu0 %v3018
      %v3110 = vpop.f32.mrb[0].mxu0
      %v3111 = vadd.f32 0.0, %v3110
      %v3112 = vpop.f32.mrb[0].mxu0
      %3113 = vmatprep.mubr.f32.mxu0 0.0
      %3114 = vmatmul.mubr.f32.gmra.mrb[0].mxu0 %v3020
      %v3115 = vpop.f32.mrb[0].mxu0
      %v3116 = vadd.f32 0.0, %v3115
      %v3117 = vpop.f32.mrb[0].mxu0
      %3118 = vmatprep.mubr.f32.mxu0 0.0
      %3119 = vmatmul.mubr.f32.gmra.mrb[0].mxu0 %v3022
      %v3120 = vpop.f32.mrb[0].mxu0
      %v3121 = vadd.f32 0.0, %v3120
      %v3122 = vpop.f32.mrb[0].mxu0
      %3123 = vmatprep.mubr.f32.mxu0 0.0
      %3124 = vmatmul.mubr.f32.gmra.mrb[0].mxu0 %v3024
      %v3125 = vpop.f32.mrb[0].mxu0
      %v3126 = vadd.f32 0.0, %v3125
      %v3127 = vpop.f32.mrb[0].mxu0
      %3128 = vmatprep.mubr.f32.mxu0 0.0
      %3129 = vmatmul.mubr.f32.gmra.mrb[0].mxu0 %v3026
      %v3130 = vpop.f32.mrb[0].mxu0
      %v3131 = vadd.f32 0.0, %v3130
      %v3132 = vpop.f32.mrb[0].mxu0
      %3133 = vmatprep.mubr.f32.mxu0 0.0
      %3134 = vmatmul.mubr.f32.gmra.mrb[0].mxu0 %v3028
      %v3135 = vpop.f32.mrb[0].mxu0
      %v3136 = vadd.f32 0.0, %v3135
      %v3137 = vpop.f32.mrb[0].mxu0
      %3138 = vmatprep.mubr.f32.mxu0 0.0
      %3139 = vmatmul.mubr.f32.gmra.mrb[0].mxu0 %v3030
      %v3140 = vpop.f32.mrb[0].mxu0
      %v3141 = vadd.f32 0.0, %v3140
      %v3142 = vpop.f32.mrb[0].mxu0
      %3143 = vmatprep.mubr.f32.mxu0 0.0
      %3144 = vmatmul.mubr.f32.gmra.mrb[0].mxu0 %v3032
      %v3145 = vpop.f32.mrb[0].mxu0
      %v3146 = vadd.f32 0.0, %v3145
      %v3147 = vpop.f32.mrb[0].mxu0
      %3148 = vmatprep.mubr.f32.mxu0 0.0
      %3149 = vmatmul.mubr.f32.gmra.mrb[0].mxu0 %v3034
      %v3150 = vpop.f32.mrb[0].mxu0
      %v3151 = vadd.f32 0.0, %v3150
      %v3152 = vpop.f32.mrb[0].mxu0
      %3153 = vdwg.mxu0
      %v3154 = vadd.f32 %v2866, %v3106
      %v3155 = vadd.f32 %v2867, %v3111
      %v3156 = vadd.f32 %v2868, %v3116
      %v3157 = vadd.f32 %v2869, %v3121
      %v3158 = vadd.f32 %v2870, %v3126
      %v3159 = vadd.f32 %v2871, %v3131
      %v3160 = vadd.f32 %v2872, %v3136
      %v3161 = vadd.f32 %v2873, %v3141
      %v3162 = vadd.f32 %v2874, %v3146
      %v3163 = vadd.f32 %v2875, %v3151
      %s3164 = scalar_lea.vmem %s3, 48
      %v3165 = vld [vmem:[%s3164] sm:$0x1f]
      %v3166 = vcombine.low %v1137, %v2226
      %v3168 = vunpack.c.l.s4 1983009808
      %v3169 = vunpack.c.0.s8 %v3168
      %v3170 = vlaneseq
      %v3171 = vshrl.u32 %v3170, 7
      %v3172 = vsub.s32 %v3169, %v3171
      %v3173 = vrot.slane %v3166, %v3172
      %v3174 = vcombine.low %v1917, %v3173
      %v3175 = vcombine.low %v2876, %v990
      %v3177 = vunpack.c.l.s4 1983009808
      %v3178 = vunpack.c.0.s8 %v3177
      %v3179 = vlaneseq
      %v3180 = vshrl.u32 %v3179, 7
      %v3181 = vsub.s32 %v3178, %v3180
      %v3182 = vrot.slane %v3175, %v3181
      %v3183 = vcombine.low %v3182, %v1944
      %v3184 = vcombine.low %v2233, %v2877
      %v3186 = vunpack.c.l.s4 1983009808
      %v3187 = vunpack.c.0.s8 %v3186
      %v3188 = vlaneseq
      %v3189 = vshrl.u32 %v3188, 7
      %v3190 = vsub.s32 %v3187, %v3189
      %v3191 = vrot.slane %v3184, %v3190
      %v3192 = vcombine.low %v3191, %v1961
      %v3193 = vcombine.low %v1139, %v2240
      %v3194 = vcombine.low %v2878, %v1036
      %v3196 = vunpack.c.l.s4 1983009808
      %v3197 = vunpack.c.0.s8 %v3196
      %v3198 = vlaneseq
      %v3199 = vshrl.u32 %v3198, 7
      %v3200 = vsub.s32 %v3197, %v3199
      %v3201 = vrot.slane %v3193, %v3200
      %v3203 = vunpack.c.l.s4 1983009808
      %v3204 = vunpack.c.0.s8 %v3203
      %v3205 = vlaneseq
      %v3206 = vshrl.u32 %v3205, 7
      %v3207 = vsub.s32 %v3204, %v3206
      %v3208 = vrot.slane %v3194, %v3207
      %v3209 = vcombine.low %v3201, %v3208
      %v3210 = vcombine.low %v2247, %v2879
      %v3212 = vunpack.c.l.s4 1983009808
      %v3213 = vunpack.c.0.s8 %v3212
      %v3214 = vlaneseq
      %v3215 = vshrl.u32 %v3214, 7
      %v3216 = vsub.s32 %v3213, %v3215
      %v3217 = vrot.slane %v3210, %v3216
      %v3218 = vcombine.low %v1985, %v3217
      %v3219 = vcombine.low %v1141, %v2254
      %v3221 = vunpack.c.l.s4 1983009808
      %v3222 = vunpack.c.0.s8 %v3221
      %v3223 = vlaneseq
      %v3224 = vshrl.u32 %v3223, 7
      %v3225 = vsub.s32 %v3222, %v3224
      %v3226 = vrot.slane %v3219, %v3225
      %v3227 = vcombine.low %v2002, %v3226
      %v3228 = vcombine.low %v2880, %v1082
      %v3230 = vunpack.c.l.s4 1983009808
      %v3231 = vunpack.c.0.s8 %v3230
      %v3232 = vlaneseq
      %v3233 = vshrl.u32 %v3232, 7
      %v3234 = vsub.s32 %v3231, %v3233
      %v3235 = vrot.slane %v3228, %v3234
      %v3236 = vcombine.low %v3235, %v2029
      %v3237 = vcombine.low %v2261, %v2881
      %v3239 = vunpack.c.l.s4 1983009808
      %v3240 = vunpack.c.0.s8 %v3239
      %v3241 = vlaneseq
      %v3242 = vshrl.u32 %v3241, 7
      %v3243 = vsub.s32 %v3240, %v3242
      %v3244 = vrot.slane %v3237, %v3243
      %v3245 = vcombine.low %v3244, %v2046
      %v3246 = vcombine.low %v1143, %v2268
      %v3247 = vcombine.low %v2882, %v1128
      %v3249 = vunpack.c.l.s4 1983009808
      %v3250 = vunpack.c.0.s8 %v3249
      %v3251 = vlaneseq
      %v3252 = vshrl.u32 %v3251, 7
      %v3253 = vsub.s32 %v3250, %v3252
      %v3254 = vrot.slane %v3246, %v3253
      %v3256 = vunpack.c.l.s4 1983009808
      %v3257 = vunpack.c.0.s8 %v3256
      %v3258 = vlaneseq
      %v3259 = vshrl.u32 %v3258, 7
      %v3260 = vsub.s32 %v3257, %v3259
      %v3261 = vrot.slane %v3247, %v3260
      %v3262 = vcombine.low %v3254, %v3261
      %v3263 = vcombine.low %v2275, %v2883
      %v3265 = vunpack.c.l.s4 1983009808
      %v3266 = vunpack.c.0.s8 %v3265
      %v3267 = vlaneseq
      %v3268 = vshrl.u32 %v3267, 7
      %v3269 = vsub.s32 %v3266, %v3268
      %v3270 = vrot.slane %v3263, %v3269
      %v3271 = vcombine.low %v2070, %v3270
      %v3272 = vsel %vm1452, %v3174, 0
      %v3274 = vsel %vm1452, %v3183, 0
      %v3276 = vsel %vm1452, %v3192, 0
      %v3278 = vsel %vm1452, %v3209, 0
      %v3280 = vsel %vm1452, %v3218, 0
      %v3282 = vsel %vm1452, %v3227, 0
      %v3284 = vsel %vm1452, %v3236, 0
      %v3286 = vsel %vm1452, %v3245, 0
      %v3288 = vsel %vm1452, %v3262, 0
      %v3290 = vsel %vm1452, %v3271, 0
      %v3293 = vsel %vm1473, %v3165, 0
      %3295 = vmatprep.subr.mxu0 0.0
      %3296 = vmatpush1.msra.mxu0 %v3293
      %3297 = vmatprep.subr.mxu0 0.0
      %3298 = vmatpush1.msra.mxu0 0.0
      %3299 = vmatprep.subr.mxu0 0.0
      %3300 = vmatpush1.msra.mxu0 0.0
      %3301 = vmatprep.subr.mxu0 0.0
      %3302 = vmatpush1.msra.mxu0 0.0
      %3303 = vmatprep.subr.mxu0 0.0
      %3304 = vmatpush1.msra.mxu0 0.0
      %3305 = vmatprep.subr.mxu0 0.0
      %3306 = vmatpush1.msra.mxu0 0.0
      %3307 = vmatprep.subr.mxu0 0.0
      %3308 = vmatpush1.msra.mxu0 0.0
      %3309 = vmatprep.subr.mxu0 0.0
      %3310 = vmatpush1.msra.mxu0 0.0
      %3311 = vmatprep.subr.mxu0 0.0
      %3312 = vmatpush1.msra.mxu0 0.0
      %3313 = vmatprep.subr.mxu0 0.0
      %3314 = vmatpush1.msra.mxu0 0.0
      %3315 = vmatprep.subr.mxu0 0.0
      %3316 = vmatpush1.msra.mxu0 0.0
      %3317 = vmatprep.subr.mxu0 0.0
      %3318 = vmatpush1.msra.mxu0 0.0
      %3319 = vmatprep.subr.mxu0 0.0
      %3320 = vmatpush1.msra.mxu0 0.0
      %3321 = vmatprep.subr.mxu0 0.0
      %3322 = vmatpush1.msra.mxu0 0.0
      %3323 = vmatprep.subr.mxu0 0.0
      %3324 = vmatpush1.msra.mxu0 0.0
      %3325 = vmatprep.subr.mxu0 0.0
      %3326 = vmatpush1.msra.mxu0 0.0
      %3327 = vmatprep.subr.mxu0 0.0
      %3328 = vmatpush1.msra.mxu0 0.0
      %3329 = vmatprep.subr.mxu0 0.0
      %3330 = vmatpush1.msra.mxu0 0.0
      %3331 = vmatprep.subr.mxu0 0.0
      %3332 = vmatpush1.msra.mxu0 0.0
      %3333 = vmatprep.subr.mxu0 0.0
      %3334 = vmatpush1.msra.mxu0 0.0
      %3335 = vmatprep.subr.mxu0 0.0
      %3336 = vmatpush1.msra.mxu0 0.0
      %3337 = vmatprep.subr.mxu0 0.0
      %3338 = vmatpush1.msra.mxu0 0.0
      %3339 = vmatprep.subr.mxu0 0.0
      %3340 = vmatpush1.msra.mxu0 0.0
      %3341 = vmatprep.subr.mxu0 0.0
      %3342 = vmatpush1.msra.mxu0 0.0
      %3343 = vmatprep.subr.mxu0 0.0
      %3344 = vmatpush1.msra.mxu0 0.0
      %3345 = vmatprep.subr.mxu0 0.0
      %3346 = vmatpush1.msra.mxu0 0.0
      %3347 = vmatprep.subr.mxu0 0.0
      %3348 = vmatpush1.msra.mxu0 0.0
      %3349 = vmatprep.subr.mxu0 0.0
      %3350 = vmatpush1.msra.mxu0 0.0
      %3351 = vmatprep.subr.mxu0 0.0
      %3352 = vmatpush1.msra.mxu0 0.0
      %3353 = vmatprep.subr.mxu0 0.0
      %3354 = vmatpush1.msra.mxu0 0.0
      %3355 = vmatprep.subr.mxu0 0.0
      %3356 = vmatpush1.msra.mxu0 0.0
      %3357 = vmatprep.subr.mxu0 0.0
      %3358 = vmatpush1.msra.mxu0 0.0
      %3359 = vmatprep.mubr.f32.mxu0 0.0
      %3360 = vmatmul.mubr.f32.gmra.mrb[0].mxu0 %v3272
      %v3361 = vpop.f32.mrb[0].mxu0
      %v3362 = vadd.f32 0.0, %v3361
      %v3363 = vpop.f32.mrb[0].mxu0
      %3364 = vmatprep.mubr.f32.mxu0 0.0
      %3365 = vmatmul.mubr.f32.gmra.mrb[0].mxu0 %v3274
      %v3366 = vpop.f32.mrb[0].mxu0
      %v3367 = vadd.f32 0.0, %v3366
      %v3368 = vpop.f32.mrb[0].mxu0
      %3369 = vmatprep.mubr.f32.mxu0 0.0
      %3370 = vmatmul.mubr.f32.gmra.mrb[0].mxu0 %v3276
      %v3371 = vpop.f32.mrb[0].mxu0
      %v3372 = vadd.f32 0.0, %v3371
      %v3373 = vpop.f32.mrb[0].mxu0
      %3374 = vmatprep.mubr.f32.mxu0 0.0
      %3375 = vmatmul.mubr.f32.gmra.mrb[0].mxu0 %v3278
      %v3376 = vpop.f32.mrb[0].mxu0
      %v3377 = vadd.f32 0.0, %v3376
      %v3378 = vpop.f32.mrb[0].mxu0
      %3379 = vmatprep.mubr.f32.mxu0 0.0
      %3380 = vmatmul.mubr.f32.gmra.mrb[0].mxu0 %v3280
      %v3381 = vpop.f32.mrb[0].mxu0
      %v3382 = vadd.f32 0.0, %v3381
      %v3383 = vpop.f32.mrb[0].mxu0
      %3384 = vmatprep.mubr.f32.mxu0 0.0
      %3385 = vmatmul.mubr.f32.gmra.mrb[0].mxu0 %v3282
      %v3386 = vpop.f32.mrb[0].mxu0
      %v3387 = vadd.f32 0.0, %v3386
      %v3388 = vpop.f32.mrb[0].mxu0
      %3389 = vmatprep.mubr.f32.mxu0 0.0
      %3390 = vmatmul.mubr.f32.gmra.mrb[0].mxu0 %v3284
      %v3391 = vpop.f32.mrb[0].mxu0
      %v3392 = vadd.f32 0.0, %v3391
      %v3393 = vpop.f32.mrb[0].mxu0
      %3394 = vmatprep.mubr.f32.mxu0 0.0
      %3395 = vmatmul.mubr.f32.gmra.mrb[0].mxu0 %v3286
      %v3396 = vpop.f32.mrb[0].mxu0
      %v3397 = vadd.f32 0.0, %v3396
      %v3398 = vpop.f32.mrb[0].mxu0
      %3399 = vmatprep.mubr.f32.mxu0 0.0
      %3400 = vmatmul.mubr.f32.gmra.mrb[0].mxu0 %v3288
      %v3401 = vpop.f32.mrb[0].mxu0
      %v3402 = vadd.f32 0.0, %v3401
      %v3403 = vpop.f32.mrb[0].mxu0
      %3404 = vmatprep.mubr.f32.mxu0 0.0
      %3405 = vmatmul.mubr.f32.gmra.mrb[0].mxu0 %v3290
      %v3406 = vpop.f32.mrb[0].mxu0
      %v3407 = vadd.f32 0.0, %v3406
      %v3408 = vpop.f32.mrb[0].mxu0
      %3409 = vdwg.mxu0
      %v3410 = vadd.f32 %v3154, %v3362
      %v3411 = vadd.f32 %v3155, %v3367
      %v3412 = vadd.f32 %v3156, %v3372
      %v3413 = vadd.f32 %v3157, %v3377
      %v3414 = vadd.f32 %v3158, %v3382
      %v3415 = vadd.f32 %v3159, %v3387
      %v3416 = vadd.f32 %v3160, %v3392
      %v3417 = vadd.f32 %v3161, %v3397
      %v3418 = vadd.f32 %v3162, %v3402
      %v3419 = vadd.f32 %v3163, %v3407
      %v3421 = vunpack.c.l.s4 1983009808
      %v3422 = vunpack.c.0.s8 %v3421
      %v3423 = vlaneseq
      %v3424 = vshrl.u32 %v3423, 7
      %v3425 = vsub.s32 %v3422, %v3424
      %v3426 = vrot.slane %v894, %v3425
      %v3428 = vunpack.c.l.s4 1983009808
      %v3429 = vunpack.c.0.s8 %v3428
      %v3430 = vlaneseq
      %v3431 = vshrl.u32 %v3430, 7
      %v3432 = vsub.s32 %v3429, %v3431
      %v3433 = vrot.slane %v936, %v3432
      %v3435 = vunpack.c.l.s4 1983009808
      %v3436 = vunpack.c.0.s8 %v3435
      %v3437 = vlaneseq
      %v3438 = vshrl.u32 %v3437, 7
      %v3439 = vsub.s32 %v3436, %v3438
      %v3440 = vrot.slane %v899, %v3439
      %v3442 = vunpack.c.l.s4 1983009808
      %v3443 = vunpack.c.0.s8 %v3442
      %v3444 = vlaneseq
      %v3445 = vshrl.u32 %v3444, 7
      %v3446 = vsub.s32 %v3443, %v3445
      %v3447 = vrot.slane %v941, %v3446
      %v3449 = vunpack.c.l.s4 1983009808
      %v3450 = vunpack.c.0.s8 %v3449
      %v3451 = vlaneseq
      %v3452 = vshrl.u32 %v3451, 7
      %v3453 = vsub.s32 %v3450, %v3452
      %v3454 = vrot.slane %v904, %v3453
      %v3456 = vunpack.c.l.s4 1983009808
      %v3457 = vunpack.c.0.s8 %v3456
      %v3458 = vlaneseq
      %v3459 = vshrl.u32 %v3458, 7
      %v3460 = vsub.s32 %v3457, %v3459
      %v3461 = vrot.slane %v946, %v3460
      %v3463 = vunpack.c.l.s4 1983009808
      %v3464 = vunpack.c.0.s8 %v3463
      %v3465 = vlaneseq
      %v3466 = vshrl.u32 %v3465, 7
      %v3467 = vsub.s32 %v3464, %v3466
      %v3468 = vrot.slane %v909, %v3467
      %v3470 = vunpack.c.l.s4 1983009808
      %v3471 = vunpack.c.0.s8 %v3470
      %v3472 = vlaneseq
      %v3473 = vshrl.u32 %v3472, 7
      %v3474 = vsub.s32 %v3471, %v3473
      %v3475 = vrot.slane %v951, %v3474
      %v3476 = vrot.slane %v2885, 2
      %v3477 = vrot.slane %v3426, 7
      %v3478 = vsel %vm1151, %v3476, %v3477
      %v3479 = vrot.slane %v2888, 2
      %v3480 = vrot.slane %v3433, 7
      %v3481 = vsel %vm1151, %v3479, %v3480
      %v3482 = vrot.slane %v2891, 2
      %v3483 = vrot.slane %v3440, 7
      %v3484 = vsel %vm1151, %v3482, %v3483
      %v3485 = vrot.slane %v2894, 2
      %v3486 = vrot.slane %v3447, 7
      %v3487 = vsel %vm1151, %v3485, %v3486
      %v3488 = vrot.slane %v2897, 2
      %v3489 = vrot.slane %v3454, 7
      %v3490 = vsel %vm1151, %v3488, %v3489
      %v3491 = vrot.slane %v2900, 2
      %v3492 = vrot.slane %v3461, 7
      %v3493 = vsel %vm1151, %v3491, %v3492
      %v3494 = vrot.slane %v2903, 2
      %v3495 = vrot.slane %v3468, 7
      %v3496 = vsel %vm1151, %v3494, %v3495
      %v3497 = vrot.slane %v2906, 2
      %v3498 = vrot.slane %v3475, 7
      %v3499 = vsel %vm1151, %v3497, %v3498
      %s3500 = scalar_lea.vmem %s3, 56
      %v3501 = vld [vmem:[%s3500] sm:$0x1f]
      %v3502 = vcombine.low %v2278, %v2886
      %v3504 = vunpack.c.l.s4 1983009808
      %v3505 = vunpack.c.0.s8 %v3504
      %v3506 = vlaneseq
      %v3507 = vshrl.u32 %v3506, 7
      %v3508 = vsub.s32 %v3505, %v3507
      %v3509 = vrot.slane %v3502, %v3508
      %v3510 = vcombine.low %v2317, %v3509
      %v3511 = vcombine.low %v3478, %v1180
      %v3513 = vunpack.c.l.s4 1983009808
      %v3514 = vunpack.c.0.s8 %v3513
      %v3515 = vlaneseq
      %v3516 = vshrl.u32 %v3515, 7
      %v3517 = vsub.s32 %v3514, %v3516
      %v3518 = vrot.slane %v3511, %v3517
      %v3519 = vcombine.low %v3518, %v2344
      %v3520 = vcombine.low %v2889, %v3481
      %v3522 = vunpack.c.l.s4 1983009808
      %v3523 = vunpack.c.0.s8 %v3522
      %v3524 = vlaneseq
      %v3525 = vshrl.u32 %v3524, 7
      %v3526 = vsub.s32 %v3523, %v3525
      %v3527 = vrot.slane %v3520, %v3526
      %v3528 = vcombine.low %v3527, %v2361
      %v3529 = vcombine.low %v2284, %v2892
      %v3530 = vcombine.low %v3484, %v1212
      %v3532 = vunpack.c.l.s4 1983009808
      %v3533 = vunpack.c.0.s8 %v3532
      %v3534 = vlaneseq
      %v3535 = vshrl.u32 %v3534, 7
      %v3536 = vsub.s32 %v3533, %v3535
      %v3537 = vrot.slane %v3529, %v3536
      %v3539 = vunpack.c.l.s4 1983009808
      %v3540 = vunpack.c.0.s8 %v3539
      %v3541 = vlaneseq
      %v3542 = vshrl.u32 %v3541, 7
      %v3543 = vsub.s32 %v3540, %v3542
      %v3544 = vrot.slane %v3530, %v3543
      %v3545 = vcombine.low %v3537, %v3544
      %v3546 = vcombine.low %v2895, %v3487
      %v3548 = vunpack.c.l.s4 1983009808
      %v3549 = vunpack.c.0.s8 %v3548
      %v3550 = vlaneseq
      %v3551 = vshrl.u32 %v3550, 7
      %v3552 = vsub.s32 %v3549, %v3551
      %v3553 = vrot.slane %v3546, %v3552
      %v3554 = vcombine.low %v2385, %v3553
      %v3555 = vcombine.low %v2290, %v2898
      %v3557 = vunpack.c.l.s4 1983009808
      %v3558 = vunpack.c.0.s8 %v3557
      %v3559 = vlaneseq
      %v3560 = vshrl.u32 %v3559, 7
      %v3561 = vsub.s32 %v3558, %v3560
      %v3562 = vrot.slane %v3555, %v3561
      %v3563 = vcombine.low %v2402, %v3562
      %v3564 = vcombine.low %v3490, %v1244
      %v3566 = vunpack.c.l.s4 1983009808
      %v3567 = vunpack.c.0.s8 %v3566
      %v3568 = vlaneseq
      %v3569 = vshrl.u32 %v3568, 7
      %v3570 = vsub.s32 %v3567, %v3569
      %v3571 = vrot.slane %v3564, %v3570
      %v3572 = vcombine.low %v3571, %v2429
      %v3573 = vcombine.low %v2901, %v3493
      %v3575 = vunpack.c.l.s4 1983009808
      %v3576 = vunpack.c.0.s8 %v3575
      %v3577 = vlaneseq
      %v3578 = vshrl.u32 %v3577, 7
      %v3579 = vsub.s32 %v3576, %v3578
      %v3580 = vrot.slane %v3573, %v3579
      %v3581 = vcombine.low %v3580, %v2446
      %v3582 = vcombine.low %v2296, %v2904
      %v3583 = vcombine.low %v3496, %v1276
      %v3585 = vunpack.c.l.s4 1983009808
      %v3586 = vunpack.c.0.s8 %v3585
      %v3587 = vlaneseq
      %v3588 = vshrl.u32 %v3587, 7
      %v3589 = vsub.s32 %v3586, %v3588
      %v3590 = vrot.slane %v3582, %v3589
      %v3592 = vunpack.c.l.s4 1983009808
      %v3593 = vunpack.c.0.s8 %v3592
      %v3594 = vlaneseq
      %v3595 = vshrl.u32 %v3594, 7
      %v3596 = vsub.s32 %v3593, %v3595
      %v3597 = vrot.slane %v3583, %v3596
      %v3598 = vcombine.low %v3590, %v3597
      %v3599 = vcombine.low %v2907, %v3499
      %v3601 = vunpack.c.l.s4 1983009808
      %v3602 = vunpack.c.0.s8 %v3601
      %v3603 = vlaneseq
      %v3604 = vshrl.u32 %v3603, 7
      %v3605 = vsub.s32 %v3602, %v3604
      %v3606 = vrot.slane %v3599, %v3605
      %v3607 = vcombine.low %v2470, %v3606
      %v3608 = vsel %vm1452, %v3510, 0
      %v3610 = vsel %vm1452, %v3519, 0
      %v3612 = vsel %vm1452, %v3528, 0
      %v3614 = vsel %vm1452, %v3545, 0
      %v3616 = vsel %vm1452, %v3554, 0
      %v3618 = vsel %vm1452, %v3563, 0
      %v3620 = vsel %vm1452, %v3572, 0
      %v3622 = vsel %vm1452, %v3581, 0
      %v3624 = vsel %vm1452, %v3598, 0
      %v3626 = vsel %vm1452, %v3607, 0
      %v3629 = vsel %vm1473, %v3501, 0
      %3631 = vmatprep.subr.mxu0 0.0
      %3632 = vmatpush1.msra.mxu0 %v3629
      %3633 = vmatprep.subr.mxu0 0.0
      %3634 = vmatpush1.msra.mxu0 0.0
      %3635 = vmatprep.subr.mxu0 0.0
      %3636 = vmatpush1.msra.mxu0 0.0
      %3637 = vmatprep.subr.mxu0 0.0
      %3638 = vmatpush1.msra.mxu0 0.0
      %3639 = vmatprep.subr.mxu0 0.0
      %3640 = vmatpush1.msra.mxu0 0.0
      %3641 = vmatprep.subr.mxu0 0.0
      %3642 = vmatpush1.msra.mxu0 0.0
      %3643 = vmatprep.subr.mxu0 0.0
      %3644 = vmatpush1.msra.mxu0 0.0
      %3645 = vmatprep.subr.mxu0 0.0
      %3646 = vmatpush1.msra.mxu0 0.0
      %3647 = vmatprep.subr.mxu0 0.0
      %3648 = vmatpush1.msra.mxu0 0.0
      %3649 = vmatprep.subr.mxu0 0.0
      %3650 = vmatpush1.msra.mxu0 0.0
      %3651 = vmatprep.subr.mxu0 0.0
      %3652 = vmatpush1.msra.mxu0 0.0
      %3653 = vmatprep.subr.mxu0 0.0
      %3654 = vmatpush1.msra.mxu0 0.0
      %3655 = vmatprep.subr.mxu0 0.0
      %3656 = vmatpush1.msra.mxu0 0.0
      %3657 = vmatprep.subr.mxu0 0.0
      %3658 = vmatpush1.msra.mxu0 0.0
      %3659 = vmatprep.subr.mxu0 0.0
      %3660 = vmatpush1.msra.mxu0 0.0
      %3661 = vmatprep.subr.mxu0 0.0
      %3662 = vmatpush1.msra.mxu0 0.0
      %3663 = vmatprep.subr.mxu0 0.0
      %3664 = vmatpush1.msra.mxu0 0.0
      %3665 = vmatprep.subr.mxu0 0.0
      %3666 = vmatpush1.msra.mxu0 0.0
      %3667 = vmatprep.subr.mxu0 0.0
      %3668 = vmatpush1.msra.mxu0 0.0
      %3669 = vmatprep.subr.mxu0 0.0
      %3670 = vmatpush1.msra.mxu0 0.0
      %3671 = vmatprep.subr.mxu0 0.0
      %3672 = vmatpush1.msra.mxu0 0.0
      %3673 = vmatprep.subr.mxu0 0.0
      %3674 = vmatpush1.msra.mxu0 0.0
      %3675 = vmatprep.subr.mxu0 0.0
      %3676 = vmatpush1.msra.mxu0 0.0
      %3677 = vmatprep.subr.mxu0 0.0
      %3678 = vmatpush1.msra.mxu0 0.0
      %3679 = vmatprep.subr.mxu0 0.0
      %3680 = vmatpush1.msra.mxu0 0.0
      %3681 = vmatprep.subr.mxu0 0.0
      %3682 = vmatpush1.msra.mxu0 0.0
      %3683 = vmatprep.subr.mxu0 0.0
      %3684 = vmatpush1.msra.mxu0 0.0
      %3685 = vmatprep.subr.mxu0 0.0
      %3686 = vmatpush1.msra.mxu0 0.0
      %3687 = vmatprep.subr.mxu0 0.0
      %3688 = vmatpush1.msra.mxu0 0.0
      %3689 = vmatprep.subr.mxu0 0.0
      %3690 = vmatpush1.msra.mxu0 0.0
      %3691 = vmatprep.subr.mxu0 0.0
      %3692 = vmatpush1.msra.mxu0 0.0
      %3693 = vmatprep.subr.mxu0 0.0
      %3694 = vmatpush1.msra.mxu0 0.0
      %3695 = vmatprep.mubr.f32.mxu0 0.0
      %3696 = vmatmul.mubr.f32.gmra.mrb[0].mxu0 %v3608
      %v3697 = vpop.f32.mrb[0].mxu0
      %v3698 = vadd.f32 0.0, %v3697
      %v3699 = vpop.f32.mrb[0].mxu0
      %3700 = vmatprep.mubr.f32.mxu0 0.0
      %3701 = vmatmul.mubr.f32.gmra.mrb[0].mxu0 %v3610
      %v3702 = vpop.f32.mrb[0].mxu0
      %v3703 = vadd.f32 0.0, %v3702
      %v3704 = vpop.f32.mrb[0].mxu0
      %3705 = vmatprep.mubr.f32.mxu0 0.0
      %3706 = vmatmul.mubr.f32.gmra.mrb[0].mxu0 %v3612
      %v3707 = vpop.f32.mrb[0].mxu0
      %v3708 = vadd.f32 0.0, %v3707
      %v3709 = vpop.f32.mrb[0].mxu0
      %3710 = vmatprep.mubr.f32.mxu0 0.0
      %3711 = vmatmul.mubr.f32.gmra.mrb[0].mxu0 %v3614
      %v3712 = vpop.f32.mrb[0].mxu0
      %v3713 = vadd.f32 0.0, %v3712
      %v3714 = vpop.f32.mrb[0].mxu0
      %3715 = vmatprep.mubr.f32.mxu0 0.0
      %3716 = vmatmul.mubr.f32.gmra.mrb[0].mxu0 %v3616
      %v3717 = vpop.f32.mrb[0].mxu0
      %v3718 = vadd.f32 0.0, %v3717
      %v3719 = vpop.f32.mrb[0].mxu0
      %3720 = vmatprep.mubr.f32.mxu0 0.0
      %3721 = vmatmul.mubr.f32.gmra.mrb[0].mxu0 %v3618
      %v3722 = vpop.f32.mrb[0].mxu0
      %v3723 = vadd.f32 0.0, %v3722
      %v3724 = vpop.f32.mrb[0].mxu0
      %3725 = vmatprep.mubr.f32.mxu0 0.0
      %3726 = vmatmul.mubr.f32.gmra.mrb[0].mxu0 %v3620
      %v3727 = vpop.f32.mrb[0].mxu0
      %v3728 = vadd.f32 0.0, %v3727
      %v3729 = vpop.f32.mrb[0].mxu0
      %3730 = vmatprep.mubr.f32.mxu0 0.0
      %3731 = vmatmul.mubr.f32.gmra.mrb[0].mxu0 %v3622
      %v3732 = vpop.f32.mrb[0].mxu0
      %v3733 = vadd.f32 0.0, %v3732
      %v3734 = vpop.f32.mrb[0].mxu0
      %3735 = vmatprep.mubr.f32.mxu0 0.0
      %3736 = vmatmul.mubr.f32.gmra.mrb[0].mxu0 %v3624
      %v3737 = vpop.f32.mrb[0].mxu0
      %v3738 = vadd.f32 0.0, %v3737
      %v3739 = vpop.f32.mrb[0].mxu0
      %3740 = vmatprep.mubr.f32.mxu0 0.0
      %3741 = vmatmul.mubr.f32.gmra.mrb[0].mxu0 %v3626
      %v3742 = vpop.f32.mrb[0].mxu0
      %v3743 = vadd.f32 0.0, %v3742
      %v3744 = vpop.f32.mrb[0].mxu0
      %3745 = vdwg.mxu0
      %v3746 = vadd.f32 %v3410, %v3698
      %v3747 = vadd.f32 %v3411, %v3703
      %v3748 = vadd.f32 %v3412, %v3708
      %v3749 = vadd.f32 %v3413, %v3713
      %v3750 = vadd.f32 %v3414, %v3718
      %v3751 = vadd.f32 %v3415, %v3723
      %v3752 = vadd.f32 %v3416, %v3728
      %v3753 = vadd.f32 %v3417, %v3733
      %v3754 = vadd.f32 %v3418, %v3738
      %v3755 = vadd.f32 %v3419, %v3743
      %s3756 = scalar_lea.vmem %s3, 64
      %v3757 = vld [vmem:[%s3756] sm:$0x1f]
      %v3758 = vcombine.low %v2226, %v2876
      %v3760 = vunpack.c.l.s4 1983009808
      %v3761 = vunpack.c.0.s8 %v3760
      %v3762 = vlaneseq
      %v3763 = vshrl.u32 %v3762, 7
      %v3764 = vsub.s32 %v3761, %v3763
      %v3765 = vrot.slane %v3758, %v3764
      %v3766 = vcombine.low %v2629, %v3765
      %v3767 = vcombine.low %v3426, %v997
      %v3769 = vunpack.c.l.s4 1983009808
      %v3770 = vunpack.c.0.s8 %v3769
      %v3771 = vlaneseq
      %v3772 = vshrl.u32 %v3771, 7
      %v3773 = vsub.s32 %v3770, %v3772
      %v3774 = vrot.slane %v3767, %v3773
      %v3775 = vcombine.low %v3774, %v2647
      %v3776 = vcombine.low %v2877, %v3433
      %v3778 = vunpack.c.l.s4 1983009808
      %v3779 = vunpack.c.0.s8 %v3778
      %v3780 = vlaneseq
      %v3781 = vshrl.u32 %v3780, 7
      %v3782 = vsub.s32 %v3779, %v3781
      %v3783 = vrot.slane %v3776, %v3782
      %v3784 = vcombine.low %v3783, %v2657
      %v3785 = vcombine.low %v2240, %v2878
      %v3786 = vcombine.low %v3440, %v1043
      %v3788 = vunpack.c.l.s4 1983009808
      %v3789 = vunpack.c.0.s8 %v3788
      %v3790 = vlaneseq
      %v3791 = vshrl.u32 %v3790, 7
      %v3792 = vsub.s32 %v3789, %v3791
      %v3793 = vrot.slane %v3785, %v3792
      %v3795 = vunpack.c.l.s4 1983009808
      %v3796 = vunpack.c.0.s8 %v3795
      %v3797 = vlaneseq
      %v3798 = vshrl.u32 %v3797, 7
      %v3799 = vsub.s32 %v3796, %v3798
      %v3800 = vrot.slane %v3786, %v3799
      %v3801 = vcombine.low %v3793, %v3800
      %v3802 = vcombine.low %v2879, %v3447
      %v3804 = vunpack.c.l.s4 1983009808
      %v3805 = vunpack.c.0.s8 %v3804
      %v3806 = vlaneseq
      %v3807 = vshrl.u32 %v3806, 7
      %v3808 = vsub.s32 %v3805, %v3807
      %v3809 = vrot.slane %v3802, %v3808
      %v3810 = vcombine.low %v2673, %v3809
      %v3811 = vcombine.low %v2254, %v2880
      %v3813 = vunpack.c.l.s4 1983009808
      %v3814 = vunpack.c.0.s8 %v3813
      %v3815 = vlaneseq
      %v3816 = vshrl.u32 %v3815, 7
      %v3817 = vsub.s32 %v3814, %v3816
      %v3818 = vrot.slane %v3811, %v3817
      %v3819 = vcombine.low %v2682, %v3818
      %v3820 = vcombine.low %v3454, %v1089
      %v3822 = vunpack.c.l.s4 1983009808
      %v3823 = vunpack.c.0.s8 %v3822
      %v3824 = vlaneseq
      %v3825 = vshrl.u32 %v3824, 7
      %v3826 = vsub.s32 %v3823, %v3825
      %v3827 = vrot.slane %v3820, %v3826
      %v3828 = vcombine.low %v3827, %v2700
      %v3829 = vcombine.low %v2881, %v3461
      %v3831 = vunpack.c.l.s4 1983009808
      %v3832 = vunpack.c.0.s8 %v3831
      %v3833 = vlaneseq
      %v3834 = vshrl.u32 %v3833, 7
      %v3835 = vsub.s32 %v3832, %v3834
      %v3836 = vrot.slane %v3829, %v3835
      %v3837 = vcombine.low %v3836, %v2710
      %v3838 = vcombine.low %v2268, %v2882
      %v3839 = vcombine.low %v3468, %v1135
      %v3841 = vunpack.c.l.s4 1983009808
      %v3842 = vunpack.c.0.s8 %v3841
      %v3843 = vlaneseq
      %v3844 = vshrl.u32 %v3843, 7
      %v3845 = vsub.s32 %v3842, %v3844
      %v3846 = vrot.slane %v3838, %v3845
      %v3848 = vunpack.c.l.s4 1983009808
      %v3849 = vunpack.c.0.s8 %v3848
      %v3850 = vlaneseq
      %v3851 = vshrl.u32 %v3850, 7
      %v3852 = vsub.s32 %v3849, %v3851
      %v3853 = vrot.slane %v3839, %v3852
      %v3854 = vcombine.low %v3846, %v3853
      %v3855 = vcombine.low %v2883, %v3475
      %v3857 = vunpack.c.l.s4 1983009808
      %v3858 = vunpack.c.0.s8 %v3857
      %v3859 = vlaneseq
      %v3860 = vshrl.u32 %v3859, 7
      %v3861 = vsub.s32 %v3858, %v3860
      %v3862 = vrot.slane %v3855, %v3861
      %v3863 = vcombine.low %v2726, %v3862
      %v3864 = vsel %vm1452, %v3766, 0
      %v3866 = vsel %vm1452, %v3775, 0
      %v3868 = vsel %vm1452, %v3784, 0
      %v3870 = vsel %vm1452, %v3801, 0
      %v3872 = vsel %vm1452, %v3810, 0
      %v3874 = vsel %vm1452, %v3819, 0
      %v3876 = vsel %vm1452, %v3828, 0
      %v3878 = vsel %vm1452, %v3837, 0
      %v3880 = vsel %vm1452, %v3854, 0
      %v3882 = vsel %vm1452, %v3863, 0
      %v3885 = vsel %vm1473, %v3757, 0
      %3887 = vmatprep.subr.mxu0 0.0
      %3888 = vmatpush1.msra.mxu0 %v3885
      %3889 = vmatprep.subr.mxu0 0.0
      %3890 = vmatpush1.msra.mxu0 0.0
      %3891 = vmatprep.subr.mxu0 0.0
      %3892 = vmatpush1.msra.mxu0 0.0
      %3893 = vmatprep.subr.mxu0 0.0
      %3894 = vmatpush1.msra.mxu0 0.0
      %3895 = vmatprep.subr.mxu0 0.0
      %3896 = vmatpush1.msra.mxu0 0.0
      %3897 = vmatprep.subr.mxu0 0.0
      %3898 = vmatpush1.msra.mxu0 0.0
      %3899 = vmatprep.subr.mxu0 0.0
      %3900 = vmatpush1.msra.mxu0 0.0
      %3901 = vmatprep.subr.mxu0 0.0
      %3902 = vmatpush1.msra.mxu0 0.0
      %3903 = vmatprep.subr.mxu0 0.0
      %3904 = vmatpush1.msra.mxu0 0.0
      %3905 = vmatprep.subr.mxu0 0.0
      %3906 = vmatpush1.msra.mxu0 0.0
      %3907 = vmatprep.subr.mxu0 0.0
      %3908 = vmatpush1.msra.mxu0 0.0
      %3909 = vmatprep.subr.mxu0 0.0
      %3910 = vmatpush1.msra.mxu0 0.0
      %3911 = vmatprep.subr.mxu0 0.0
      %3912 = vmatpush1.msra.mxu0 0.0
      %3913 = vmatprep.subr.mxu0 0.0
      %3914 = vmatpush1.msra.mxu0 0.0
      %3915 = vmatprep.subr.mxu0 0.0
      %3916 = vmatpush1.msra.mxu0 0.0
      %3917 = vmatprep.subr.mxu0 0.0
      %3918 = vmatpush1.msra.mxu0 0.0
      %3919 = vmatprep.subr.mxu0 0.0
      %3920 = vmatpush1.msra.mxu0 0.0
      %3921 = vmatprep.subr.mxu0 0.0
      %3922 = vmatpush1.msra.mxu0 0.0
      %3923 = vmatprep.subr.mxu0 0.0
      %3924 = vmatpush1.msra.mxu0 0.0
      %3925 = vmatprep.subr.mxu0 0.0
      %3926 = vmatpush1.msra.mxu0 0.0
      %3927 = vmatprep.subr.mxu0 0.0
      %3928 = vmatpush1.msra.mxu0 0.0
      %3929 = vmatprep.subr.mxu0 0.0
      %3930 = vmatpush1.msra.mxu0 0.0
      %3931 = vmatprep.subr.mxu0 0.0
      %3932 = vmatpush1.msra.mxu0 0.0
      %3933 = vmatprep.subr.mxu0 0.0
      %3934 = vmatpush1.msra.mxu0 0.0
      %3935 = vmatprep.subr.mxu0 0.0
      %3936 = vmatpush1.msra.mxu0 0.0
      %3937 = vmatprep.subr.mxu0 0.0
      %3938 = vmatpush1.msra.mxu0 0.0
      %3939 = vmatprep.subr.mxu0 0.0
      %3940 = vmatpush1.msra.mxu0 0.0
      %3941 = vmatprep.subr.mxu0 0.0
      %3942 = vmatpush1.msra.mxu0 0.0
      %3943 = vmatprep.subr.mxu0 0.0
      %3944 = vmatpush1.msra.mxu0 0.0
      %3945 = vmatprep.subr.mxu0 0.0
      %3946 = vmatpush1.msra.mxu0 0.0
      %3947 = vmatprep.subr.mxu0 0.0
      %3948 = vmatpush1.msra.mxu0 0.0
      %3949 = vmatprep.subr.mxu0 0.0
      %3950 = vmatpush1.msra.mxu0 0.0
      %3951 = vmatprep.mubr.f32.mxu0 0.0
      %3952 = vmatmul.mubr.f32.gmra.mrb[0].mxu0 %v3864
      %v3953 = vpop.f32.mrb[0].mxu0
      %v3954 = vadd.f32 0.0, %v3953
      %v3955 = vpop.f32.mrb[0].mxu0
      %3956 = vmatprep.mubr.f32.mxu0 0.0
      %3957 = vmatmul.mubr.f32.gmra.mrb[0].mxu0 %v3866
      %v3958 = vpop.f32.mrb[0].mxu0
      %v3959 = vadd.f32 0.0, %v3958
      %v3960 = vpop.f32.mrb[0].mxu0
      %3961 = vmatprep.mubr.f32.mxu0 0.0
      %3962 = vmatmul.mubr.f32.gmra.mrb[0].mxu0 %v3868
      %v3963 = vpop.f32.mrb[0].mxu0
      %v3964 = vadd.f32 0.0, %v3963
      %v3965 = vpop.f32.mrb[0].mxu0
      %3966 = vmatprep.mubr.f32.mxu0 0.0
      %3967 = vmatmul.mubr.f32.gmra.mrb[0].mxu0 %v3870
      %v3968 = vpop.f32.mrb[0].mxu0
      %v3969 = vadd.f32 0.0, %v3968
      %v3970 = vpop.f32.mrb[0].mxu0
      %3971 = vmatprep.mubr.f32.mxu0 0.0
      %3972 = vmatmul.mubr.f32.gmra.mrb[0].mxu0 %v3872
      %v3973 = vpop.f32.mrb[0].mxu0
      %v3974 = vadd.f32 0.0, %v3973
      %v3975 = vpop.f32.mrb[0].mxu0
      %3976 = vmatprep.mubr.f32.mxu0 0.0
      %3977 = vmatmul.mubr.f32.gmra.mrb[0].mxu0 %v3874
      %v3978 = vpop.f32.mrb[0].mxu0
      %v3979 = vadd.f32 0.0, %v3978
      %v3980 = vpop.f32.mrb[0].mxu0
      %3981 = vmatprep.mubr.f32.mxu0 0.0
      %3982 = vmatmul.mubr.f32.gmra.mrb[0].mxu0 %v3876
      %v3983 = vpop.f32.mrb[0].mxu0
      %v3984 = vadd.f32 0.0, %v3983
      %v3985 = vpop.f32.mrb[0].mxu0
      %3986 = vmatprep.mubr.f32.mxu0 0.0
      %3987 = vmatmul.mubr.f32.gmra.mrb[0].mxu0 %v3878
      %v3988 = vpop.f32.mrb[0].mxu0
      %v3989 = vadd.f32 0.0, %v3988
      %v3990 = vpop.f32.mrb[0].mxu0
      %3991 = vmatprep.mubr.f32.mxu0 0.0
      %3992 = vmatmul.mubr.f32.gmra.mrb[0].mxu0 %v3880
      %v3993 = vpop.f32.mrb[0].mxu0
      %v3994 = vadd.f32 0.0, %v3993
      %v3995 = vpop.f32.mrb[0].mxu0
      %3996 = vmatprep.mubr.f32.mxu0 0.0
      %3997 = vmatmul.mubr.f32.gmra.mrb[0].mxu0 %v3882
      %v3998 = vpop.f32.mrb[0].mxu0
      %v3999 = vadd.f32 0.0, %v3998
      %v4000 = vpop.f32.mrb[0].mxu0
      %4001 = vdwg.mxu0
      %v4002 = vadd.f32 %v3746, %v3954
      %v4003 = vadd.f32 %v3747, %v3959
      %v4004 = vadd.f32 %v3748, %v3964
      %v4005 = vadd.f32 %v3749, %v3969
      %v4006 = vadd.f32 %v3750, %v3974
      %v4007 = vadd.f32 %v3751, %v3979
      %v4008 = vadd.f32 %v3752, %v3984
      %v4009 = vadd.f32 %v3753, %v3989
      %v4010 = vadd.f32 %v3754, %v3994
      %v4011 = vadd.f32 %v3755, %v3999
      %v4012 = vld [vmem:[%s4] sm:$0x1]
      %v4014 = vlaneseq
      %v4015 = vshrl.u32 %v4014, 7
      %v4016 = vsub.s32 0, %v4015
      %v4017 = vrot.slane %v4012, %v4016
      %v4019 = vadd.f32 %v4002, %v4017
      %v4020 = vadd.f32 %v4003, %v4017
      %v4021 = vadd.f32 %v4004, %v4017
      %v4022 = vadd.f32 %v4005, %v4017
      %v4023 = vadd.f32 %v4006, %v4017
      %v4024 = vadd.f32 %v4007, %v4017
      %v4025 = vadd.f32 %v4008, %v4017
      %v4026 = vadd.f32 %v4009, %v4017
      %v4027 = vadd.f32 %v4010, %v4017
      %v4028 = vadd.f32 %v4011, %v4017
      %v4029 = vmax.f32 %v4019, 0.0
      %v4030 = vmax.f32 %v4020, 0.0
      %v4031 = vmax.f32 %v4021, 0.0
      %v4032 = vmax.f32 %v4022, 0.0
      %v4033 = vmax.f32 %v4023, 0.0
      %v4034 = vmax.f32 %v4024, 0.0
      %v4035 = vmax.f32 %v4025, 0.0
      %v4036 = vmax.f32 %v4026, 0.0
      %v4037 = vmax.f32 %v4027, 0.0
      %v4038 = vmax.f32 %v4028, 0.0
      %v4049 = vcombine.high %v4029, %v4029
      %v4051 = vunpack.c.l.s4 1983009808
      %v4052 = vunpack.c.0.s8 %v4051
      %v4053 = vlaneseq
      %v4054 = vshrl.u32 %v4053, 7
      %v4055 = vsub.s32 %v4052, %v4054
      %v4056 = vrot.slane %v4029, %v4055
      %v4058 = vunpack.c.l.s4 1983009808
      %v4059 = vunpack.c.0.s8 %v4058
      %v4060 = vlaneseq
      %v4061 = vshrl.u32 %v4060, 7
      %v4062 = vsub.s32 %v4059, %v4061
      %v4063 = vrot.slane %v4049, %v4062
      %v4064 = vcombine.high %v4056, %v4056
      %v4065 = vcombine.high %v4063, %v4063
      %v4066 = vcombine.high %v4030, %v4030
      %v4068 = vunpack.c.l.s4 1983009808
      %v4069 = vunpack.c.0.s8 %v4068
      %v4070 = vlaneseq
      %v4071 = vshrl.u32 %v4070, 7
      %v4072 = vsub.s32 %v4069, %v4071
      %v4073 = vrot.slane %v4030, %v4072
      %v4075 = vunpack.c.l.s4 1983009808
      %v4076 = vunpack.c.0.s8 %v4075
      %v4077 = vlaneseq
      %v4078 = vshrl.u32 %v4077, 7
      %v4079 = vsub.s32 %v4076, %v4078
      %v4080 = vrot.slane %v4066, %v4079
      %v4081 = vcombine.high %v4073, %v4073
      %v4082 = vcombine.high %v4080, %v4080
      %v4083 = vcombine.high %v4031, %v4031
      %v4085 = vunpack.c.l.s4 1983009808
      %v4086 = vunpack.c.0.s8 %v4085
      %v4087 = vlaneseq
      %v4088 = vshrl.u32 %v4087, 7
      %v4089 = vsub.s32 %v4086, %v4088
      %v4090 = vrot.slane %v4031, %v4089
      %v4092 = vunpack.c.l.s4 1983009808
      %v4093 = vunpack.c.0.s8 %v4092
      %v4094 = vlaneseq
      %v4095 = vshrl.u32 %v4094, 7
      %v4096 = vsub.s32 %v4093, %v4095
      %v4097 = vrot.slane %v4083, %v4096
      %v4098 = vcombine.high %v4090, %v4090
      %v4099 = vcombine.high %v4097, %v4097
      %v4100 = vcombine.high %v4032, %v4032
      %v4102 = vunpack.c.l.s4 1983009808
      %v4103 = vunpack.c.0.s8 %v4102
      %v4104 = vlaneseq
      %v4105 = vshrl.u32 %v4104, 7
      %v4106 = vsub.s32 %v4103, %v4105
      %v4107 = vrot.slane %v4032, %v4106
      %v4109 = vunpack.c.l.s4 1983009808
      %v4110 = vunpack.c.0.s8 %v4109
      %v4111 = vlaneseq
      %v4112 = vshrl.u32 %v4111, 7
      %v4113 = vsub.s32 %v4110, %v4112
      %v4114 = vrot.slane %v4100, %v4113
      %v4115 = vcombine.high %v4107, %v4107
      %v4116 = vcombine.high %v4114, %v4114
      %v4117 = vcombine.high %v4033, %v4033
      %v4119 = vunpack.c.l.s4 1983009808
      %v4120 = vunpack.c.0.s8 %v4119
      %v4121 = vlaneseq
      %v4122 = vshrl.u32 %v4121, 7
      %v4123 = vsub.s32 %v4120, %v4122
      %v4124 = vrot.slane %v4033, %v4123
      %v4126 = vunpack.c.l.s4 1983009808
      %v4127 = vunpack.c.0.s8 %v4126
      %v4128 = vlaneseq
      %v4129 = vshrl.u32 %v4128, 7
      %v4130 = vsub.s32 %v4127, %v4129
      %v4131 = vrot.slane %v4117, %v4130
      %v4132 = vcombine.high %v4124, %v4124
      %v4133 = vcombine.high %v4131, %v4131
      %v4134 = vcombine.high %v4034, %v4034
      %v4136 = vunpack.c.l.s4 1983009808
      %v4137 = vunpack.c.0.s8 %v4136
      %v4138 = vlaneseq
      %v4139 = vshrl.u32 %v4138, 7
      %v4140 = vsub.s32 %v4137, %v4139
      %v4141 = vrot.slane %v4034, %v4140
      %v4143 = vunpack.c.l.s4 1983009808
      %v4144 = vunpack.c.0.s8 %v4143
      %v4145 = vlaneseq
      %v4146 = vshrl.u32 %v4145, 7
      %v4147 = vsub.s32 %v4144, %v4146
      %v4148 = vrot.slane %v4134, %v4147
      %v4149 = vcombine.high %v4141, %v4141
      %v4150 = vcombine.high %v4148, %v4148
      %v4151 = vcombine.high %v4035, %v4035
      %v4153 = vunpack.c.l.s4 1983009808
      %v4154 = vunpack.c.0.s8 %v4153
      %v4155 = vlaneseq
      %v4156 = vshrl.u32 %v4155, 7
      %v4157 = vsub.s32 %v4154, %v4156
      %v4158 = vrot.slane %v4035, %v4157
      %v4160 = vunpack.c.l.s4 1983009808
      %v4161 = vunpack.c.0.s8 %v4160
      %v4162 = vlaneseq
      %v4163 = vshrl.u32 %v4162, 7
      %v4164 = vsub.s32 %v4161, %v4163
      %v4165 = vrot.slane %v4151, %v4164
      %v4166 = vcombine.high %v4158, %v4158
      %v4167 = vcombine.high %v4165, %v4165
      %v4168 = vcombine.high %v4036, %v4036
      %v4170 = vunpack.c.l.s4 1983009808
      %v4171 = vunpack.c.0.s8 %v4170
      %v4172 = vlaneseq
      %v4173 = vshrl.u32 %v4172, 7
      %v4174 = vsub.s32 %v4171, %v4173
      %v4175 = vrot.slane %v4036, %v4174
      %v4177 = vunpack.c.l.s4 1983009808
      %v4178 = vunpack.c.0.s8 %v4177
      %v4179 = vlaneseq
      %v4180 = vshrl.u32 %v4179, 7
      %v4181 = vsub.s32 %v4178, %v4180
      %v4182 = vrot.slane %v4168, %v4181
      %v4183 = vcombine.high %v4175, %v4175
      %v4184 = vcombine.high %v4182, %v4182
      %v4185 = vcombine.high %v4037, %v4037
      %v4187 = vunpack.c.l.s4 1983009808
      %v4188 = vunpack.c.0.s8 %v4187
      %v4189 = vlaneseq
      %v4190 = vshrl.u32 %v4189, 7
      %v4191 = vsub.s32 %v4188, %v4190
      %v4192 = vrot.slane %v4037, %v4191
      %v4194 = vunpack.c.l.s4 1983009808
      %v4195 = vunpack.c.0.s8 %v4194
      %v4196 = vlaneseq
      %v4197 = vshrl.u32 %v4196, 7
      %v4198 = vsub.s32 %v4195, %v4197
      %v4199 = vrot.slane %v4185, %v4198
      %v4200 = vcombine.high %v4192, %v4192
      %v4201 = vcombine.high %v4199, %v4199
      %v4202 = vcombine.high %v4038, %v4038
      %v4204 = vunpack.c.l.s4 1983009808
      %v4205 = vunpack.c.0.s8 %v4204
      %v4206 = vlaneseq
      %v4207 = vshrl.u32 %v4206, 7
      %v4208 = vsub.s32 %v4205, %v4207
      %v4209 = vrot.slane %v4038, %v4208
      %v4211 = vunpack.c.l.s4 1983009808
      %v4212 = vunpack.c.0.s8 %v4211
      %v4213 = vlaneseq
      %v4214 = vshrl.u32 %v4213, 7
      %v4215 = vsub.s32 %v4212, %v4214
      %v4216 = vrot.slane %v4202, %v4215
      %v4217 = vcombine.high %v4209, %v4209
      %v4218 = vcombine.high %v4216, %v4216
      %v4219 = vcombine.low %v4056, %v4064
      %v4221 = vunpack.c.l.s4 1983009808
      %v4222 = vunpack.c.0.s8 %v4221
      %v4223 = vlaneseq
      %v4224 = vshrl.u32 %v4223, 7
      %v4225 = vsub.s32 %v4222, %v4224
      %v4226 = vrot.slane %v4219, %v4225
      %v4228 = vunpack.c.l.s4 1983009808
      %v4229 = vunpack.c.0.s8 %v4228
      %v4230 = vlaneseq
      %v4231 = vshrl.u32 %v4230, 7
      %v4232 = vsub.s32 %v4229, %v4231
      %v4233 = vrot.slane %v4063, %v4232
      %v4234 = vcombine.low %v4226, %v4233
      %v4235 = vcombine.low %v4081, %v4080
      %v4237 = vunpack.c.l.s4 1983009808
      %v4238 = vunpack.c.0.s8 %v4237
      %v4239 = vlaneseq
      %v4240 = vshrl.u32 %v4239, 7
      %v4241 = vsub.s32 %v4238, %v4240
      %v4242 = vrot.slane %v4235, %v4241
      %v4244 = vunpack.c.l.s4 1983009808
      %v4245 = vunpack.c.0.s8 %v4244
      %v4246 = vlaneseq
      %v4247 = vshrl.u32 %v4246, 7
      %v4248 = vsub.s32 %v4245, %v4247
      %v4249 = vrot.slane %v4082, %v4248
      %v4250 = vcombine.low %v4242, %v4249
      %v4251 = vcombine.low %v4097, %v4099
      %v4253 = vunpack.c.l.s4 1983009808
      %v4254 = vunpack.c.0.s8 %v4253
      %v4255 = vlaneseq
      %v4256 = vshrl.u32 %v4255, 7
      %v4257 = vsub.s32 %v4254, %v4256
      %v4258 = vrot.slane %v4251, %v4257
      %v4260 = vunpack.c.l.s4 1983009808
      %v4261 = vunpack.c.0.s8 %v4260
      %v4262 = vlaneseq
      %v4263 = vshrl.u32 %v4262, 7
      %v4264 = vsub.s32 %v4261, %v4263
      %v4265 = vrot.slane %v4107, %v4264
      %v4266 = vcombine.low %v4258, %v4265
      %v4267 = vcombine.low %v4116, %v4124
      %v4269 = vunpack.c.l.s4 1983009808
      %v4270 = vunpack.c.0.s8 %v4269
      %v4271 = vlaneseq
      %v4272 = vshrl.u32 %v4271, 7
      %v4273 = vsub.s32 %v4270, %v4272
      %v4274 = vrot.slane %v4267, %v4273
      %v4276 = vunpack.c.l.s4 1983009808
      %v4277 = vunpack.c.0.s8 %v4276
      %v4278 = vlaneseq
      %v4279 = vshrl.u32 %v4278, 7
      %v4280 = vsub.s32 %v4277, %v4279
      %v4281 = vrot.slane %v4132, %v4280
      %v4282 = vcombine.low %v4274, %v4281
      %v4283 = vcombine.low %v4141, %v4149
      %v4285 = vunpack.c.l.s4 1983009808
      %v4286 = vunpack.c.0.s8 %v4285
      %v4287 = vlaneseq
      %v4288 = vshrl.u32 %v4287, 7
      %v4289 = vsub.s32 %v4286, %v4288
      %v4290 = vrot.slane %v4283, %v4289
      %v4292 = vunpack.c.l.s4 1983009808
      %v4293 = vunpack.c.0.s8 %v4292
      %v4294 = vlaneseq
      %v4295 = vshrl.u32 %v4294, 7
      %v4296 = vsub.s32 %v4293, %v4295
      %v4297 = vrot.slane %v4148, %v4296
      %v4298 = vcombine.low %v4290, %v4297
      %v4299 = vcombine.low %v4166, %v4165
      %v4301 = vunpack.c.l.s4 1983009808
      %v4302 = vunpack.c.0.s8 %v4301
      %v4303 = vlaneseq
      %v4304 = vshrl.u32 %v4303, 7
      %v4305 = vsub.s32 %v4302, %v4304
      %v4306 = vrot.slane %v4299, %v4305
      %v4308 = vunpack.c.l.s4 1983009808
      %v4309 = vunpack.c.0.s8 %v4308
      %v4310 = vlaneseq
      %v4311 = vshrl.u32 %v4310, 7
      %v4312 = vsub.s32 %v4309, %v4311
      %v4313 = vrot.slane %v4167, %v4312
      %v4314 = vcombine.low %v4306, %v4313
      %v4315 = vcombine.low %v4182, %v4184
      %v4317 = vunpack.c.l.s4 1983009808
      %v4318 = vunpack.c.0.s8 %v4317
      %v4319 = vlaneseq
      %v4320 = vshrl.u32 %v4319, 7
      %v4321 = vsub.s32 %v4318, %v4320
      %v4322 = vrot.slane %v4315, %v4321
      %v4324 = vunpack.c.l.s4 1983009808
      %v4325 = vunpack.c.0.s8 %v4324
      %v4326 = vlaneseq
      %v4327 = vshrl.u32 %v4326, 7
      %v4328 = vsub.s32 %v4325, %v4327
      %v4329 = vrot.slane %v4192, %v4328
      %v4330 = vcombine.low %v4322, %v4329
      %v4331 = vcombine.low %v4201, %v4209
      %v4333 = vunpack.c.l.s4 1983009808
      %v4334 = vunpack.c.0.s8 %v4333
      %v4335 = vlaneseq
      %v4336 = vshrl.u32 %v4335, 7
      %v4337 = vsub.s32 %v4334, %v4336
      %v4338 = vrot.slane %v4331, %v4337
      %v4340 = vunpack.c.l.s4 1983009808
      %v4341 = vunpack.c.0.s8 %v4340
      %v4342 = vlaneseq
      %v4343 = vshrl.u32 %v4342, 7
      %v4344 = vsub.s32 %v4341, %v4343
      %v4345 = vrot.slane %v4217, %v4344
      %v4346 = vcombine.low %v4338, %v4345
      %vm4355 = vcmask 61440
      %v4356 = vsel %vm4355, %v4234, -inf
      %v4357 = vrot.slane %v4356, 4
      %v4358 = vmax.f32 %v4356, %v4357
      %v4359 = vrot.slane %v4358, 2
      %v4360 = vmax.f32 %v4358, %v4359
      %v4361 = vrot.slane %v4360, 1
      %v4362 = vmax.f32 %v4360, %v4361
      %v4363 = vsel %vm4355, %v4250, -inf
      %v4364 = vrot.slane %v4363, 4
      %v4365 = vmax.f32 %v4363, %v4364
      %v4366 = vrot.slane %v4365, 2
      %v4367 = vmax.f32 %v4365, %v4366
      %v4368 = vrot.slane %v4367, 1
      %v4369 = vmax.f32 %v4367, %v4368
      %v4370 = vsel %vm4355, %v4266, -inf
      %v4371 = vrot.slane %v4370, 4
      %v4372 = vmax.f32 %v4370, %v4371
      %v4373 = vrot.slane %v4372, 2
      %v4374 = vmax.f32 %v4372, %v4373
      %v4375 = vrot.slane %v4374, 1
      %v4376 = vmax.f32 %v4374, %v4375
      %v4377 = vsel %vm4355, %v4282, -inf
      %v4378 = vrot.slane %v4377, 4
      %v4379 = vmax.f32 %v4377, %v4378
      %v4380 = vrot.slane %v4379, 2
      %v4381 = vmax.f32 %v4379, %v4380
      %v4382 = vrot.slane %v4381, 1
      %v4383 = vmax.f32 %v4381, %v4382
      %v4384 = vsel %vm4355, %v4298, -inf
      %v4385 = vrot.slane %v4384, 4
      %v4386 = vmax.f32 %v4384, %v4385
      %v4387 = vrot.slane %v4386, 2
      %v4388 = vmax.f32 %v4386, %v4387
      %v4389 = vrot.slane %v4388, 1
      %v4390 = vmax.f32 %v4388, %v4389
      %v4391 = vsel %vm4355, %v4314, -inf
      %v4392 = vrot.slane %v4391, 4
      %v4393 = vmax.f32 %v4391, %v4392
      %v4394 = vrot.slane %v4393, 2
      %v4395 = vmax.f32 %v4393, %v4394
      %v4396 = vrot.slane %v4395, 1
      %v4397 = vmax.f32 %v4395, %v4396
      %v4398 = vsel %vm4355, %v4330, -inf
      %v4399 = vrot.slane %v4398, 4
      %v4400 = vmax.f32 %v4398, %v4399
      %v4401 = vrot.slane %v4400, 2
      %v4402 = vmax.f32 %v4400, %v4401
      %v4403 = vrot.slane %v4402, 1
      %v4404 = vmax.f32 %v4402, %v4403
      %v4405 = vsel %vm4355, %v4346, -inf
      %v4406 = vrot.slane %v4405, 4
      %v4407 = vmax.f32 %v4405, %v4406
      %v4408 = vrot.slane %v4407, 2
      %v4409 = vmax.f32 %v4407, %v4408
      %v4410 = vrot.slane %v4409, 1
      %v4411 = vmax.f32 %v4409, %v4410
      %v4412 = vcombine.low %v4063, %v4065
      %v4414 = vunpack.c.l.s4 1983009808
      %v4415 = vunpack.c.0.s8 %v4414
      %v4416 = vlaneseq
      %v4417 = vshrl.u32 %v4416, 7
      %v4418 = vsub.s32 %v4415, %v4417
      %v4419 = vrot.slane %v4412, %v4418
      %v4421 = vunpack.c.l.s4 1983009808
      %v4422 = vunpack.c.0.s8 %v4421
      %v4423 = vlaneseq
      %v4424 = vshrl.u32 %v4423, 7
      %v4425 = vsub.s32 %v4422, %v4424
      %v4426 = vrot.slane %v4073, %v4425
      %v4427 = vcombine.low %v4419, %v4426
      %v4428 = vcombine.low %v4082, %v4090
      %v4430 = vunpack.c.l.s4 1983009808
      %v4431 = vunpack.c.0.s8 %v4430
      %v4432 = vlaneseq
      %v4433 = vshrl.u32 %v4432, 7
      %v4434 = vsub.s32 %v4431, %v4433
      %v4435 = vrot.slane %v4428, %v4434
      %v4437 = vunpack.c.l.s4 1983009808
      %v4438 = vunpack.c.0.s8 %v4437
      %v4439 = vlaneseq
      %v4440 = vshrl.u32 %v4439, 7
      %v4441 = vsub.s32 %v4438, %v4440
      %v4442 = vrot.slane %v4098, %v4441
      %v4443 = vcombine.low %v4435, %v4442
      %v4444 = vcombine.low %v4107, %v4115
      %v4446 = vunpack.c.l.s4 1983009808
      %v4447 = vunpack.c.0.s8 %v4446
      %v4448 = vlaneseq
      %v4449 = vshrl.u32 %v4448, 7
      %v4450 = vsub.s32 %v4447, %v4449
      %v4451 = vrot.slane %v4444, %v4450
      %v4453 = vunpack.c.l.s4 1983009808
      %v4454 = vunpack.c.0.s8 %v4453
      %v4455 = vlaneseq
      %v4456 = vshrl.u32 %v4455, 7
      %v4457 = vsub.s32 %v4454, %v4456
      %v4458 = vrot.slane %v4114, %v4457
      %v4459 = vcombine.low %v4451, %v4458
      %v4460 = vcombine.low %v4132, %v4131
      %v4462 = vunpack.c.l.s4 1983009808
      %v4463 = vunpack.c.0.s8 %v4462
      %v4464 = vlaneseq
      %v4465 = vshrl.u32 %v4464, 7
      %v4466 = vsub.s32 %v4463, %v4465
      %v4467 = vrot.slane %v4460, %v4466
      %v4469 = vunpack.c.l.s4 1983009808
      %v4470 = vunpack.c.0.s8 %v4469
      %v4471 = vlaneseq
      %v4472 = vshrl.u32 %v4471, 7
      %v4473 = vsub.s32 %v4470, %v4472
      %v4474 = vrot.slane %v4133, %v4473
      %v4475 = vcombine.low %v4467, %v4474
      %v4476 = vcombine.low %v4148, %v4150
      %v4478 = vunpack.c.l.s4 1983009808
      %v4479 = vunpack.c.0.s8 %v4478
      %v4480 = vlaneseq
      %v4481 = vshrl.u32 %v4480, 7
      %v4482 = vsub.s32 %v4479, %v4481
      %v4483 = vrot.slane %v4476, %v4482
      %v4485 = vunpack.c.l.s4 1983009808
      %v4486 = vunpack.c.0.s8 %v4485
      %v4487 = vlaneseq
      %v4488 = vshrl.u32 %v4487, 7
      %v4489 = vsub.s32 %v4486, %v4488
      %v4490 = vrot.slane %v4158, %v4489
      %v4491 = vcombine.low %v4483, %v4490
      %v4492 = vcombine.low %v4167, %v4175
      %v4494 = vunpack.c.l.s4 1983009808
      %v4495 = vunpack.c.0.s8 %v4494
      %v4496 = vlaneseq
      %v4497 = vshrl.u32 %v4496, 7
      %v4498 = vsub.s32 %v4495, %v4497
      %v4499 = vrot.slane %v4492, %v4498
      %v4501 = vunpack.c.l.s4 1983009808
      %v4502 = vunpack.c.0.s8 %v4501
      %v4503 = vlaneseq
      %v4504 = vshrl.u32 %v4503, 7
      %v4505 = vsub.s32 %v4502, %v4504
      %v4506 = vrot.slane %v4183, %v4505
      %v4507 = vcombine.low %v4499, %v4506
      %v4508 = vcombine.low %v4192, %v4200
      %v4510 = vunpack.c.l.s4 1983009808
      %v4511 = vunpack.c.0.s8 %v4510
      %v4512 = vlaneseq
      %v4513 = vshrl.u32 %v4512, 7
      %v4514 = vsub.s32 %v4511, %v4513
      %v4515 = vrot.slane %v4508, %v4514
      %v4517 = vunpack.c.l.s4 1983009808
      %v4518 = vunpack.c.0.s8 %v4517
      %v4519 = vlaneseq
      %v4520 = vshrl.u32 %v4519, 7
      %v4521 = vsub.s32 %v4518, %v4520
      %v4522 = vrot.slane %v4199, %v4521
      %v4523 = vcombine.low %v4515, %v4522
      %v4524 = vcombine.low %v4217, %v4216
      %v4526 = vunpack.c.l.s4 1983009808
      %v4527 = vunpack.c.0.s8 %v4526
      %v4528 = vlaneseq
      %v4529 = vshrl.u32 %v4528, 7
      %v4530 = vsub.s32 %v4527, %v4529
      %v4531 = vrot.slane %v4524, %v4530
      %v4533 = vunpack.c.l.s4 1983009808
      %v4534 = vunpack.c.0.s8 %v4533
      %v4535 = vlaneseq
      %v4536 = vshrl.u32 %v4535, 7
      %v4537 = vsub.s32 %v4534, %v4536
      %v4538 = vrot.slane %v4218, %v4537
      %v4539 = vcombine.low %v4531, %v4538
      %vm4548 = vcmask 62465
      %v4549 = vsel %vm4548, %v4427, -inf
      %v4550 = vrot.slane %v4549, 4
      %v4551 = vmax.f32 %v4549, %v4550
      %v4552 = vrot.slane %v4551, 2
      %v4553 = vmax.f32 %v4551, %v4552
      %v4554 = vrot.slane %v4553, 1
      %v4555 = vmax.f32 %v4553, %v4554
      %v4556 = vsel %vm4548, %v4443, -inf
      %v4557 = vrot.slane %v4556, 4
      %v4558 = vmax.f32 %v4556, %v4557
      %v4559 = vrot.slane %v4558, 2
      %v4560 = vmax.f32 %v4558, %v4559
      %v4561 = vrot.slane %v4560, 1
      %v4562 = vmax.f32 %v4560, %v4561
      %v4563 = vsel %vm4548, %v4459, -inf
      %v4564 = vrot.slane %v4563, 4
      %v4565 = vmax.f32 %v4563, %v4564
      %v4566 = vrot.slane %v4565, 2
      %v4567 = vmax.f32 %v4565, %v4566
      %v4568 = vrot.slane %v4567, 1
      %v4569 = vmax.f32 %v4567, %v4568
      %v4570 = vsel %vm4548, %v4475, -inf
      %v4571 = vrot.slane %v4570, 4
      %v4572 = vmax.f32 %v4570, %v4571
      %v4573 = vrot.slane %v4572, 2
      %v4574 = vmax.f32 %v4572, %v4573
      %v4575 = vrot.slane %v4574, 1
      %v4576 = vmax.f32 %v4574, %v4575
      %v4577 = vsel %vm4548, %v4491, -inf
      %v4578 = vrot.slane %v4577, 4
      %v4579 = vmax.f32 %v4577, %v4578
      %v4580 = vrot.slane %v4579, 2
      %v4581 = vmax.f32 %v4579, %v4580
      %v4582 = vrot.slane %v4581, 1
      %v4583 = vmax.f32 %v4581, %v4582
      %v4584 = vsel %vm4548, %v4507, -inf
      %v4585 = vrot.slane %v4584, 4
      %v4586 = vmax.f32 %v4584, %v4585
      %v4587 = vrot.slane %v4586, 2
      %v4588 = vmax.f32 %v4586, %v4587
      %v4589 = vrot.slane %v4588, 1
      %v4590 = vmax.f32 %v4588, %v4589
      %v4591 = vsel %vm4548, %v4523, -inf
      %v4592 = vrot.slane %v4591, 4
      %v4593 = vmax.f32 %v4591, %v4592
      %v4594 = vrot.slane %v4593, 2
      %v4595 = vmax.f32 %v4593, %v4594
      %v4596 = vrot.slane %v4595, 1
      %v4597 = vmax.f32 %v4595, %v4596
      %v4598 = vsel %vm4548, %v4539, -inf
      %v4599 = vrot.slane %v4598, 4
      %v4600 = vmax.f32 %v4598, %v4599
      %v4601 = vrot.slane %v4600, 2
      %v4602 = vmax.f32 %v4600, %v4601
      %v4603 = vrot.slane %v4602, 1
      %v4604 = vmax.f32 %v4602, %v4603
      %vm4613 = vcmask 1041409
      %v4614 = vsel %vm4613, %v4369, %v4362
      %v4615 = vsel %vm1146, %v4376, %v4614
      %vm4616 = vcmask 1043459
      %v4617 = vsel %vm4616, %v4383, %v4615
      %v4618 = vsel %vm1148, %v4390, %v4617
      %vm4619 = vcmask 1045509
      %v4620 = vsel %vm4619, %v4397, %v4618
      %v4621 = vsel %vm1150, %v4404, %v4620
      %vm4622 = vcmask 1047559
      %v4623 = vsel %vm4622, %v4411, %v4621
      %v4633 = vsel %vm4613, %v4562, %v4555
      %v4634 = vsel %vm1146, %v4569, %v4633
      %v4635 = vsel %vm4616, %v4576, %v4634
      %v4636 = vsel %vm1148, %v4583, %v4635
      %v4637 = vsel %vm4619, %v4590, %v4636
      %v4638 = vsel %vm1150, %v4597, %v4637
      %v4639 = vsel %vm4622, %v4604, %v4638
      %4640 = vrot.lane.b32.xlu0 %v4639, 8
      %v4641 = vpop.permute.xlu0 %4640
      %vm4643 = vcmask 64512
      %v4644 = vsel %vm4643, %v4623, %v4641
      %vm4645 = vcmask 130048
      %4646 = vst.msk [vmem:[%s224] sm:$0xff] %vm4645, %v4644
      %p4647 = scmp.lt.s32.totalorder %s16, 1
      %s4648 = scalar_select %p4647, %s16, 1
      %s4649 = smul.addr %s4648, 8
      %s4650 = scalar_lea.vmem %s5, %s4649
      // Predicated region
      $region41: #{conv_model_with_reduction.1} parent=39 // pred_check
        %p4651 = pneg %p144
      $region42: #{conv_model_with_reduction.1} parent=39 // pred_check_branch
        %4653 = sbr.rel (%p4651) target = $region44
      $region43: #{conv_model_with_reduction.1} parent=39 // pred_region
        _
      $region44: #{conv_model_with_reduction.1} parent=39 // pred_fallthru
        _
    $region40: #{conv_model_with_reduction.1} parent=5 // pred_fallthru
      _
    %p4654 = scmp.le.s32.totalorder 2, %s11
    // Predicated region
    $region45: #{conv_model_with_reduction.1} parent=5 // pred_check
      %p4655 = pneg %p4654
    $region46: #{conv_model_with_reduction.1} parent=5 // pred_check_branch
      %4657 = sbr.rel (%p4655) target = $region48
    $region47: #{conv_model_with_reduction.1} parent=5 // pred_region
      %s4658 = ssub.s32 %s11, 2
      // Predicated region
      $region49: #{conv_model_with_reduction.1} parent=47 // pred_check
        %p4659 = pneg %p150
      $region50: #{conv_model_with_reduction.1} parent=47 // pred_check_branch
        %4661 = sbr.rel (%p4659) target = $region52
      $region51: #{conv_model_with_reduction.1} parent=47 // pred_region
        %p4662 = scmp.lt.s32.totalorder %s17, 1
        %s4663 = scalar_select %p4662, %s17, 1
        %s4664 = smul.addr %s4663, 8
        %s4665 = scalar_lea.vmem %s5, %s4664
      $region52: #{conv_model_with_reduction.1} parent=47 // pred_fallthru
        _
    $region48: #{conv_model_with_reduction.1} parent=5 // pred_fallthru
      _
  $region6: #{conv_model_with_reduction.1} parent=0 // loop_footer
    %s15 = sadd.s32 1, %s11
  $region7: #{conv_model_with_reduction.1} parent=0 // loop_footer_branch
    %10 = sbr.rel target = $region3
  $region8: #{conv_model_with_reduction.1} parent=0 // loop_exit
    _

</llo_original>
